<compile_context>
chip_gen: v7x
topology: tpu7x:2x2x1
jax: 0.10.0
libtpu: 0.0.40
codegen_flags: <defaults>
</compile_context>

<pallas_src>
import functools

import numpy as np
import jax
import jax.numpy as jnp
from jax.experimental import pallas as pl
from jax.experimental.pallas import tpu as pltpu


# ----------------------------- small helpers --------------------------------

def _round_up(x, m):
    return ((x + m - 1) // m) * m


def im2col(x_nhwc, k, stride, pad):
    """XLA-side window extraction for the 7x7 stem conv (data movement only).
    TODO(synk): fold the 7x7 im2col into K1 (halo-row reads) for large inputs;
    the 49x-expanded patch tensor round-trips HBM at realistic resolutions."""
    B, H, W, C = x_nhwc.shape
    Ho = (H + 2 * pad - k) // stride + 1
    Wo = (W + 2 * pad - k) // stride + 1
    xp = jnp.pad(x_nhwc, ((0, 0), (pad, pad), (pad, pad), (0, 0)))
    cols = []
    for i in range(k):
        for j in range(k):
            cols.append(xp[:, i:i + stride * (Ho - 1) + 1:stride,
                           j:j + stride * (Wo - 1) + 1:stride, :])
    pat = jnp.stack(cols, axis=3)                    # [B, Ho, Wo, k*k, C]
    return pat.reshape(B * Ho * Wo, k * k * C), (Ho, Wo)


def adaptive_avg_matrix(in_size, out_size):
    """Row-stochastic averaging matrix of AdaptiveAvgPool1d(out_size)."""
    P = np.zeros((out_size, in_size), np.float32)
    for i in range(out_size):
        s = (i * in_size) // out_size
        e = -(-((i + 1) * in_size) // out_size)      # ceil
        P[i, s:e] = 1.0 / (e - s)
    return P


# -------------------- K1: conv1 matmul + BN statistics ----------------------

def _conv1_bn_stats_kernel(a_ref, w_ref, o_ref, s_ref, *, m_total):
    # x1 tile = patches @ weight  (bf16 operands, f32 accumulation on the MXU),
    # plus per-tile per-channel sum / sum^2 for train-mode BatchNorm.
    x = jnp.dot(a_ref[...], w_ref[...], preferred_element_type=jnp.float32)
    o_ref[...] = x
    tm = a_ref.shape[0]

    def put_stats(xv):
        s_ref[0, 0:1, :] = jnp.sum(xv, axis=0, keepdims=True)
        s_ref[0, 1:2, :] = jnp.sum(xv * xv, axis=0, keepdims=True)

    if m_total % tm == 0:
        put_stats(x)                                  # no ragged tile at all
    else:
        # Ragged-row masking only on the last grid step (pl.when-gated), so the
        # iota/compare/selects are off the VPU for every other step.
        last = pl.num_programs(0) - 1

        @pl.when(pl.program_id(0) != last)
        def _():
            put_stats(x)

        @pl.when(pl.program_id(0) == last)
        def _():
            row = (pl.program_id(0) * tm
                   + jax.lax.broadcasted_iota(jnp.int32, (tm, 1), 0))
            put_stats(jnp.where(row < m_total, x, 0.0))


def conv1_with_bn_stats(a, w, tm=1024):
    """out = a @ w tiled over M (ragged last tile allowed), plus per-tile
    (sum, sum_sq) over rows for BatchNorm statistics.  a, w are bf16."""
    M, K = a.shape
    N = w.shape[1]
    tm = min(tm, _round_up(M, 16))                   # bf16-friendly row count
    # keep at least 2 grid steps when possible so both v7x TensorCores get work
    if pl.cdiv(M, tm) < 2 and tm > 128:
        tm = max(128, _round_up(pl.cdiv(M, 2), 128))
    grid_m = pl.cdiv(M, tm)
    out, stats = pl.pallas_call(
        functools.partial(_conv1_bn_stats_kernel, m_total=M),
        out_shape=(jax.ShapeDtypeStruct((M, N), jnp.float32),
                   jax.ShapeDtypeStruct((grid_m, 2, N), jnp.float32)),
        grid=(grid_m,),
        in_specs=[pl.BlockSpec((tm, K), lambda i: (i, 0)),
                  pl.BlockSpec((K, N), lambda i: (0, 0))],
        out_specs=(pl.BlockSpec((tm, N), lambda i: (i, 0)),
                   pl.BlockSpec((1, 2, N), lambda i: (i, 0, 0))),
        compiler_params=pltpu.CompilerParams(dimension_semantics=("parallel",)),
    )(a, w)
    # TODO(synk): x1 stays (M1, 64) f32; packing it to a lane-dense (M1/2, 128)
    # view needs an in-kernel row-pair -> lane relayout, skipped to keep the
    # Mosaic lowering on well-trodden ops.
    return out, stats


# --------------- K2: fused BN/ReLU + maxpool + FPN + grid pool --------------

def _pad_hw(x, ph0, ph1, pw0, pw1):
    """Zero-pad an (H, W, C) value spatially (via slices/concats, VMEM only)."""
    H, W, C = x.shape
    if ph0 or ph1:
        parts = []
        if ph0:
            parts.append(jnp.zeros((ph0, W, C), x.dtype))
        parts.append(x)
        if ph1:
            parts.append(jnp.zeros((ph1, W, C), x.dtype))
        x = jnp.concatenate(parts, axis=0)
        H = H + ph0 + ph1
    if pw0 or pw1:
        parts = []
        if pw0:
            parts.append(jnp.zeros((H, pw0, C), x.dtype))
        parts.append(x)
        if pw1:
            parts.append(jnp.zeros((H, pw1, C), x.dtype))
        x = jnp.concatenate(parts, axis=1)
    return x


def _fused_tail_kernel(x1_ref, sc_ref, sh_ref, wlat_ref, blat_ref,
                       wc_ref, bc_ref, ph_ref, o_ref, *, H, W):
    f32 = jnp.float32
    bf16 = jnp.bfloat16
    C = x1_ref.shape[-1]
    HW = H * W
    OH, OW = 33, 34

    # ---- BatchNorm apply + ReLU (x2 / x3 never hit HBM) ----
    x1 = x1_ref[...]                                  # (HW, C)
    x2 = x1 * sc_ref[...] + sh_ref[...]               # bn1(x1)
    x3 = jnp.maximum(x2, 0.0)                         # relu

    # ---- MaxPool2d(3, s=2, p=1) fused with its nearest-neighbour upsample ----
    # Full-resolution 3x3 window max on zero padding (valid since x3 >= 0),
    # then snapping every pixel to the nearest even coordinate reproduces
    # upsample(maxpool(x3)) without any strided subsample or patch tensor.
    x3p = _pad_hw(x3.reshape(H, W, C), 1, 1, 1, 1)    # (H+2, W+2, C)
    mfull = x3p[0:H, 0:W, :]
    for dh in range(3):
        for dw in range(3):
            if dh == 0 and dw == 0:
                continue
            mfull = jnp.maximum(mfull, x3p[dh:dh + H, dw:dw + W, :])
    mpad = _pad_hw(mfull, 1, 0, 1, 0)                 # pad one row/col top/left
    m01 = mpad[1:, 0:W, :]                            # mfull[i, j-1]
    m10 = mpad[0:H, 1:, :]                            # mfull[i-1, j]
    m11 = mpad[0:H, 0:W, :]                           # mfull[i-1, j-1]
    io = (jax.lax.broadcasted_iota(jnp.int32, (H, W, 1), 0) % 2) == 1
    jo = (jax.lax.broadcasted_iota(jnp.int32, (H, W, 1), 1) % 2) == 1
    x4up = jnp.where(io, jnp.where(jo, m11, m10),
                     jnp.where(jo, m01, mfull)).reshape(HW, C)

    # ---- FPN lateral 1x1 convs + top-down pathway: ONE K=4C bf16 matmul ----
    # last0 = inner0(x1)+inner1(x2)+inner2(x3)+up(inner3(maxpool)); biases
    # pre-summed in the wrapper.  K=256 fills the 256-deep MXU on v6e/v7x.
    xcat = jnp.concatenate([x1, x2, x3, x4up], axis=-1).astype(bf16)   # (HW,4C)
    last0 = (jnp.dot(xcat, wlat_ref[...], preferred_element_type=f32)
             + blat_ref[...])

    # ---- FPN layer block 0: 3x3 conv pad 1 as ONE K=9*Co bf16 matmul ----
    # 9 shifted taps lane-concatenated -> (HW, 576); MXU accumulates internally
    # instead of 9 separate K=64 matmuls + 9 VPU adds.
    Co = last0.shape[-1]
    l0p = _pad_hw(last0.reshape(H, W, Co), 1, 1, 1, 1)
    taps = [l0p[dh:dh + H, dw:dw + W, :].reshape(HW, Co).astype(bf16)
            for dh in range(3) for dw in range(3)]
    tcat = jnp.concatenate(taps, axis=-1)                              # (HW,9Co)
    f0 = jnp.dot(tcat, wc_ref[...], preferred_element_type=f32) + bc_ref[...]

    # ---- AdaptiveAvgPool2d((33,34)), separable (no kron P matrix) ----
    # W stage: static contiguous windows realized as a handful of column adds
    # (window widths are tiny), lane-concatenated into a lane-dense
    # (H, 34*Co) slab.  H stage: one (33, H) matmul writes the final
    # lane-dense (33, 34*Co) output block.  This removes the (1122, HW)
    # pooling operand (VMEM/DMA scaled with HW) and cuts pooling FLOPs ~10-30x.
    f3 = f0.reshape(H, W, Co)
    cols = []
    for ow in range(OW):
        ws = (ow * W) // OW
        we = -(-((ow + 1) * W) // OW)                 # ceil
        acc = f3[:, ws:ws + 1, :]
        for w in range(ws + 1, we):
            acc = acc + f3[:, w:w + 1, :]
        if we - ws > 1:
            acc = acc * (1.0 / (we - ws))
        cols.append(acc)                              # (H, 1, Co)
    thw = jnp.concatenate(cols, axis=-1).reshape(H, OW * Co)   # (H, 34*Co)
    # lane-dense output: 34*Co is a multiple of 128 -> unmasked stores
    o_ref[0] = jnp.dot(ph_ref[...], thw, preferred_element_type=f32)


def fused_fpn_tail(x1_flat, scale, shift, w_lat, b_lat, w_l0, b_l0, ph,
                   B, H1, W1):
    HW = H1 * W1
    C = x1_flat.shape[1]
    Co = w_lat.shape[1]
    OW = 34
    # Grid-invariant operands (weights/biases/ph) total ~0.1 MB double-buffered
    # now that the HW-scaling pooling matrix is gone, so pl.Buffered(1) is not
    # needed; Pallas also skips re-DMA since their block index never changes.
    # TODO(synk): per-image whole-block tiles are fine at these sizes; large
    # spatial inputs (H1 >~ 96 on v7x's 64 MiB VMEM) would need H-tiling with
    # halo rows + per-tile partial pooling, which would also feed v7x's second
    # TensorCore when B == 1.
    return pl.pallas_call(
        functools.partial(_fused_tail_kernel, H=H1, W=W1),
        out_shape=jax.ShapeDtypeStruct((B, 33, OW * Co), jnp.float32),
        grid=(B,),
        in_specs=[pl.BlockSpec((HW, C), lambda b: (b, 0)),
                  pl.BlockSpec((1, C), lambda b: (0, 0)),
                  pl.BlockSpec((1, C), lambda b: (0, 0)),
                  pl.BlockSpec((4 * C, Co), lambda b: (0, 0)),
                  pl.BlockSpec((1, Co), lambda b: (0, 0)),
                  pl.BlockSpec((9 * Co, Co), lambda b: (0, 0)),
                  pl.BlockSpec((1, Co), lambda b: (0, 0)),
                  pl.BlockSpec((33, H1), lambda b: (0, 0))],
        out_specs=pl.BlockSpec((1, 33, OW * Co), lambda b: (b, 0, 0)),
        compiler_params=pltpu.CompilerParams(dimension_semantics=("parallel",)),
    )(x1_flat, scale, shift, w_lat, b_lat, w_l0, b_l0, ph)


# ------------------------------ forward pass --------------------------------

def satellite_feature_extractor(x_nchw, params):
    B, Cin, H, W = x_nchw.shape
    x = jnp.transpose(x_nchw, (0, 2, 3, 1)).astype(jnp.float32)   # NHWC

    # backbone[0]: Conv2d(in, 64, k=7, s=2, p=3, bias=False)
    a1, (H1, W1) = im2col(x, 7, 2, 3)
    assert H1 % 2 == 0 and W1 % 2 == 0, (H1, W1)
    # TODO(synk): odd post-stem sizes would break the maxpool parity-snap.
    M1 = B * H1 * W1
    x1_flat, stats = conv1_with_bn_stats(
        a1.astype(jnp.bfloat16), params['conv1_w'].astype(jnp.bfloat16))

    # backbone[1:3]: BatchNorm2d(64) + ReLU -> folded into per-channel
    # scale/shift and applied inside the fused tail kernel.
    # TODO(synk): training-mode (biased) batch statistics; eval() running stats
    # would give different results.
    ssum = jnp.sum(stats[:, 0, :], axis=0)
    ssq = jnp.sum(stats[:, 1, :], axis=0)
    mean = ssum / M1
    var = jnp.maximum(ssq / M1 - mean * mean, 0.0)
    inv = jax.lax.rsqrt(var + 1e-5)
    scale = (params['bn1_g'] * inv).reshape(1, -1)
    shift = (params['bn1_b'] - params['bn1_g'] * inv * mean).reshape(1, -1)

    # Fused FPN weights: 4 lateral 1x1 convs stacked along K (K=256), biases
    # pre-summed; 3x3 output conv as a (9*Co, Co) tap-stacked matrix (K=576).
    Co = params['fpn_inner_w'].shape[2]
    w_lat = params['fpn_inner_w'].reshape(4 * 64, Co).astype(jnp.bfloat16)
    b_lat = jnp.sum(params['fpn_inner_b'], axis=0).reshape(1, Co)
    w_l0 = params['fpn_layer0_w'].reshape(9 * Co, Co).astype(jnp.bfloat16)
    b_l0 = params['fpn_layer0_b'].reshape(1, Co)

    # H-stage pooling matrix of the separable AdaptiveAvgPool2d((33, 34)).
    ph = jnp.asarray(adaptive_avg_matrix(H1, 33))                  # (33, H1)

    # x5 = backbone[4](x4) (resnet layer1) and FPN layer blocks 1..3 only feed
    # outputs that are never used -> dead compute, skipped.
    # TODO(synk): original FPN expects in_channels [64,128,256,512] but the
    # features passed all have 64 channels (would raise in PyTorch); lateral
    # 1x1 convs here take 64 input channels to keep the graph well-formed.
    out = fused_fpn_tail(x1_flat, scale, shift, w_lat, b_lat, w_l0, b_l0,
                         ph, B, H1, W1)
    # (B, 33, 34*Co) lane-dense slab -> (B, 33*34, Co): row-major view, free.
    return out.reshape(B, 33 * 34, Co)


# ------------------------------ parameters -----------------------------------

def init_params(key, in_channels=4, out_channels=64):
    ks = jax.random.split(key, 8)
    co = out_channels
    return {
        # conv1 weight as [kh*kw*cin, 64] (matches im2col patch ordering)
        # TODO(synk): real PyTorch weights (out,in,kh,kw) need the matching permute.
        'conv1_w': 0.05 * jax.random.normal(ks[0], (7 * 7 * in_channels, 64),
                                            jnp.float32),
        'bn1_g': 1.0 + 0.1 * jax.random.normal(ks[1], (64,), jnp.float32),
        'bn1_b': 0.1 * jax.random.normal(ks[2], (64,), jnp.float32),
        # FPN lateral 1x1 convs, stacked: [4, 64, co] / [4, co]
        'fpn_inner_w': 0.05 * jax.random.normal(ks[3], (4, 64, co), jnp.float32),
        'fpn_inner_b': 0.05 * jax.random.normal(ks[4], (4, co), jnp.float32),
        # FPN layer block 0: 3x3 conv as 9 tap matrices [9, co, co] (kh*3+kw)
        'fpn_layer0_w': 0.05 * jax.random.normal(ks[5], (9, co, co), jnp.float32),
        'fpn_layer0_b': 0.05 * jax.random.normal(ks[6], (co,), jnp.float32),
    }


if __name__ == "__main__":
    key = jax.random.PRNGKey(0)
    k_param, k_x = jax.random.split(key)
    params = init_params(k_param, in_channels=4, out_channels=64)
    x = jax.random.normal(k_x, (2, 4, 16, 16), jnp.float32)   # NCHW, like PyTorch

    fwd = jax.jit(satellite_feature_extractor)
    out = jax.block_until_ready(fwd(x, params))

    assert out.shape == (2, 33 * 34, 64), out.shape
    assert bool(jnp.all(jnp.isfinite(out)))
    print("KERNEL_OK")
</pallas_src>

<mosaic_0001>
module attributes {stable_mosaic.version = 11 : i64} {
  func.func @_conv1_bn_stats_kernel(%arg0: i32, %arg1: memref<128x196xbf16, #tpu.memory_space<vmem>>, %arg2: memref<196x64xbf16, #tpu.memory_space<vmem>>, %arg3: memref<128x64xf32, #tpu.memory_space<vmem>>, %arg4: memref<1x2x64xf32, #tpu.memory_space<vmem>>) attributes {dimension_semantics = [#tpu.dimension_semantics<parallel>], iteration_bounds = array<i64: 1>, scalar_prefetch = 0 : i64, scratch_operands = 0 : i64, tpu.core_type = #tpu.core_type<tc>, window_params = [{transform_indices = @transform_0, window_bounds = array<i64: 128, 196>}, {pipeline_mode = #tpu.pipeline_mode<synchronous>, transform_indices = @transform_1, window_bounds = array<i64: 196, 64>}, {transform_indices = @transform_2, window_bounds = array<i64: 128, 64>}, {transform_indices = @transform_3, window_bounds = array<i64: 1, 2, 64>}]} {
    %c0 = arith.constant 0 : index
    %c0_0 = arith.constant 0 : index
    %0 = vector.load %arg1[%c0, %c0_0] : memref<128x196xbf16, #tpu.memory_space<vmem>>, vector<128x196xbf16>
    %c0_1 = arith.constant 0 : index
    %c0_2 = arith.constant 0 : index
    %1 = vector.load %arg2[%c0_1, %c0_2] : memref<196x64xbf16, #tpu.memory_space<vmem>>, vector<196x64xbf16>
    %cst = arith.constant dense<0.000000e+00> : vector<128x64xf32>
    %2 = tpu.matmul %0, %1, %cst {dimension_numbers = #tpu.dot_dimension_numbers<[1], [0], [0], [1], [0, 0, 1, 1], [], []>} : vector<128x196xbf16>, vector<196x64xbf16>, vector<128x64xf32> -> vector<128x64xf32>
    %c0_3 = arith.constant 0 : index
    %c0_4 = arith.constant 0 : index
    %3 = vector.load %arg3[%c0_3, %c0_4] : memref<128x64xf32, #tpu.memory_space<vmem>>, vector<128x64xf32>
    tpu.vector_store %arg3[%c0_3, %c0_4], %2 {strides = array<i32>} : memref<128x64xf32, #tpu.memory_space<vmem>>, vector<128x64xf32>,
    %cst_5 = arith.constant dense<0.000000e+00> : vector<64xf32>
    %4 = vector.multi_reduction <add>, %2, %cst_5 [0] : vector<128x64xf32> to vector<64xf32>
    %5 = vector.shape_cast %4 : vector<64xf32> to vector<1x64xf32>
    %c0_6 = arith.constant 0 : index
    %c0_7 = arith.constant 0 : index
    %c0_8 = arith.constant 0 : index
    %6 = vector.load %arg4[%c0_6, %c0_7, %c0_8] : memref<1x2x64xf32, #tpu.memory_space<vmem>>, vector<1x1x64xf32>
    %7 = vector.shape_cast %6 : vector<1x1x64xf32> to vector<1x64xf32>
    %8 = vector.shape_cast %5 : vector<1x64xf32> to vector<1x1x64xf32>
    tpu.vector_store %arg4[%c0_6, %c0_7, %c0_8], %8 {strides = array<i32>} : memref<1x2x64xf32, #tpu.memory_space<vmem>>, vector<1x1x64xf32>,
    %9 = arith.mulf %2, %2 : vector<128x64xf32>
    %cst_9 = arith.constant dense<0.000000e+00> : vector<64xf32>
    %10 = vector.multi_reduction <add>, %9, %cst_9 [0] : vector<128x64xf32> to vector<64xf32>
    %11 = vector.shape_cast %10 : vector<64xf32> to vector<1x64xf32>
    %c0_10 = arith.constant 0 : index
    %c1 = arith.constant 1 : index
    %c0_11 = arith.constant 0 : index
    %12 = vector.load %arg4[%c0_10, %c1, %c0_11] : memref<1x2x64xf32, #tpu.memory_space<vmem>>, vector<1x1x64xf32>
    %13 = vector.shape_cast %12 : vector<1x1x64xf32> to vector<1x64xf32>
    %14 = vector.shape_cast %11 : vector<1x64xf32> to vector<1x1x64xf32>
    tpu.vector_store %arg4[%c0_10, %c1, %c0_11], %14 {strides = array<i32>} : memref<1x2x64xf32, #tpu.memory_space<vmem>>, vector<1x1x64xf32>,
    return
  }
  func.func @transform_0(%arg0: i32) -> (i32, i32) {
    %c0_i32 = arith.constant 0 : i32
    %c0_i32_0 = arith.constant 0 : i32
    return %arg0, %c0_i32 : i32, i32
  }
  func.func @transform_1(%arg0: i32) -> (i32, i32) {
    %c0_i32 = arith.constant 0 : i32
    %c0_i32_0 = arith.constant 0 : i32
    %c0_i32_1 = arith.constant 0 : i32
    return %c0_i32, %c0_i32_0 : i32, i32
  }
  func.func @transform_2(%arg0: i32) -> (i32, i32) {
    %c0_i32 = arith.constant 0 : i32
    %c0_i32_0 = arith.constant 0 : i32
    return %arg0, %c0_i32 : i32, i32
  }
  func.func @transform_3(%arg0: i32) -> (i32, i32, i32) {
    %c0_i32 = arith.constant 0 : i32
    %c0_i32_0 = arith.constant 0 : i32
    %c0_i32_1 = arith.constant 0 : i32
    return %arg0, %c0_i32, %c0_i32_0 : i32, i32, i32
  }
}

module attributes {stable_mosaic.version = 11 : i64} {
  func.func @_fused_tail_kernel(%arg0: i32, %arg1: memref<64x64xf32, #tpu.memory_space<vmem>>, %arg2: memref<1x64xf32, #tpu.memory_space<vmem>>, %arg3: memref<1x64xf32, #tpu.memory_space<vmem>>, %arg4: memref<256x64xbf16, #tpu.memory_space<vmem>>, %arg5: memref<1x64xf32, #tpu.memory_space<vmem>>, %arg6: memref<576x64xbf16, #tpu.memory_space<vmem>>, %arg7: memref<1x64xf32, #tpu.memory_space<vmem>>, %arg8: memref<33x8xf32, #tpu.memory_space<vmem>>, %arg9: memref<1x33x2176xf32, #tpu.memory_space<vmem>>) attributes {dimension_semantics = [#tpu.dimension_semantics<parallel>], iteration_bounds = array<i64: 2>, scalar_prefetch = 0 : i64, scratch_operands = 0 : i64, tpu.core_type = #tpu.core_type<tc>, window_params = [{transform_indices = @transform_0, window_bounds = array<i64: 64, 64>}, {pipeline_mode = #tpu.pipeline_mode<synchronous>, transform_indices = @transform_1, window_bounds = array<i64: 1, 64>}, {pipeline_mode = #tpu.pipeline_mode<synchronous>, transform_indices = @transform_2, window_bounds = array<i64: 1, 64>}, {pipeline_mode = #tpu.pipeline_mode<synchronous>, transform_indices = @transform_3, window_bounds = array<i64: 256, 64>}, {pipeline_mode = #tpu.pipeline_mode<synchronous>, transform_indices = @transform_4, window_bounds = array<i64: 1, 64>}, {pipeline_mode = #tpu.pipeline_mode<synchronous>, transform_indices = @transform_5, window_bounds = array<i64: 576, 64>}, {pipeline_mode = #tpu.pipeline_mode<synchronous>, transform_indices = @transform_6, window_bounds = array<i64: 1, 64>}, {pipeline_mode = #tpu.pipeline_mode<synchronous>, transform_indices = @transform_7, window_bounds = array<i64: 33, 8>}, {transform_indices = @transform_8, window_bounds = array<i64: 1, 33, 2176>}]} {
    %c0 = arith.constant 0 : index
    %c0_0 = arith.constant 0 : index
    %0 = vector.load %arg1[%c0, %c0_0] : memref<64x64xf32, #tpu.memory_space<vmem>>, vector<64x64xf32>
    %c0_1 = arith.constant 0 : index
    %c0_2 = arith.constant 0 : index
    %1 = vector.load %arg2[%c0_1, %c0_2] : memref<1x64xf32, #tpu.memory_space<vmem>>, vector<1x64xf32>
    %2 = vector.broadcast %1 : vector<1x64xf32> to vector<64x64xf32>
    %3 = arith.mulf %0, %2 : vector<64x64xf32>
    %c0_3 = arith.constant 0 : index
    %c0_4 = arith.constant 0 : index
    %4 = vector.load %arg3[%c0_3, %c0_4] : memref<1x64xf32, #tpu.memory_space<vmem>>, vector<1x64xf32>
    %5 = vector.broadcast %4 : vector<1x64xf32> to vector<64x64xf32>
    %6 = arith.addf %3, %5 : vector<64x64xf32>
    %cst = arith.constant 0.000000e+00 : f32
    %7 = vector.broadcast %cst : f32 to vector<64x64xf32>
    %8 = arith.maximumf %6, %7 : vector<64x64xf32>
    %9 = vector.shape_cast %8 : vector<64x64xf32> to vector<8x8x64xf32>
    %cst_5 = arith.constant 0.000000e+00 : f32
    %10 = vector.broadcast %cst_5 : f32 to vector<1x8x64xf32>
    %cst_6 = arith.constant 0.000000e+00 : f32
    %11 = vector.broadcast %cst_6 : f32 to vector<1x8x64xf32>
    %12 = tpu.concatenate %10, %9, %11 in 0 : vector<1x8x64xf32>, vector<8x8x64xf32>, vector<1x8x64xf32> -> vector<10x8x64xf32>
    %cst_7 = arith.constant 0.000000e+00 : f32
    %13 = vector.broadcast %cst_7 : f32 to vector<10x1x64xf32>
    %cst_8 = arith.constant 0.000000e+00 : f32
    %14 = vector.broadcast %cst_8 : f32 to vector<10x1x64xf32>
    %15 = tpu.concatenate %13, %12, %14 in 1 : vector<10x1x64xf32>, vector<10x8x64xf32>, vector<10x1x64xf32> -> vector<10x10x64xf32>
    %16 = vector.extract_strided_slice %15 {offsets = [0, 0, 0], sizes = [8, 8, 64], strides = [1, 1, 1]} : vector<10x10x64xf32> to vector<8x8x64xf32>
    %17 = vector.extract_strided_slice %15 {offsets = [0, 1, 0], sizes = [8, 8, 64], strides = [1, 1, 1]} : vector<10x10x64xf32> to vector<8x8x64xf32>
    %18 = arith.maximumf %16, %17 : vector<8x8x64xf32>
    %19 = vector.extract_strided_slice %15 {offsets = [0, 2, 0], sizes = [8, 8, 64], strides = [1, 1, 1]} : vector<10x10x64xf32> to vector<8x8x64xf32>
    %20 = arith.maximumf %18, %19 : vector<8x8x64xf32>
    %21 = vector.extract_strided_slice %15 {offsets = [1, 0, 0], sizes = [8, 8, 64], strides = [1, 1, 1]} : vector<10x10x64xf32> to vector<8x8x64xf32>
    %22 = arith.maximumf %20, %21 : vector<8x8x64xf32>
    %23 = vector.extract_strided_slice %15 {offsets = [1, 1, 0], sizes = [8, 8, 64], strides = [1, 1, 1]} : vector<10x10x64xf32> to vector<8x8x64xf32>
    %24 = arith.maximumf %22, %23 : vector<8x8x64xf32>
    %25 = vector.extract_strided_slice %15 {offsets = [1, 2, 0], sizes = [8, 8, 64], strides = [1, 1, 1]} : vector<10x10x64xf32> to vector<8x8x64xf32>
    %26 = arith.maximumf %24, %25 : vector<8x8x64xf32>
    %27 = vector.extract_strided_slice %15 {offsets = [2, 0, 0], sizes = [8, 8, 64], strides = [1, 1, 1]} : vector<10x10x64xf32> to vector<8x8x64xf32>
    %28 = arith.maximumf %26, %27 : vector<8x8x64xf32>
    %29 = vector.extract_strided_slice %15 {offsets = [2, 1, 0], sizes = [8, 8, 64], strides = [1, 1, 1]} : vector<10x10x64xf32> to vector<8x8x64xf32>
    %30 = arith.maximumf %28, %29 : vector<8x8x64xf32>
    %31 = vector.extract_strided_slice %15 {offsets = [2, 2, 0], sizes = [8, 8, 64], strides = [1, 1, 1]} : vector<10x10x64xf32> to vector<8x8x64xf32>
    %32 = arith.maximumf %30, %31 : vector<8x8x64xf32>
    %cst_9 = arith.constant 0.000000e+00 : f32
    %33 = vector.broadcast %cst_9 : f32 to vector<1x8x64xf32>
    %34 = tpu.concatenate %33, %32 in 0 : vector<1x8x64xf32>, vector<8x8x64xf32> -> vector<9x8x64xf32>
    %cst_10 = arith.constant 0.000000e+00 : f32
    %35 = vector.broadcast %cst_10 : f32 to vector<9x1x64xf32>
    %36 = tpu.concatenate %35, %34 in 1 : vector<9x1x64xf32>, vector<9x8x64xf32> -> vector<9x9x64xf32>
    %37 = vector.extract_strided_slice %36 {offsets = [1, 0, 0], sizes = [8, 8, 64], strides = [1, 1, 1]} : vector<9x9x64xf32> to vector<8x8x64xf32>
    %38 = vector.extract_strided_slice %36 {offsets = [0, 1, 0], sizes = [8, 8, 64], strides = [1, 1, 1]} : vector<9x9x64xf32> to vector<8x8x64xf32>
    %39 = vector.extract_strided_slice %36 {offsets = [0, 0, 0], sizes = [8, 8, 64], strides = [1, 1, 1]} : vector<9x9x64xf32> to vector<8x8x64xf32>
    %40 = tpu.iota {dimensions = array<i32: 0>} : vector<8x8x1xi32>
    %c2_i32 = arith.constant 2 : i32
    %c0_i32 = arith.constant 0 : i32
    %41 = arith.cmpi eq, %c2_i32, %c0_i32 : i32
    %c1_i32 = arith.constant 1 : i32
    %42 = arith.select %41, %c1_i32, %c2_i32 : i32
    %43 = vector.broadcast %42 : i32 to vector<8x8x1xi32>
    %44 = arith.remsi %40, %43 : vector<8x8x1xi32>
    %c0_i32_11 = arith.constant 0 : i32
    %45 = vector.broadcast %c0_i32_11 : i32 to vector<8x8x1xi32>
    %46 = arith.cmpi ne, %44, %45 : vector<8x8x1xi32>
    %c0_i32_12 = arith.constant 0 : i32
    %47 = vector.broadcast %c0_i32_12 : i32 to vector<8x8x1xi32>
    %48 = arith.cmpi slt, %44, %47 : vector<8x8x1xi32>
    %c0_i32_13 = arith.constant 0 : i32
    %49 = arith.cmpi slt, %42, %c0_i32_13 : i32
    %50 = vector.broadcast %49 : i1 to vector<8x8x1xi1>
    %51 = vector.broadcast %50 : vector<8x8x1xi1> to vector<8x8x1xi1>
    %52 = arith.xori %48, %51 : vector<8x8x1xi1>
    %53 = arith.andi %52, %46 : vector<8x8x1xi1>
    %54 = vector.broadcast %42 : i32 to vector<8x8x1xi32>
    %55 = arith.addi %44, %54 : vector<8x8x1xi32>
    %56 = arith.select %53, %55, %44 : vector<8x8x1xi1>, vector<8x8x1xi32>
    %c1_i32_14 = arith.constant 1 : i32
    %57 = vector.broadcast %c1_i32_14 : i32 to vector<8x8x1xi32>
    %58 = arith.cmpi eq, %56, %57 : vector<8x8x1xi32>
    %59 = tpu.iota {dimensions = array<i32: 1>} : vector<8x8x1xi32>
    %c2_i32_15 = arith.constant 2 : i32
    %c0_i32_16 = arith.constant 0 : i32
    %60 = arith.cmpi eq, %c2_i32_15, %c0_i32_16 : i32
    %c1_i32_17 = arith.constant 1 : i32
    %61 = arith.select %60, %c1_i32_17, %c2_i32_15 : i32
    %62 = vector.broadcast %61 : i32 to vector<8x8x1xi32>
    %63 = arith.remsi %59, %62 : vector<8x8x1xi32>
    %c0_i32_18 = arith.constant 0 : i32
    %64 = vector.broadcast %c0_i32_18 : i32 to vector<8x8x1xi32>
    %65 = arith.cmpi ne, %63, %64 : vector<8x8x1xi32>
    %c0_i32_19 = arith.constant 0 : i32
    %66 = vector.broadcast %c0_i32_19 : i32 to vector<8x8x1xi32>
    %67 = arith.cmpi slt, %63, %66 : vector<8x8x1xi32>
    %c0_i32_20 = arith.constant 0 : i32
    %68 = arith.cmpi slt, %61, %c0_i32_20 : i32
    %69 = vector.broadcast %68 : i1 to vector<8x8x1xi1>
    %70 = vector.broadcast %69 : vector<8x8x1xi1> to vector<8x8x1xi1>
    %71 = arith.xori %67, %70 : vector<8x8x1xi1>
    %72 = arith.andi %71, %65 : vector<8x8x1xi1>
    %73 = vector.broadcast %61 : i32 to vector<8x8x1xi32>
    %74 = arith.addi %63, %73 : vector<8x8x1xi32>
    %75 = arith.select %72, %74, %63 : vector<8x8x1xi1>, vector<8x8x1xi32>
    %c1_i32_21 = arith.constant 1 : i32
    %76 = vector.broadcast %c1_i32_21 : i32 to vector<8x8x1xi32>
    %77 = arith.cmpi eq, %75, %76 : vector<8x8x1xi32>
    %78 = vector.shape_cast %77 : vector<8x8x1xi1> to vector<8x8x1xi1>
    %79 = vector.broadcast %78 : vector<8x8x1xi1> to vector<8x8x64xi1>
    %80 = arith.select %79, %39, %38 : vector<8x8x64xi1>, vector<8x8x64xf32>
    %81 = vector.shape_cast %77 : vector<8x8x1xi1> to vector<8x8x1xi1>
    %82 = vector.broadcast %81 : vector<8x8x1xi1> to vector<8x8x64xi1>
    %83 = arith.select %82, %37, %32 : vector<8x8x64xi1>, vector<8x8x64xf32>
    %84 = vector.shape_cast %58 : vector<8x8x1xi1> to vector<8x8x1xi1>
    %85 = vector.broadcast %84 : vector<8x8x1xi1> to vector<8x8x64xi1>
    %86 = arith.select %85, %80, %83 : vector<8x8x64xi1>, vector<8x8x64xf32>
    %87 = vector.shape_cast %86 : vector<8x8x64xf32> to vector<64x64xf32>
    %88 = tpu.concatenate %0, %6, %8, %87 in 1 : vector<64x64xf32>, vector<64x64xf32>, vector<64x64xf32>, vector<64x64xf32> -> vector<64x256xf32>
    %89 = arith.truncf %88 : vector<64x256xf32> to vector<64x256xbf16>
    %c0_22 = arith.constant 0 : index
    %c0_23 = arith.constant 0 : index
    %90 = vector.load %arg4[%c0_22, %c0_23] : memref<256x64xbf16, #tpu.memory_space<vmem>>, vector<256x64xbf16>
    %cst_24 = arith.constant dense<0.000000e+00> : vector<64x64xf32>
    %91 = tpu.matmul %89, %90, %cst_24 {dimension_numbers = #tpu.dot_dimension_numbers<[1], [0], [0], [1], [0, 0, 1, 1], [], []>} : vector<64x256xbf16>, vector<256x64xbf16>, vector<64x64xf32> -> vector<64x64xf32>
    %c0_25 = arith.constant 0 : index
    %c0_26 = arith.constant 0 : index
    %92 = vector.load %arg5[%c0_25, %c0_26] : memref<1x64xf32, #tpu.memory_space<vmem>>, vector<1x64xf32>
    %93 = vector.broadcast %92 : vector<1x64xf32> to vector<64x64xf32>
    %94 = arith.addf %91, %93 : vector<64x64xf32>
    %95 = vector.shape_cast %94 : vector<64x64xf32> to vector<8x8x64xf32>
    %cst_27 = arith.constant 0.000000e+00 : f32
    %96 = vector.broadcast %cst_27 : f32 to vector<1x8x64xf32>
    %cst_28 = arith.constant 0.000000e+00 : f32
    %97 = vector.broadcast %cst_28 : f32 to vector<1x8x64xf32>
    %98 = tpu.concatenate %96, %95, %97 in 0 : vector<1x8x64xf32>, vector<8x8x64xf32>, vector<1x8x64xf32> -> vector<10x8x64xf32>
    %cst_29 = arith.constant 0.000000e+00 : f32
    %99 = vector.broadcast %cst_29 : f32 to vector<10x1x64xf32>
    %cst_30 = arith.constant 0.000000e+00 : f32
    %100 = vector.broadcast %cst_30 : f32 to vector<10x1x64xf32>
    %101 = tpu.concatenate %99, %98, %100 in 1 : vector<10x1x64xf32>, vector<10x8x64xf32>, vector<10x1x64xf32> -> vector<10x10x64xf32>
    %102 = vector.extract_strided_slice %101 {offsets = [0, 0, 0], sizes = [8, 8, 64], strides = [1, 1, 1]} : vector<10x10x64xf32> to vector<8x8x64xf32>
    %103 = vector.shape_cast %102 : vector<8x8x64xf32> to vector<64x64xf32>
    %104 = arith.truncf %103 : vector<64x64xf32> to vector<64x64xbf16>
    %105 = vector.extract_strided_slice %101 {offsets = [0, 1, 0], sizes = [8, 8, 64], strides = [1, 1, 1]} : vector<10x10x64xf32> to vector<8x8x64xf32>
    %106 = vector.shape_cast %105 : vector<8x8x64xf32> to vector<64x64xf32>
    %107 = arith.truncf %106 : vector<64x64xf32> to vector<64x64xbf16>
    %108 = vector.extract_strided_slice %101 {offsets = [0, 2, 0], sizes = [8, 8, 64], strides = [1, 1, 1]} : vector<10x10x64xf32> to vector<8x8x64xf32>
    %109 = vector.shape_cast %108 : vector<8x8x64xf32> to vector<64x64xf32>
    %110 = arith.truncf %109 : vector<64x64xf32> to vector<64x64xbf16>
    %111 = vector.extract_strided_slice %101 {offsets = [1, 0, 0], sizes = [8, 8, 64], strides = [1, 1, 1]} : vector<10x10x64xf32> to vector<8x8x64xf32>
    %112 = vector.shape_cast %111 : vector<8x8x64xf32> to vector<64x64xf32>
    %113 = arith.truncf %112 : vector<64x64xf32> to vector<64x64xbf16>
    %114 = vector.extract_strided_slice %101 {offsets = [1, 1, 0], sizes = [8, 8, 64], strides = [1, 1, 1]} : vector<10x10x64xf32> to vector<8x8x64xf32>
    %115 = vector.shape_cast %114 : vector<8x8x64xf32> to vector<64x64xf32>
    %116 = arith.truncf %115 : vector<64x64xf32> to vector<64x64xbf16>
    %117 = vector.extract_strided_slice %101 {offsets = [1, 2, 0], sizes = [8, 8, 64], strides = [1, 1, 1]} : vector<10x10x64xf32> to vector<8x8x64xf32>
    %118 = vector.shape_cast %117 : vector<8x8x64xf32> to vector<64x64xf32>
    %119 = arith.truncf %118 : vector<64x64xf32> to vector<64x64xbf16>
    %120 = vector.extract_strided_slice %101 {offsets = [2, 0, 0], sizes = [8, 8, 64], strides = [1, 1, 1]} : vector<10x10x64xf32> to vector<8x8x64xf32>
    %121 = vector.shape_cast %120 : vector<8x8x64xf32> to vector<64x64xf32>
    %122 = arith.truncf %121 : vector<64x64xf32> to vector<64x64xbf16>
    %123 = vector.extract_strided_slice %101 {offsets = [2, 1, 0], sizes = [8, 8, 64], strides = [1, 1, 1]} : vector<10x10x64xf32> to vector<8x8x64xf32>
    %124 = vector.shape_cast %123 : vector<8x8x64xf32> to vector<64x64xf32>
    %125 = arith.truncf %124 : vector<64x64xf32> to vector<64x64xbf16>
    %126 = vector.extract_strided_slice %101 {offsets = [2, 2, 0], sizes = [8, 8, 64], strides = [1, 1, 1]} : vector<10x10x64xf32> to vector<8x8x64xf32>
    %127 = vector.shape_cast %126 : vector<8x8x64xf32> to vector<64x64xf32>
    %128 = arith.truncf %127 : vector<64x64xf32> to vector<64x64xbf16>
    %129 = tpu.concatenate %104, %107, %110, %113, %116, %119, %122, %125, %128 in 1 : vector<64x64xbf16>, vector<64x64xbf16>, vector<64x64xbf16>, vector<64x64xbf16>, vector<64x64xbf16>, vector<64x64xbf16>, vector<64x64xbf16>, vector<64x64xbf16>, vector<64x64xbf16> -> vector<64x576xbf16>
    %c0_31 = arith.constant 0 : index
    %c0_32 = arith.constant 0 : index
    %130 = vector.load %arg6[%c0_31, %c0_32] : memref<576x64xbf16, #tpu.memory_space<vmem>>, vector<576x64xbf16>
    %cst_33 = arith.constant dense<0.000000e+00> : vector<64x64xf32>
    %131 = tpu.matmul %129, %130, %cst_33 {dimension_numbers = #tpu.dot_dimension_numbers<[1], [0], [0], [1], [0, 0, 1, 1], [], []>} : vector<64x576xbf16>, vector<576x64xbf16>, vector<64x64xf32> -> vector<64x64xf32>
    %c0_34 = arith.constant 0 : index
    %c0_35 = arith.constant 0 : index
    %132 = vector.load %arg7[%c0_34, %c0_35] : memref<1x64xf32, #tpu.memory_space<vmem>>, vector<1x64xf32>
    %133 = vector.broadcast %132 : vector<1x64xf32> to vector<64x64xf32>
    %134 = arith.addf %131, %133 : vector<64x64xf32>
    %135 = vector.shape_cast %134 : vector<64x64xf32> to vector<8x8x64xf32>
    %136 = vector.extract_strided_slice %135 {offsets = [0, 0, 0], sizes = [8, 1, 64], strides = [1, 1, 1]} : vector<8x8x64xf32> to vector<8x1x64xf32>
    %137 = vector.extract_strided_slice %135 {offsets = [0, 0, 0], sizes = [8, 1, 64], strides = [1, 1, 1]} : vector<8x8x64xf32> to vector<8x1x64xf32>
    %138 = vector.extract_strided_slice %135 {offsets = [0, 0, 0], sizes = [8, 1, 64], strides = [1, 1, 1]} : vector<8x8x64xf32> to vector<8x1x64xf32>
    %139 = vector.extract_strided_slice %135 {offsets = [0, 0, 0], sizes = [8, 1, 64], strides = [1, 1, 1]} : vector<8x8x64xf32> to vector<8x1x64xf32>
    %140 = vector.extract_strided_slice %135 {offsets = [0, 0, 0], sizes = [8, 1, 64], strides = [1, 1, 1]} : vector<8x8x64xf32> to vector<8x1x64xf32>
    %141 = vector.extract_strided_slice %135 {offsets = [0, 1, 0], sizes = [8, 1, 64], strides = [1, 1, 1]} : vector<8x8x64xf32> to vector<8x1x64xf32>
    %142 = arith.addf %140, %141 : vector<8x1x64xf32>
    %cst_36 = arith.constant 5.000000e-01 : f32
    %143 = vector.broadcast %cst_36 : f32 to vector<8x1x64xf32>
    %144 = arith.mulf %142, %143 : vector<8x1x64xf32>
    %145 = vector.extract_strided_slice %135 {offsets = [0, 1, 0], sizes = [8, 1, 64], strides = [1, 1, 1]} : vector<8x8x64xf32> to vector<8x1x64xf32>
    %146 = vector.extract_strided_slice %135 {offsets = [0, 1, 0], sizes = [8, 1, 64], strides = [1, 1, 1]} : vector<8x8x64xf32> to vector<8x1x64xf32>
    %147 = vector.extract_strided_slice %135 {offsets = [0, 1, 0], sizes = [8, 1, 64], strides = [1, 1, 1]} : vector<8x8x64xf32> to vector<8x1x64xf32>
    %148 = vector.extract_strided_slice %135 {offsets = [0, 1, 0], sizes = [8, 1, 64], strides = [1, 1, 1]} : vector<8x8x64xf32> to vector<8x1x64xf32>
    %149 = vector.extract_strided_slice %135 {offsets = [0, 2, 0], sizes = [8, 1, 64], strides = [1, 1, 1]} : vector<8x8x64xf32> to vector<8x1x64xf32>
    %150 = arith.addf %148, %149 : vector<8x1x64xf32>
    %cst_37 = arith.constant 5.000000e-01 : f32
    %151 = vector.broadcast %cst_37 : f32 to vector<8x1x64xf32>
    %152 = arith.mulf %150, %151 : vector<8x1x64xf32>
    %153 = vector.extract_strided_slice %135 {offsets = [0, 2, 0], sizes = [8, 1, 64], strides = [1, 1, 1]} : vector<8x8x64xf32> to vector<8x1x64xf32>
    %154 = vector.extract_strided_slice %135 {offsets = [0, 2, 0], sizes = [8, 1, 64], strides = [1, 1, 1]} : vector<8x8x64xf32> to vector<8x1x64xf32>
    %155 = vector.extract_strided_slice %135 {offsets = [0, 2, 0], sizes = [8, 1, 64], strides = [1, 1, 1]} : vector<8x8x64xf32> to vector<8x1x64xf32>
    %156 = vector.extract_strided_slice %135 {offsets = [0, 2, 0], sizes = [8, 1, 64], strides = [1, 1, 1]} : vector<8x8x64xf32> to vector<8x1x64xf32>
    %157 = vector.extract_strided_slice %135 {offsets = [0, 3, 0], sizes = [8, 1, 64], strides = [1, 1, 1]} : vector<8x8x64xf32> to vector<8x1x64xf32>
    %158 = arith.addf %156, %157 : vector<8x1x64xf32>
    %cst_38 = arith.constant 5.000000e-01 : f32
    %159 = vector.broadcast %cst_38 : f32 to vector<8x1x64xf32>
    %160 = arith.mulf %158, %159 : vector<8x1x64xf32>
    %161 = vector.extract_strided_slice %135 {offsets = [0, 3, 0], sizes = [8, 1, 64], strides = [1, 1, 1]} : vector<8x8x64xf32> to vector<8x1x64xf32>
    %162 = vector.extract_strided_slice %135 {offsets = [0, 3, 0], sizes = [8, 1, 64], strides = [1, 1, 1]} : vector<8x8x64xf32> to vector<8x1x64xf32>
    %163 = vector.extract_strided_slice %135 {offsets = [0, 3, 0], sizes = [8, 1, 64], strides = [1, 1, 1]} : vector<8x8x64xf32> to vector<8x1x64xf32>
    %164 = vector.extract_strided_slice %135 {offsets = [0, 3, 0], sizes = [8, 1, 64], strides = [1, 1, 1]} : vector<8x8x64xf32> to vector<8x1x64xf32>
    %165 = vector.extract_strided_slice %135 {offsets = [0, 4, 0], sizes = [8, 1, 64], strides = [1, 1, 1]} : vector<8x8x64xf32> to vector<8x1x64xf32>
    %166 = vector.extract_strided_slice %135 {offsets = [0, 4, 0], sizes = [8, 1, 64], strides = [1, 1, 1]} : vector<8x8x64xf32> to vector<8x1x64xf32>
    %167 = vector.extract_strided_slice %135 {offsets = [0, 4, 0], sizes = [8, 1, 64], strides = [1, 1, 1]} : vector<8x8x64xf32> to vector<8x1x64xf32>
    %168 = vector.extract_strided_slice %135 {offsets = [0, 4, 0], sizes = [8, 1, 64], strides = [1, 1, 1]} : vector<8x8x64xf32> to vector<8x1x64xf32>
    %169 = vector.extract_strided_slice %135 {offsets = [0, 4, 0], sizes = [8, 1, 64], strides = [1, 1, 1]} : vector<8x8x64xf32> to vector<8x1x64xf32>
    %170 = vector.extract_strided_slice %135 {offsets = [0, 5, 0], sizes = [8, 1, 64], strides = [1, 1, 1]} : vector<8x8x64xf32> to vector<8x1x64xf32>
    %171 = arith.addf %169, %170 : vector<8x1x64xf32>
    %cst_39 = arith.constant 5.000000e-01 : f32
    %172 = vector.broadcast %cst_39 : f32 to vector<8x1x64xf32>
    %173 = arith.mulf %171, %172 : vector<8x1x64xf32>
    %174 = vector.extract_strided_slice %135 {offsets = [0, 5, 0], sizes = [8, 1, 64], strides = [1, 1, 1]} : vector<8x8x64xf32> to vector<8x1x64xf32>
    %175 = vector.extract_strided_slice %135 {offsets = [0, 5, 0], sizes = [8, 1, 64], strides = [1, 1, 1]} : vector<8x8x64xf32> to vector<8x1x64xf32>
    %176 = vector.extract_strided_slice %135 {offsets = [0, 5, 0], sizes = [8, 1, 64], strides = [1, 1, 1]} : vector<8x8x64xf32> to vector<8x1x64xf32>
    %177 = vector.extract_strided_slice %135 {offsets = [0, 5, 0], sizes = [8, 1, 64], strides = [1, 1, 1]} : vector<8x8x64xf32> to vector<8x1x64xf32>
    %178 = vector.extract_strided_slice %135 {offsets = [0, 6, 0], sizes = [8, 1, 64], strides = [1, 1, 1]} : vector<8x8x64xf32> to vector<8x1x64xf32>
    %179 = arith.addf %177, %178 : vector<8x1x64xf32>
    %cst_40 = arith.constant 5.000000e-01 : f32
    %180 = vector.broadcast %cst_40 : f32 to vector<8x1x64xf32>
    %181 = arith.mulf %179, %180 : vector<8x1x64xf32>
    %182 = vector.extract_strided_slice %135 {offsets = [0, 6, 0], sizes = [8, 1, 64], strides = [1, 1, 1]} : vector<8x8x64xf32> to vector<8x1x64xf32>
    %183 = vector.extract_strided_slice %135 {offsets = [0, 6, 0], sizes = [8, 1, 64], strides = [1, 1, 1]} : vector<8x8x64xf32> to vector<8x1x64xf32>
    %184 = vector.extract_strided_slice %135 {offsets = [0, 6, 0], sizes = [8, 1, 64], strides = [1, 1, 1]} : vector<8x8x64xf32> to vector<8x1x64xf32>
    %185 = vector.extract_strided_slice %135 {offsets = [0, 6, 0], sizes = [8, 1, 64], strides = [1, 1, 1]} : vector<8x8x64xf32> to vector<8x1x64xf32>
    %186 = vector.extract_strided_slice %135 {offsets = [0, 7, 0], sizes = [8, 1, 64], strides = [1, 1, 1]} : vector<8x8x64xf32> to vector<8x1x64xf32>
    %187 = arith.addf %185, %186 : vector<8x1x64xf32>
    %cst_41 = arith.constant 5.000000e-01 : f32
    %188 = vector.broadcast %cst_41 : f32 to vector<8x1x64xf32>
    %189 = arith.mulf %187, %188 : vector<8x1x64xf32>
    %190 = vector.extract_strided_slice %135 {offsets = [0, 7, 0], sizes = [8, 1, 64], strides = [1, 1, 1]} : vector<8x8x64xf32> to vector<8x1x64xf32>
    %191 = vector.extract_strided_slice %135 {offsets = [0, 7, 0], sizes = [8, 1, 64], strides = [1, 1, 1]} : vector<8x8x64xf32> to vector<8x1x64xf32>
    %192 = vector.extract_strided_slice %135 {offsets = [0, 7, 0], sizes = [8, 1, 64], strides = [1, 1, 1]} : vector<8x8x64xf32> to vector<8x1x64xf32>
    %193 = vector.extract_strided_slice %135 {offsets = [0, 7, 0], sizes = [8, 1, 64], strides = [1, 1, 1]} : vector<8x8x64xf32> to vector<8x1x64xf32>
    %194 = tpu.concatenate %136, %137, %138, %139, %144, %145, %146, %147, %152, %153, %154, %155, %160, %161, %162, %163 in 2 : vector<8x1x64xf32>, vector<8x1x64xf32>, vector<8x1x64xf32>, vector<8x1x64xf32>, vector<8x1x64xf32>, vector<8x1x64xf32>, vector<8x1x64xf32>, vector<8x1x64xf32>, vector<8x1x64xf32>, vector<8x1x64xf32>, vector<8x1x64xf32>, vector<8x1x64xf32>, vector<8x1x64xf32>, vector<8x1x64xf32>, vector<8x1x64xf32>, vector<8x1x64xf32> -> vector<8x1x1024xf32>
    %195 = tpu.concatenate %164, %165, %166, %167, %168, %173, %174, %175, %176, %181, %182, %183, %184, %189, %190, %191 in 2 : vector<8x1x64xf32>, vector<8x1x64xf32>, vector<8x1x64xf32>, vector<8x1x64xf32>, vector<8x1x64xf32>, vector<8x1x64xf32>, vector<8x1x64xf32>, vector<8x1x64xf32>, vector<8x1x64xf32>, vector<8x1x64xf32>, vector<8x1x64xf32>, vector<8x1x64xf32>, vector<8x1x64xf32>, vector<8x1x64xf32>, vector<8x1x64xf32>, vector<8x1x64xf32> -> vector<8x1x1024xf32>
    %196 = tpu.concatenate %192, %193 in 2 : vector<8x1x64xf32>, vector<8x1x64xf32> -> vector<8x1x128xf32>
    %197 = tpu.concatenate %194, %195, %196 in 2 : vector<8x1x1024xf32>, vector<8x1x1024xf32>, vector<8x1x128xf32> -> vector<8x1x2176xf32>
    %198 = vector.shape_cast %197 : vector<8x1x2176xf32> to vector<8x2176xf32>
    %c0_42 = arith.constant 0 : index
    %c0_43 = arith.constant 0 : index
    %199 = vector.load %arg8[%c0_42, %c0_43] : memref<33x8xf32, #tpu.memory_space<vmem>>, vector<33x8xf32>
    %cst_44 = arith.constant dense<0.000000e+00> : vector<33x2176xf32>
    %200 = tpu.matmul %199, %198, %cst_44 {dimension_numbers = #tpu.dot_dimension_numbers<[1], [0], [0], [1], [0, 0, 1, 1], [], []>} : vector<33x8xf32>, vector<8x2176xf32>, vector<33x2176xf32> -> vector<33x2176xf32>
    %c0_45 = arith.constant 0 : index
    %c0_46 = arith.constant 0 : index
    %c0_47 = arith.constant 0 : index
    %201 = vector.load %arg9[%c0_45, %c0_46, %c0_47] : memref<1x33x2176xf32, #tpu.memory_space<vmem>>, vector<1x33x2176xf32>
    %202 = vector.shape_cast %201 : vector<1x33x2176xf32> to vector<33x2176xf32>
    %203 = vector.shape_cast %200 : vector<33x2176xf32> to vector<1x33x2176xf32>
    tpu.vector_store %arg9[%c0_45, %c0_46, %c0_47], %203 {strides = array<i32>} : memref<1x33x2176xf32, #tpu.memory_space<vmem>>, vector<1x33x2176xf32>,
    return
  }
  func.func @transform_0(%arg0: i32) -> (i32, i32) {
    %c0_i32 = arith.constant 0 : i32
    %c0_i32_0 = arith.constant 0 : i32
    return %arg0, %c0_i32 : i32, i32
  }
  func.func @transform_1(%arg0: i32) -> (i32, i32) {
    %c0_i32 = arith.constant 0 : i32
    %c0_i32_0 = arith.constant 0 : i32
    %c0_i32_1 = arith.constant 0 : i32
    return %c0_i32, %c0_i32_0 : i32, i32
  }
  func.func @transform_2(%arg0: i32) -> (i32, i32) {
    %c0_i32 = arith.constant 0 : i32
    %c0_i32_0 = arith.constant 0 : i32
    %c0_i32_1 = arith.constant 0 : i32
    return %c0_i32, %c0_i32_0 : i32, i32
  }
  func.func @transform_3(%arg0: i32) -> (i32, i32) {
    %c0_i32 = arith.constant 0 : i32
    %c0_i32_0 = arith.constant 0 : i32
    %c0_i32_1 = arith.constant 0 : i32
    return %c0_i32, %c0_i32_0 : i32, i32
  }
  func.func @transform_4(%arg0: i32) -> (i32, i32) {
    %c0_i32 = arith.constant 0 : i32
    %c0_i32_0 = arith.constant 0 : i32
    %c0_i32_1 = arith.constant 0 : i32
    return %c0_i32, %c0_i32_0 : i32, i32
  }
  func.func @transform_5(%arg0: i32) -> (i32, i32) {
    %c0_i32 = arith.constant 0 : i32
    %c0_i32_0 = arith.constant 0 : i32
    %c0_i32_1 = arith.constant 0 : i32
    return %c0_i32, %c0_i32_0 : i32, i32
  }
  func.func @transform_6(%arg0: i32) -> (i32, i32) {
    %c0_i32 = arith.constant 0 : i32
    %c0_i32_0 = arith.constant 0 : i32
    %c0_i32_1 = arith.constant 0 : i32
    return %c0_i32, %c0_i32_0 : i32, i32
  }
  func.func @transform_7(%arg0: i32) -> (i32, i32) {
    %c0_i32 = arith.constant 0 : i32
    %c0_i32_0 = arith.constant 0 : i32
    %c0_i32_1 = arith.constant 0 : i32
    return %c0_i32, %c0_i32_0 : i32, i32
  }
  func.func @transform_8(%arg0: i32) -> (i32, i32, i32) {
    %c0_i32 = arith.constant 0 : i32
    %c0_i32_0 = arith.constant 0 : i32
    %c0_i32_1 = arith.constant 0 : i32
    return %arg0, %c0_i32, %c0_i32_0 : i32, i32, i32
  }
}

</mosaic_0001>

<llo_original>
// kernel: satellite_feature_extractor.2
$region0: #{satellite_feature_extractor.2}
  #allocation0 [shape = 'u32[]', space=smem, size = 0x4, offset = 0x4, fixed_abs, tag = 'smem constant byte address 0x4 - core index']
  #allocation1 [shape = 'u32[144,128]{1,0:T(1,128)}', space=vmem, size = 0x12000, scoped, tag = 'internal scratch']
  %s0 = inlined_call_operand.vmem [shape: bf16[128,196], index: 0, kind: input, shape index: {}]
  %s1 = inlined_call_operand.vmem [shape: bf16[196,64], index: 1, kind: input, shape index: {}]
  %s2 = inlined_call_operand.vmem [shape: f32[128,64], index: 2, kind: output, shape index: {0}]
  %s3 = inlined_call_operand.vmem [shape: f32[1,2,64], index: 3, kind: output, shape index: {1}]
  %4 = xla_tuple %s2, %s3
  %s5 = sld [smem:[#allocation0]]
  $region26: #{satellite_feature_extractor.2} parent=0
    _
  %s7 = ssub.s32 1, %s5
  %s8 = scalar_select 0, %s7, %s5
  // Predicated region
  $region2: #{satellite_feature_extractor.2} parent=0 // pred_check
    _
  $region3: #{satellite_feature_extractor.2} parent=0 // pred_check_branch
    %10 = sbr.rel (0) target = $region5
  $region4: #{satellite_feature_extractor.2} parent=0 // pred_region
    _
  $region5: #{satellite_feature_extractor.2} parent=0 // pred_fallthru
    _
  // Predicated region
  $region6: #{satellite_feature_extractor.2} parent=0 // pred_check
    _
  $region7: #{satellite_feature_extractor.2} parent=0 // pred_check_branch
    %12 = sbr.rel (0) target = $region9
  $region8: #{satellite_feature_extractor.2} parent=0 // pred_region
    _
  $region9: #{satellite_feature_extractor.2} parent=0 // pred_fallthru
    _
  %v14 = vld [vmem:[%s0] sm:$0xff]
  %v15 = vld [vmem:[%s0 + $0x8] sm:$0xff]
  %v16 = vld [vmem:[%s0 + $0x10] sm:$0xff]
  %v17 = vld [vmem:[%s0 + $0x18] sm:$0xff]
  %v18 = vld [vmem:[%s0 + $0x20] sm:$0xff]
  %v19 = vld [vmem:[%s0 + $0x28] sm:$0xff]
  %v20 = vld [vmem:[%s0 + $0x30] sm:$0xff]
  %v21 = vld [vmem:[%s0 + $0x38] sm:$0xff]
  %v22 = vld [vmem:[%s0 + $0x40] sm:$0xff]
  %v23 = vld [vmem:[%s0 + $0x48] sm:$0xff]
  %v24 = vld [vmem:[%s0 + $0x50] sm:$0xff]
  %v25 = vld [vmem:[%s0 + $0x58] sm:$0xff]
  %v26 = vld [vmem:[%s0 + $0x60] sm:$0xff]
  %v27 = vld [vmem:[%s0 + $0x68] sm:$0xff]
  %v28 = vld [vmem:[%s0 + $0x70] sm:$0xff]
  %v29 = vld [vmem:[%s0 + $0x78] sm:$0xff]
  %v30 = vld [vmem:[%s1] sm:$0xf]
  %v31 = vld [vmem:[%s1 + $0x4] sm:$0xf]
  %v32 = vld [vmem:[%s1 + $0x8] sm:$0xf]
  %v33 = vld [vmem:[%s1 + $0xc] sm:$0xf]
  %v34 = vld [vmem:[%s1 + $0x10] sm:$0xf]
  %v35 = vld [vmem:[%s1 + $0x14] sm:$0xf]
  %v36 = vld [vmem:[%s1 + $0x18] sm:$0xf]
  %v37 = vld [vmem:[%s1 + $0x1c] sm:$0xf]
  %v38 = vld [vmem:[%s1 + $0x20] sm:$0xf]
  %v39 = vld [vmem:[%s1 + $0x24] sm:$0xf]
  %v40 = vld [vmem:[%s1 + $0x28] sm:$0xf]
  %v41 = vld [vmem:[%s1 + $0x2c] sm:$0xf]
  %v42 = vld [vmem:[%s1 + $0x30] sm:$0xf]
  %v43 = vld [vmem:[%s1 + $0x34] sm:$0xf]
  %v44 = vld [vmem:[%s1 + $0x38] sm:$0xf]
  %v45 = vld [vmem:[%s1 + $0x3c] sm:$0xf]
  %v46 = vld [vmem:[%s1 + $0x40] sm:$0xf]
  %v47 = vld [vmem:[%s1 + $0x44] sm:$0xf]
  %v48 = vld [vmem:[%s1 + $0x48] sm:$0xf]
  %v49 = vld [vmem:[%s1 + $0x4c] sm:$0xf]
  %v50 = vld [vmem:[%s1 + $0x50] sm:$0xf]
  %v51 = vld [vmem:[%s1 + $0x54] sm:$0xf]
  %v52 = vld [vmem:[%s1 + $0x58] sm:$0xf]
  %v53 = vld [vmem:[%s1 + $0x5c] sm:$0xf]
  %v54 = vld [vmem:[%s1 + $0x60] sm:$0x3]
  %v71 = vunpack.c.l.b16 %v14
  %v72 = vunpack.c.h.b16 %v14
  %v73 = vunpack.c.l.b16 %v15
  %v74 = vunpack.c.h.b16 %v15
  %v75 = vunpack.c.l.b16 %v16
  %v76 = vunpack.c.h.b16 %v16
  %v77 = vunpack.c.l.b16 %v17
  %v78 = vunpack.c.h.b16 %v17
  %v79 = vunpack.c.l.b16 %v18
  %v80 = vunpack.c.h.b16 %v18
  %v81 = vunpack.c.l.b16 %v19
  %v82 = vunpack.c.h.b16 %v19
  %v83 = vunpack.c.l.b16 %v20
  %v84 = vunpack.c.h.b16 %v20
  %v85 = vunpack.c.l.b16 %v21
  %v86 = vunpack.c.h.b16 %v21
  %v87 = vunpack.c.l.b16 %v22
  %v88 = vunpack.c.h.b16 %v22
  %v89 = vunpack.c.l.b16 %v23
  %v90 = vunpack.c.h.b16 %v23
  %v91 = vunpack.c.l.b16 %v24
  %v92 = vunpack.c.h.b16 %v24
  %v93 = vunpack.c.l.b16 %v25
  %v94 = vunpack.c.h.b16 %v25
  %v95 = vunpack.c.l.b16 %v26
  %v96 = vunpack.c.h.b16 %v26
  %v97 = vunpack.c.l.b16 %v27
  %v98 = vunpack.c.h.b16 %v27
  %v99 = vunpack.c.l.b16 %v28
  %v100 = vunpack.c.h.b16 %v28
  %v101 = vunpack.c.l.b16 %v29
  %v102 = vunpack.c.h.b16 %v29
  %v103 = vpack.c.b16 %v73, %v71
  %v104 = vpack.c.b16 %v74, %v72
  %v105 = vpack.c.b16 %v77, %v75
  %v106 = vpack.c.b16 %v78, %v76
  %v107 = vpack.c.b16 %v81, %v79
  %v108 = vpack.c.b16 %v82, %v80
  %v109 = vpack.c.b16 %v85, %v83
  %v110 = vpack.c.b16 %v86, %v84
  %v111 = vpack.c.b16 %v89, %v87
  %v112 = vpack.c.b16 %v90, %v88
  %v113 = vpack.c.b16 %v93, %v91
  %v114 = vpack.c.b16 %v94, %v92
  %v115 = vpack.c.b16 %v97, %v95
  %v116 = vpack.c.b16 %v98, %v96
  %v117 = vpack.c.b16 %v101, %v99
  %v118 = vpack.c.b16 %v102, %v100
  %v152 = vunpack.c.l.b16 %v30
  %v153 = vunpack.c.l.b16 %v31
  %v154 = vunpack.c.l.b16 %v32
  %v155 = vunpack.c.l.b16 %v33
  %v156 = vunpack.c.l.b16 %v34
  %v157 = vunpack.c.l.b16 %v35
  %v158 = vunpack.c.l.b16 %v36
  %v159 = vunpack.c.l.b16 %v37
  %v160 = vunpack.c.l.b16 %v38
  %v161 = vunpack.c.l.b16 %v39
  %v162 = vunpack.c.l.b16 %v40
  %v163 = vunpack.c.l.b16 %v41
  %v164 = vunpack.c.l.b16 %v42
  %v165 = vunpack.c.l.b16 %v43
  %v166 = vunpack.c.l.b16 %v44
  %v167 = vunpack.c.l.b16 %v45
  %v168 = vunpack.c.l.b16 %v46
  %v169 = vunpack.c.l.b16 %v47
  %v170 = vunpack.c.l.b16 %v48
  %v171 = vunpack.c.l.b16 %v49
  %v172 = vunpack.c.l.b16 %v50
  %v173 = vunpack.c.l.b16 %v51
  %v174 = vunpack.c.l.b16 %v52
  %v175 = vunpack.c.l.b16 %v53
  %v176 = vunpack.c.l.b16 %v54
  %v177 = vpack.c.b16 %v153, %v152
  %v178 = vpack.c.b16 %v155, %v154
  %v179 = vpack.c.b16 %v157, %v156
  %v180 = vpack.c.b16 %v159, %v158
  %v181 = vpack.c.b16 %v161, %v160
  %v182 = vpack.c.b16 %v163, %v162
  %v183 = vpack.c.b16 %v165, %v164
  %v184 = vpack.c.b16 %v167, %v166
  %v185 = vpack.c.b16 %v169, %v168
  %v186 = vpack.c.b16 %v171, %v170
  %v187 = vpack.c.b16 %v173, %v172
  %v188 = vpack.c.b16 %v175, %v174
  %v189 = vpack.c.b16 %v176, %v176
  %vm202 = vcmask 556032
  %v204 = vsel %vm202, %v104, 0
  %v207 = vsel %vm202, %v106, 0
  %v210 = vsel %vm202, %v108, 0
  %v213 = vsel %vm202, %v110, 0
  %v216 = vsel %vm202, %v112, 0
  %v219 = vsel %vm202, %v114, 0
  %v222 = vsel %vm202, %v116, 0
  %v225 = vsel %vm202, %v118, 0
  %vm227 = vcmask 1041408
  %v229 = vsel %vm227, %v189, 0
  %231 = vmatprep.subr.bf16.mxu0 0
  %232 = vmatpush1.bf16.msra.mxu0 %v177
  %233 = vmatprep.subr.bf16.mxu0 0
  %234 = vmatpush1.bf16.msra.mxu0 %v178
  %235 = vmatprep.subr.bf16.mxu0 0
  %236 = vmatpush1.bf16.msra.mxu0 %v179
  %237 = vmatprep.subr.bf16.mxu0 0
  %238 = vmatpush1.bf16.msra.mxu0 %v180
  %239 = vmatprep.subr.bf16.mxu0 0
  %240 = vmatpush1.bf16.msra.mxu0 %v181
  %241 = vmatprep.subr.bf16.mxu0 0
  %242 = vmatpush1.bf16.msra.mxu0 %v182
  %243 = vmatprep.subr.bf16.mxu0 0
  %244 = vmatpush1.bf16.msra.mxu0 %v183
  %245 = vmatprep.subr.bf16.mxu0 0
  %246 = vmatpush1.bf16.msra.mxu0 %v184
  %247 = vmatprep.subr.bf16.mxu0 0
  %248 = vmatpush1.bf16.msra.mxu0 %v185
  %249 = vmatprep.subr.bf16.mxu0 0
  %250 = vmatpush1.bf16.msra.mxu0 %v186
  %251 = vmatprep.subr.bf16.mxu0 0
  %252 = vmatpush1.bf16.msra.mxu0 %v187
  %253 = vmatprep.subr.bf16.mxu0 0
  %254 = vmatpush1.bf16.msra.mxu0 %v188
  %255 = vmatprep.subr.bf16.mxu0 0
  %256 = vmatpush1.bf16.msra.mxu0 %v229
  %257 = vmatprep.subr.bf16.mxu0 0
  %258 = vmatpush1.bf16.msra.mxu0 0
  %259 = vmatprep.subr.bf16.mxu0 0
  %260 = vmatpush1.bf16.msra.mxu0 0
  %261 = vmatprep.subr.bf16.mxu0 0
  %262 = vmatpush1.bf16.msra.mxu0 0
  %263 = vmatprep.mubr.bf16.mxu0 %v204
  %264 = vmatmul.mubr.bf16.gmra.mrb[0].mxu0 %v103
  %v265 = vpop.f32.mrb[0].mxu0
  %v266 = vadd.f32 0.0, %v265
  %v267 = vpop.f32.mrb[0].mxu0
  %v268 = vpop.f32.mrb[0].mxu0
  %v269 = vadd.f32 0.0, %v268
  %v270 = vpop.f32.mrb[0].mxu0
  %271 = vmatprep.mubr.bf16.mxu0 %v207
  %272 = vmatmul.mubr.bf16.gmra.mrb[0].mxu0 %v105
  %v273 = vpop.f32.mrb[0].mxu0
  %v274 = vadd.f32 0.0, %v273
  %v275 = vpop.f32.mrb[0].mxu0
  %v276 = vpop.f32.mrb[0].mxu0
  %v277 = vadd.f32 0.0, %v276
  %v278 = vpop.f32.mrb[0].mxu0
  %279 = vmatprep.mubr.bf16.mxu0 %v210
  %280 = vmatmul.mubr.bf16.gmra.mrb[0].mxu0 %v107
  %v281 = vpop.f32.mrb[0].mxu0
  %v282 = vadd.f32 0.0, %v281
  %v283 = vpop.f32.mrb[0].mxu0
  %v284 = vpop.f32.mrb[0].mxu0
  %v285 = vadd.f32 0.0, %v284
  %v286 = vpop.f32.mrb[0].mxu0
  %287 = vmatprep.mubr.bf16.mxu0 %v213
  %288 = vmatmul.mubr.bf16.gmra.mrb[0].mxu0 %v109
  %v289 = vpop.f32.mrb[0].mxu0
  %v290 = vadd.f32 0.0, %v289
  %v291 = vpop.f32.mrb[0].mxu0
  %v292 = vpop.f32.mrb[0].mxu0
  %v293 = vadd.f32 0.0, %v292
  %v294 = vpop.f32.mrb[0].mxu0
  %295 = vmatprep.mubr.bf16.mxu0 %v216
  %296 = vmatmul.mubr.bf16.gmra.mrb[0].mxu0 %v111
  %v297 = vpop.f32.mrb[0].mxu0
  %v298 = vadd.f32 0.0, %v297
  %v299 = vpop.f32.mrb[0].mxu0
  %v300 = vpop.f32.mrb[0].mxu0
  %v301 = vadd.f32 0.0, %v300
  %v302 = vpop.f32.mrb[0].mxu0
  %303 = vmatprep.mubr.bf16.mxu0 %v219
  %304 = vmatmul.mubr.bf16.gmra.mrb[0].mxu0 %v113
  %v305 = vpop.f32.mrb[0].mxu0
  %v306 = vadd.f32 0.0, %v305
  %v307 = vpop.f32.mrb[0].mxu0
  %v308 = vpop.f32.mrb[0].mxu0
  %v309 = vadd.f32 0.0, %v308
  %v310 = vpop.f32.mrb[0].mxu0
  %311 = vmatprep.mubr.bf16.mxu0 %v222
  %312 = vmatmul.mubr.bf16.gmra.mrb[0].mxu0 %v115
  %v313 = vpop.f32.mrb[0].mxu0
  %v314 = vadd.f32 0.0, %v313
  %v315 = vpop.f32.mrb[0].mxu0
  %v316 = vpop.f32.mrb[0].mxu0
  %v317 = vadd.f32 0.0, %v316
  %v318 = vpop.f32.mrb[0].mxu0
  %319 = vmatprep.mubr.bf16.mxu0 %v225
  %320 = vmatmul.mubr.bf16.gmra.mrb[0].mxu0 %v117
  %v321 = vpop.f32.mrb[0].mxu0
  %v322 = vadd.f32 0.0, %v321
  %v323 = vpop.f32.mrb[0].mxu0
  %v324 = vpop.f32.mrb[0].mxu0
  %v325 = vadd.f32 0.0, %v324
  %v326 = vpop.f32.mrb[0].mxu0
  %327 = vdwg.mxu0
  %vm328 = vcmask 523264
  %329 = vst.msk [vmem:[%s2] sm:$0xff] %vm328, %v266
  %330 = vst.msk [vmem:[%s2 + $0x8] sm:$0xff] %vm328, %v269
  %331 = vst.msk [vmem:[%s2 + $0x10] sm:$0xff] %vm328, %v274
  %332 = vst.msk [vmem:[%s2 + $0x18] sm:$0xff] %vm328, %v277
  %333 = vst.msk [vmem:[%s2 + $0x20] sm:$0xff] %vm328, %v282
  %334 = vst.msk [vmem:[%s2 + $0x28] sm:$0xff] %vm328, %v285
  %335 = vst.msk [vmem:[%s2 + $0x30] sm:$0xff] %vm328, %v290
  %336 = vst.msk [vmem:[%s2 + $0x38] sm:$0xff] %vm328, %v293
  %337 = vst.msk [vmem:[%s2 + $0x40] sm:$0xff] %vm328, %v298
  %338 = vst.msk [vmem:[%s2 + $0x48] sm:$0xff] %vm328, %v301
  %339 = vst.msk [vmem:[%s2 + $0x50] sm:$0xff] %vm328, %v306
  %340 = vst.msk [vmem:[%s2 + $0x58] sm:$0xff] %vm328, %v309
  %341 = vst.msk [vmem:[%s2 + $0x60] sm:$0xff] %vm328, %v314
  %342 = vst.msk [vmem:[%s2 + $0x68] sm:$0xff] %vm328, %v317
  %343 = vst.msk [vmem:[%s2 + $0x70] sm:$0xff] %vm328, %v322
  %344 = vst.msk [vmem:[%s2 + $0x78] sm:$0xff] %vm328, %v325
  %v345 = vsel %vm328, %v266, 0.0
  %v346 = vsel %vm328, %v269, 0.0
  %v347 = vadd.f32 %v345, %v346
  %v348 = vsel %vm328, %v274, 0.0
  %v349 = vadd.f32 %v347, %v348
  %v350 = vsel %vm328, %v277, 0.0
  %v351 = vadd.f32 %v349, %v350
  %v352 = vsel %vm328, %v282, 0.0
  %v353 = vadd.f32 %v351, %v352
  %v354 = vsel %vm328, %v285, 0.0
  %v355 = vadd.f32 %v353, %v354
  %v356 = vsel %vm328, %v290, 0.0
  %v357 = vadd.f32 %v355, %v356
  %v358 = vsel %vm328, %v293, 0.0
  %v359 = vadd.f32 %v357, %v358
  %v360 = vsel %vm328, %v298, 0.0
  %v361 = vadd.f32 %v359, %v360
  %v362 = vsel %vm328, %v301, 0.0
  %v363 = vadd.f32 %v361, %v362
  %v364 = vsel %vm328, %v306, 0.0
  %v365 = vadd.f32 %v363, %v364
  %v366 = vsel %vm328, %v309, 0.0
  %v367 = vadd.f32 %v365, %v366
  %v368 = vsel %vm328, %v314, 0.0
  %v369 = vadd.f32 %v367, %v368
  %v370 = vsel %vm328, %v317, 0.0
  %v371 = vadd.f32 %v369, %v370
  %v372 = vsel %vm328, %v322, 0.0
  %v373 = vadd.f32 %v371, %v372
  %v374 = vsel %vm328, %v325, 0.0
  %v375 = vadd.f32 %v373, %v374
  %v376 = vrot.slane %v375, 4
  %v377 = vadd.f32 %v375, %v376
  %v378 = vrot.slane %v377, 2
  %v379 = vadd.f32 %v377, %v378
  %v380 = vrot.slane %v379, 1
  %v381 = vadd.f32 %v379, %v380
  %vm382 = vcmask 516096
  %383 = vst.msk [vmem:[%s3] sm:$0x1] %vm382, %v381
  %v384 = vmul.f32 %v266, %v266
  %v385 = vmul.f32 %v269, %v269
  %v386 = vmul.f32 %v274, %v274
  %v387 = vmul.f32 %v277, %v277
  %v388 = vmul.f32 %v282, %v282
  %v389 = vmul.f32 %v285, %v285
  %v390 = vmul.f32 %v290, %v290
  %v391 = vmul.f32 %v293, %v293
  %v392 = vmul.f32 %v298, %v298
  %v393 = vmul.f32 %v301, %v301
  %v394 = vmul.f32 %v306, %v306
  %v395 = vmul.f32 %v309, %v309
  %v396 = vmul.f32 %v314, %v314
  %v397 = vmul.f32 %v317, %v317
  %v398 = vmul.f32 %v322, %v322
  %v399 = vmul.f32 %v325, %v325
  %v400 = vsel %vm328, %v384, 0.0
  %v401 = vsel %vm328, %v385, 0.0
  %v402 = vadd.f32 %v400, %v401
  %v403 = vsel %vm328, %v386, 0.0
  %v404 = vadd.f32 %v402, %v403
  %v405 = vsel %vm328, %v387, 0.0
  %v406 = vadd.f32 %v404, %v405
  %v407 = vsel %vm328, %v388, 0.0
  %v408 = vadd.f32 %v406, %v407
  %v409 = vsel %vm328, %v389, 0.0
  %v410 = vadd.f32 %v408, %v409
  %v411 = vsel %vm328, %v390, 0.0
  %v412 = vadd.f32 %v410, %v411
  %v413 = vsel %vm328, %v391, 0.0
  %v414 = vadd.f32 %v412, %v413
  %v415 = vsel %vm328, %v392, 0.0
  %v416 = vadd.f32 %v414, %v415
  %v417 = vsel %vm328, %v393, 0.0
  %v418 = vadd.f32 %v416, %v417
  %v419 = vsel %vm328, %v394, 0.0
  %v420 = vadd.f32 %v418, %v419
  %v421 = vsel %vm328, %v395, 0.0
  %v422 = vadd.f32 %v420, %v421
  %v423 = vsel %vm328, %v396, 0.0
  %v424 = vadd.f32 %v422, %v423
  %v425 = vsel %vm328, %v397, 0.0
  %v426 = vadd.f32 %v424, %v425
  %v427 = vsel %vm328, %v398, 0.0
  %v428 = vadd.f32 %v426, %v427
  %v429 = vsel %vm328, %v399, 0.0
  %v430 = vadd.f32 %v428, %v429
  %v431 = vrot.slane %v430, 4
  %v432 = vadd.f32 %v430, %v431
  %v433 = vrot.slane %v432, 2
  %v434 = vadd.f32 %v432, %v433
  %v435 = vrot.slane %v434, 1
  %v436 = vadd.f32 %v434, %v435
  %437 = vst.msk [vmem:[%s3 + $0x1] sm:$0x1] %vm382, %v436
  // Predicated region
  $region10: #{satellite_feature_extractor.2} parent=0 // pred_check
    _
  $region11: #{satellite_feature_extractor.2} parent=0 // pred_check_branch
    %439 = sbr.rel (0) target = $region13
  $region12: #{satellite_feature_extractor.2} parent=0 // pred_region
    _
  $region13: #{satellite_feature_extractor.2} parent=0 // pred_fallthru
    _
  // Predicated region
  $region14: #{satellite_feature_extractor.2} parent=0 // pred_check
    _
  $region15: #{satellite_feature_extractor.2} parent=0 // pred_check_branch
    %441 = sbr.rel (0) target = $region17
  $region16: #{satellite_feature_extractor.2} parent=0 // pred_region
    _
  $region17: #{satellite_feature_extractor.2} parent=0 // pred_fallthru
    _
  // Predicated region
  $region18: #{satellite_feature_extractor.2} parent=0 // pred_check
    _
  $region19: #{satellite_feature_extractor.2} parent=0 // pred_check_branch
    %443 = sbr.rel (0) target = $region21
  $region20: #{satellite_feature_extractor.2} parent=0 // pred_region
    _
  $region21: #{satellite_feature_extractor.2} parent=0 // pred_fallthru
    _
  // Predicated region
  $region22: #{satellite_feature_extractor.2} parent=0 // pred_check
    _
  $region23: #{satellite_feature_extractor.2} parent=0 // pred_check_branch
    %445 = sbr.rel (0) target = $region25
  $region24: #{satellite_feature_extractor.2} parent=0 // pred_region
    _
  $region25: #{satellite_feature_extractor.2} parent=0 // pred_fallthru
    _

// kernel: satellite_feature_extractor.3
$region0: #{satellite_feature_extractor.3}
  #allocation0 [shape = 'u32[]', space=smem, size = 0x4, offset = 0x4, fixed_abs, tag = 'smem constant byte address 0x4 - core index']
  #allocation1 [shape = 'u32[144,128]{1,0:T(1,128)}', space=vmem, size = 0x12000, scoped, tag = 'internal scratch']
  %s0 = inlined_call_operand.vmem [shape: f32[128,64], index: 0, kind: input, shape index: {}]
  %s1 = inlined_call_operand.vmem [shape: f32[1,64], index: 1, kind: input, shape index: {}]
  %s2 = inlined_call_operand.vmem [shape: f32[1,64], index: 2, kind: input, shape index: {}]
  %s3 = inlined_call_operand.vmem [shape: bf16[256,64], index: 3, kind: input, shape index: {}]
  %s4 = inlined_call_operand.vmem [shape: f32[1,64], index: 4, kind: input, shape index: {}]
  %s5 = inlined_call_operand.vmem [shape: bf16[576,64], index: 5, kind: input, shape index: {}]
  %s6 = inlined_call_operand.vmem [shape: f32[1,64], index: 6, kind: input, shape index: {}]
  %s7 = inlined_call_operand.vmem [shape: f32[33,8], index: 7, kind: input, shape index: {}]
  %s8 = inlined_call_operand.vmem [shape: f32[2,33,2176], index: 8, kind: output, shape index: {}]
  %s9 = sld [smem:[#allocation0]]
  $region65: #{satellite_feature_extractor.3} parent=0
    _
  %s11 = ssub.s32 1, %s9
  %s12 = scalar_select 0, %s11, %s9
  loop: start=0, step=1, limit=4
  $region2: #{satellite_feature_extractor.3} parent=0 // loop_pre_header
    _
  $region3: #{satellite_feature_extractor.3} parent=0 // loop_header
    %s14 = sphi 0, %s18
    %p15 = scmp.ge.s32.totalorder %s14, 4
    %s24 = sphi 0, %s26
    %s27 = sphi 0, %s24
    %s28 = sphi 0, %s27
    %s44 = sphi 0, %s28
    %s48 = sphi 0, %s48
    %s50 = sphi 0, %s48
    %s51 = sphi 0, %s50
    %s65 = sphi 0, %s51
    %s69 = sphi 0, %s69
    %s71 = sphi 0, %s69
    %s72 = sphi 0, %s71
    %s86 = sphi 0, %s72
    %s90 = sphi 0, %s90
    %s92 = sphi 0, %s90
    %s93 = sphi 0, %s92
    %s107 = sphi 0, %s93
    %s111 = sphi 0, %s111
    %s113 = sphi 0, %s111
    %s114 = sphi 0, %s113
    %s128 = sphi 0, %s114
    %s132 = sphi 0, %s132
    %s134 = sphi 0, %s132
    %s135 = sphi 0, %s134
    %s149 = sphi 0, %s135
    %s153 = sphi 0, %s153
    %s155 = sphi 0, %s153
    %s156 = sphi 0, %s155
    %s170 = sphi 0, %s156
    %s174 = sphi 0, %s174
    %s176 = sphi 0, %s174
    %s177 = sphi 0, %s176
    %s191 = sphi 0, %s177
    %s197 = sphi 0, %s199
    %s200 = sphi 0, %s197
    %s201 = sphi 0, %s200
    %s217 = sphi 0, %s201
  $region4: #{satellite_feature_extractor.3} parent=0 // loop_header_branch
    %17 = sbr.rel (%p15) target = $region8
  $region5: #{satellite_feature_extractor.3} parent=0 // loop_body
    %s19 = ssub.s32 %s14, 1
    %s20 = ssub.s32 %s14, 2
    %s21 = sadd.s32 %s14, 1
    %s22 = ssub.s32 %s14, %s21
    %p23 = scmp.eq.s32.totalorder %s22, 0
    %s25 = sadd.s32 %s24, 1
    %s26 = scalar_select %p23, %s24, %s25
    %p29 = pneg %p23
    %p30 = scmp.eq.s32.totalorder %s14, 1
    %p31 = por %p29, %p30
    %p32 = scmp.ne.s32.totalorder %s24, %s27
    %p33 = scmp.eq.s32.totalorder %s14, 0
    %p34 = por %p32, %p33
    %p35 = scmp.ne.s32.totalorder %s24, %s27
    %p36 = scmp.eq.s32.totalorder %s19, 1
    %p37 = por %p35, %p36
    %p38 = scmp.ne.s32.totalorder %s27, %s28
    %p39 = scmp.eq.s32.totalorder %s19, 0
    %p40 = por %p38, %p39
    %p41 = scmp.ne.s32.totalorder %s27, %s28
    %p42 = scmp.eq.s32.totalorder %s20, 1
    %p43 = por %p41, %p42
    %p45 = scmp.ne.s32.totalorder %s28, %s44
    %p46 = scmp.eq.s32.totalorder %s20, 0
    %p47 = por %p45, %p46
    %s49 = sadd.s32 %s48, 1
    %p52 = scmp.eq.s32.totalorder %s14, 1
    %p53 = scmp.ne.s32.totalorder %s48, %s50
    %p54 = scmp.eq.s32.totalorder %s14, 0
    %p55 = por %p53, %p54
    %p56 = scmp.ne.s32.totalorder %s48, %s50
    %p57 = scmp.eq.s32.totalorder %s19, 1
    %p58 = por %p56, %p57
    %p59 = scmp.ne.s32.totalorder %s50, %s51
    %p60 = scmp.eq.s32.totalorder %s19, 0
    %p61 = por %p59, %p60
    %p62 = scmp.ne.s32.totalorder %s50, %s51
    %p63 = scmp.eq.s32.totalorder %s20, 1
    %p64 = por %p62, %p63
    %p66 = scmp.ne.s32.totalorder %s51, %s65
    %p67 = scmp.eq.s32.totalorder %s20, 0
    %p68 = por %p66, %p67
    %s70 = sadd.s32 %s69, 1
    %p73 = scmp.eq.s32.totalorder %s14, 1
    %p74 = scmp.ne.s32.totalorder %s69, %s71
    %p75 = scmp.eq.s32.totalorder %s14, 0
    %p76 = por %p74, %p75
    %p77 = scmp.ne.s32.totalorder %s69, %s71
    %p78 = scmp.eq.s32.totalorder %s19, 1
    %p79 = por %p77, %p78
    %p80 = scmp.ne.s32.totalorder %s71, %s72
    %p81 = scmp.eq.s32.totalorder %s19, 0
    %p82 = por %p80, %p81
    %p83 = scmp.ne.s32.totalorder %s71, %s72
    %p84 = scmp.eq.s32.totalorder %s20, 1
    %p85 = por %p83, %p84
    %p87 = scmp.ne.s32.totalorder %s72, %s86
    %p88 = scmp.eq.s32.totalorder %s20, 0
    %p89 = por %p87, %p88
    %s91 = sadd.s32 %s90, 1
    %p94 = scmp.eq.s32.totalorder %s14, 1
    %p95 = scmp.ne.s32.totalorder %s90, %s92
    %p96 = scmp.eq.s32.totalorder %s14, 0
    %p97 = por %p95, %p96
    %p98 = scmp.ne.s32.totalorder %s90, %s92
    %p99 = scmp.eq.s32.totalorder %s19, 1
    %p100 = por %p98, %p99
    %p101 = scmp.ne.s32.totalorder %s92, %s93
    %p102 = scmp.eq.s32.totalorder %s19, 0
    %p103 = por %p101, %p102
    %p104 = scmp.ne.s32.totalorder %s92, %s93
    %p105 = scmp.eq.s32.totalorder %s20, 1
    %p106 = por %p104, %p105
    %p108 = scmp.ne.s32.totalorder %s93, %s107
    %p109 = scmp.eq.s32.totalorder %s20, 0
    %p110 = por %p108, %p109
    %s112 = sadd.s32 %s111, 1
    %p115 = scmp.eq.s32.totalorder %s14, 1
    %p116 = scmp.ne.s32.totalorder %s111, %s113
    %p117 = scmp.eq.s32.totalorder %s14, 0
    %p118 = por %p116, %p117
    %p119 = scmp.ne.s32.totalorder %s111, %s113
    %p120 = scmp.eq.s32.totalorder %s19, 1
    %p121 = por %p119, %p120
    %p122 = scmp.ne.s32.totalorder %s113, %s114
    %p123 = scmp.eq.s32.totalorder %s19, 0
    %p124 = por %p122, %p123
    %p125 = scmp.ne.s32.totalorder %s113, %s114
    %p126 = scmp.eq.s32.totalorder %s20, 1
    %p127 = por %p125, %p126
    %p129 = scmp.ne.s32.totalorder %s114, %s128
    %p130 = scmp.eq.s32.totalorder %s20, 0
    %p131 = por %p129, %p130
    %s133 = sadd.s32 %s132, 1
    %p136 = scmp.eq.s32.totalorder %s14, 1
    %p137 = scmp.ne.s32.totalorder %s132, %s134
    %p138 = scmp.eq.s32.totalorder %s14, 0
    %p139 = por %p137, %p138
    %p140 = scmp.ne.s32.totalorder %s132, %s134
    %p141 = scmp.eq.s32.totalorder %s19, 1
    %p142 = por %p140, %p141
    %p143 = scmp.ne.s32.totalorder %s134, %s135
    %p144 = scmp.eq.s32.totalorder %s19, 0
    %p145 = por %p143, %p144
    %p146 = scmp.ne.s32.totalorder %s134, %s135
    %p147 = scmp.eq.s32.totalorder %s20, 1
    %p148 = por %p146, %p147
    %p150 = scmp.ne.s32.totalorder %s135, %s149
    %p151 = scmp.eq.s32.totalorder %s20, 0
    %p152 = por %p150, %p151
    %s154 = sadd.s32 %s153, 1
    %p157 = scmp.eq.s32.totalorder %s14, 1
    %p158 = scmp.ne.s32.totalorder %s153, %s155
    %p159 = scmp.eq.s32.totalorder %s14, 0
    %p160 = por %p158, %p159
    %p161 = scmp.ne.s32.totalorder %s153, %s155
    %p162 = scmp.eq.s32.totalorder %s19, 1
    %p163 = por %p161, %p162
    %p164 = scmp.ne.s32.totalorder %s155, %s156
    %p165 = scmp.eq.s32.totalorder %s19, 0
    %p166 = por %p164, %p165
    %p167 = scmp.ne.s32.totalorder %s155, %s156
    %p168 = scmp.eq.s32.totalorder %s20, 1
    %p169 = por %p167, %p168
    %p171 = scmp.ne.s32.totalorder %s156, %s170
    %p172 = scmp.eq.s32.totalorder %s20, 0
    %p173 = por %p171, %p172
    %s175 = sadd.s32 %s174, 1
    %p178 = scmp.eq.s32.totalorder %s14, 1
    %p179 = scmp.ne.s32.totalorder %s174, %s176
    %p180 = scmp.eq.s32.totalorder %s14, 0
    %p181 = por %p179, %p180
    %p182 = scmp.ne.s32.totalorder %s174, %s176
    %p183 = scmp.eq.s32.totalorder %s19, 1
    %p184 = por %p182, %p183
    %p185 = scmp.ne.s32.totalorder %s176, %s177
    %p186 = scmp.eq.s32.totalorder %s19, 0
    %p187 = por %p185, %p186
    %p188 = scmp.ne.s32.totalorder %s176, %s177
    %p189 = scmp.eq.s32.totalorder %s20, 1
    %p190 = por %p188, %p189
    %p192 = scmp.ne.s32.totalorder %s177, %s191
    %p193 = scmp.eq.s32.totalorder %s20, 0
    %p194 = por %p192, %p193
    %s195 = ssub.s32 %s14, %s21
    %p196 = scmp.eq.s32.totalorder %s195, 0
    %s198 = sadd.s32 %s197, 1
    %s199 = scalar_select %p196, %s197, %s198
    %p202 = pneg %p196
    %p203 = scmp.eq.s32.totalorder %s14, 1
    %p204 = por %p202, %p203
    %p205 = scmp.ne.s32.totalorder %s197, %s200
    %p206 = scmp.eq.s32.totalorder %s14, 0
    %p207 = por %p205, %p206
    %p208 = scmp.ne.s32.totalorder %s197, %s200
    %p209 = scmp.eq.s32.totalorder %s19, 1
    %p210 = por %p208, %p209
    %p211 = scmp.ne.s32.totalorder %s200, %s201
    %p212 = scmp.eq.s32.totalorder %s19, 0
    %p213 = por %p211, %p212
    %p214 = scmp.ne.s32.totalorder %s200, %s201
    %p215 = scmp.eq.s32.totalorder %s20, 1
    %p216 = por %p214, %p215
    %p218 = scmp.ne.s32.totalorder %s201, %s217
    %p219 = scmp.eq.s32.totalorder %s20, 0
    %p220 = por %p218, %p219
    %p221 = scmp.le.s32.totalorder 1, %s14
    %p222 = scmp.lt.s32.totalorder %s14, 3
    %p223 = pnand %p221, %p222
    %p224 = pneg %p223
    // Predicated region
    $region9: #{satellite_feature_extractor.3} parent=5 // pred_check
      _
    $region10: #{satellite_feature_extractor.3} parent=5 // pred_check_branch
      %226 = sbr.rel (%p223) target = $region12
    $region11: #{satellite_feature_extractor.3} parent=5 // pred_region
      %s227 = ssub.s32 %s14, 1
      // Predicated region
      $region13: #{satellite_feature_extractor.3} parent=11 // pred_check
        %p228 = pneg %p61
      $region14: #{satellite_feature_extractor.3} parent=11 // pred_check_branch
        %230 = sbr.rel (%p228) target = $region16
      $region15: #{satellite_feature_extractor.3} parent=11 // pred_region
        _
      $region16: #{satellite_feature_extractor.3} parent=11 // pred_fallthru
        _
      // Predicated region
      $region17: #{satellite_feature_extractor.3} parent=11 // pred_check
        %p231 = pneg %p82
      $region18: #{satellite_feature_extractor.3} parent=11 // pred_check_branch
        %233 = sbr.rel (%p231) target = $region20
      $region19: #{satellite_feature_extractor.3} parent=11 // pred_region
        _
      $region20: #{satellite_feature_extractor.3} parent=11 // pred_fallthru
        _
      // Predicated region
      $region21: #{satellite_feature_extractor.3} parent=11 // pred_check
        %p234 = pneg %p103
      $region22: #{satellite_feature_extractor.3} parent=11 // pred_check_branch
        %236 = sbr.rel (%p234) target = $region24
      $region23: #{satellite_feature_extractor.3} parent=11 // pred_region
        _
      $region24: #{satellite_feature_extractor.3} parent=11 // pred_fallthru
        _
      // Predicated region
      $region25: #{satellite_feature_extractor.3} parent=11 // pred_check
        %p237 = pneg %p124
      $region26: #{satellite_feature_extractor.3} parent=11 // pred_check_branch
        %239 = sbr.rel (%p237) target = $region28
      $region27: #{satellite_feature_extractor.3} parent=11 // pred_region
        _
      $region28: #{satellite_feature_extractor.3} parent=11 // pred_fallthru
        _
      // Predicated region
      $region29: #{satellite_feature_extractor.3} parent=11 // pred_check
        %p240 = pneg %p145
      $region30: #{satellite_feature_extractor.3} parent=11 // pred_check_branch
        %242 = sbr.rel (%p240) target = $region32
      $region31: #{satellite_feature_extractor.3} parent=11 // pred_region
        _
      $region32: #{satellite_feature_extractor.3} parent=11 // pred_fallthru
        _
      // Predicated region
      $region33: #{satellite_feature_extractor.3} parent=11 // pred_check
        %p243 = pneg %p166
      $region34: #{satellite_feature_extractor.3} parent=11 // pred_check_branch
        %245 = sbr.rel (%p243) target = $region36
      $region35: #{satellite_feature_extractor.3} parent=11 // pred_region
        _
      $region36: #{satellite_feature_extractor.3} parent=11 // pred_fallthru
        _
      // Predicated region
      $region37: #{satellite_feature_extractor.3} parent=11 // pred_check
        %p246 = pneg %p187
      $region38: #{satellite_feature_extractor.3} parent=11 // pred_check_branch
        %248 = sbr.rel (%p246) target = $region40
      $region39: #{satellite_feature_extractor.3} parent=11 // pred_region
        _
      $region40: #{satellite_feature_extractor.3} parent=11 // pred_fallthru
        _
    $region12: #{satellite_feature_extractor.3} parent=5 // pred_fallthru
      _
    %p249 = scmp.lt.s32.totalorder %s14, 2
    // Predicated region
    $region41: #{satellite_feature_extractor.3} parent=5 // pred_check
      %p250 = pneg %p249
    $region42: #{satellite_feature_extractor.3} parent=5 // pred_check_branch
      %252 = sbr.rel (%p250) target = $region44
    $region43: #{satellite_feature_extractor.3} parent=5 // pred_region
      // Predicated region
      $region45: #{satellite_feature_extractor.3} parent=43 // pred_check
        %p253 = pneg %p34
      $region46: #{satellite_feature_extractor.3} parent=43 // pred_check_branch
        %255 = sbr.rel (%p253) target = $region48
      $region47: #{satellite_feature_extractor.3} parent=43 // pred_region
        %s256 = smul.u32 8, %s14
        %p257 = scmp.lt.s32.totalorder %s256, 15
        %s258 = scalar_select %p257, %s256, 15
        %s259 = smul.addr %s258, 8
        %s260 = scalar_lea.vmem %s0, %s259
        %s261 = smul.u32 8, %s14
      $region48: #{satellite_feature_extractor.3} parent=43 // pred_fallthru
        _
    $region44: #{satellite_feature_extractor.3} parent=5 // pred_fallthru
      _
    %p262 = scmp.le.s32.totalorder 1, %s14
    %p263 = scmp.lt.s32.totalorder %s14, 3
    %p264 = pnand %p262, %p263
    %p265 = pneg %p264
    // Predicated region
    $region49: #{satellite_feature_extractor.3} parent=5 // pred_check
      _
    $region50: #{satellite_feature_extractor.3} parent=5 // pred_check_branch
      %267 = sbr.rel (%p264) target = $region52
    $region51: #{satellite_feature_extractor.3} parent=5 // pred_region
      %s268 = ssub.s32 %s14, 1
      %s269 = smul.u32 8, %s19
      %p270 = scmp.lt.s32.totalorder %s269, 15
      %s271 = scalar_select %p270, %s269, 15
      %s272 = smul.addr %s271, 8
      %s273 = scalar_lea.vmem %s0, %s272
      %p274 = pneg %p40
      %p275 = pneg %p37
      %p276 = pneg %p61
      %p277 = pneg %p58
      %p278 = pneg %p82
      %p279 = pneg %p79
      %p280 = pneg %p103
      %p281 = pneg %p100
      %p282 = pneg %p124
      %p283 = pneg %p121
      %p284 = pneg %p145
      %p285 = pneg %p142
      %p286 = pneg %p166
      %p287 = pneg %p163
      %p288 = pneg %p187
      %p289 = pneg %p184
      %p290 = pneg %p213
      %p291 = pneg %p210
      %p292 = scmp.lt.s32.totalorder %s19, 1
      %s293 = scalar_select %p292, %s19, 1
      %s294 = smul.addr %s293, 85
      %s295 = smul.addr %s294, 8
      %s296 = scalar_lea.vmem %s8, %s295
      %s297 = smul.u32 8, %s19
      %p298 = scmp.lt.s32.totalorder %s297, 15
      %s299 = scalar_select %p298, %s297, 15
      %s300 = smul.addr %s299, 8
      %s301 = scalar_lea.vmem %s0, %s300
      %s302 = smul.u32 8, %s19
      %p303 = scmp.lt.s32.totalorder %s19, 1
      %s304 = scalar_select %p303, %s19, 1
      %s305 = smul.addr %s304, 85
      %s306 = smul.addr %s305, 8
      %s307 = scalar_lea.vmem %s8, %s306
      %v309 = vld [vmem:[%s301] sm:$0xff]
      %v310 = vld [vmem:[%s301 + $0x8] sm:$0xff]
      %v311 = vld [vmem:[%s301 + $0x10] sm:$0xff]
      %v312 = vld [vmem:[%s301 + $0x18] sm:$0xff]
      %v313 = vld [vmem:[%s301 + $0x20] sm:$0xff]
      %v314 = vld [vmem:[%s301 + $0x28] sm:$0xff]
      %v315 = vld [vmem:[%s301 + $0x30] sm:$0xff]
      %v316 = vld [vmem:[%s301 + $0x38] sm:$0xff]
      %v317 = vld [vmem:[%s1] sm:$0x1]
      %v319 = vlaneseq
      %v320 = vshrl.u32 %v319, 7
      %v321 = vsub.s32 0, %v320
      %v322 = vrot.slane %v317, %v321
      %v324 = vmul.f32 %v309, %v322
      %v325 = vmul.f32 %v310, %v322
      %v326 = vmul.f32 %v311, %v322
      %v327 = vmul.f32 %v312, %v322
      %v328 = vmul.f32 %v313, %v322
      %v329 = vmul.f32 %v314, %v322
      %v330 = vmul.f32 %v315, %v322
      %v331 = vmul.f32 %v316, %v322
      %v332 = vld [vmem:[%s2] sm:$0x1]
      %v334 = vlaneseq
      %v335 = vshrl.u32 %v334, 7
      %v336 = vsub.s32 0, %v335
      %v337 = vrot.slane %v332, %v336
      %v339 = vadd.f32 %v324, %v337
      %v340 = vadd.f32 %v325, %v337
      %v341 = vadd.f32 %v326, %v337
      %v342 = vadd.f32 %v327, %v337
      %v343 = vadd.f32 %v328, %v337
      %v344 = vadd.f32 %v329, %v337
      %v345 = vadd.f32 %v330, %v337
      %v346 = vadd.f32 %v331, %v337
      %v347 = vmax.f32 %v339, 0.0
      %v348 = vmax.f32 %v340, 0.0
      %v349 = vmax.f32 %v341, 0.0
      %v350 = vmax.f32 %v342, 0.0
      %v351 = vmax.f32 %v343, 0.0
      %v352 = vmax.f32 %v344, 0.0
      %v353 = vmax.f32 %v345, 0.0
      %v354 = vmax.f32 %v346, 0.0
      %v364 = vrot.slane 0.0, 7
      %v365 = vrot.slane %v347, 7
      %v366 = vrot.slane %v348, 7
      %v367 = vrot.slane %v349, 7
      %v368 = vrot.slane %v350, 7
      %v369 = vrot.slane %v351, 7
      %v370 = vrot.slane %v352, 7
      %v371 = vrot.slane %v353, 7
      %v372 = vrot.slane %v354, 7
      %vm382 = vcmask 1040384
      %v383 = vsel %vm382, 0.0, %v364
      %v384 = vsel %vm382, 0.0, %v365
      %v385 = vsel %vm382, 0.0, %v366
      %v386 = vsel %vm382, 0.0, %v367
      %v387 = vsel %vm382, 0.0, %v368
      %v388 = vsel %vm382, 0.0, %v369
      %v389 = vsel %vm382, 0.0, %v370
      %v390 = vsel %vm382, 0.0, %v371
      %v391 = vsel %vm382, 0.0, %v372
      %v392 = vsel %vm382, %v364, 0.0
      %v393 = vsel %vm382, %v365, 0.0
      %v394 = vsel %vm382, %v366, 0.0
      %v395 = vsel %vm382, %v367, 0.0
      %v396 = vsel %vm382, %v368, 0.0
      %v397 = vsel %vm382, %v369, 0.0
      %v398 = vsel %vm382, %v370, 0.0
      %v399 = vsel %vm382, %v371, 0.0
      %v400 = vsel %vm382, %v372, 0.0
      %vm417 = vcmask 1046528
      %v418 = vrot.slane %v383, 1
      %v419 = vrot.slane %v392, 1
      %v420 = vsel %vm417, %v418, %v419
      %v421 = vrot.slane %v384, 1
      %v422 = vrot.slane %v393, 1
      %v423 = vsel %vm417, %v421, %v422
      %v424 = vrot.slane %v385, 1
      %v425 = vrot.slane %v394, 1
      %v426 = vsel %vm417, %v424, %v425
      %v427 = vrot.slane %v386, 1
      %v428 = vrot.slane %v395, 1
      %v429 = vsel %vm417, %v427, %v428
      %v430 = vrot.slane %v387, 1
      %v431 = vrot.slane %v396, 1
      %v432 = vsel %vm417, %v430, %v431
      %v433 = vrot.slane %v388, 1
      %v434 = vrot.slane %v397, 1
      %v435 = vsel %vm417, %v433, %v434
      %v436 = vrot.slane %v389, 1
      %v437 = vrot.slane %v398, 1
      %v438 = vsel %vm417, %v436, %v437
      %v439 = vrot.slane %v390, 1
      %v440 = vrot.slane %v399, 1
      %v441 = vsel %vm417, %v439, %v440
      %v450 = vmax.f32 %v383, %v420
      %v451 = vmax.f32 %v384, %v423
      %v452 = vmax.f32 %v385, %v426
      %v453 = vmax.f32 %v386, %v429
      %v454 = vmax.f32 %v387, %v432
      %v455 = vmax.f32 %v388, %v435
      %v456 = vmax.f32 %v389, %v438
      %v457 = vmax.f32 %v390, %v441
      %vm458 = vcmask 1045504
      %v459 = vrot.slane %v383, 2
      %v460 = vrot.slane %v392, 2
      %v461 = vsel %vm458, %v459, %v460
      %v462 = vrot.slane %v384, 2
      %v463 = vrot.slane %v393, 2
      %v464 = vsel %vm458, %v462, %v463
      %v465 = vrot.slane %v385, 2
      %v466 = vrot.slane %v394, 2
      %v467 = vsel %vm458, %v465, %v466
      %v468 = vrot.slane %v386, 2
      %v469 = vrot.slane %v395, 2
      %v470 = vsel %vm458, %v468, %v469
      %v471 = vrot.slane %v387, 2
      %v472 = vrot.slane %v396, 2
      %v473 = vsel %vm458, %v471, %v472
      %v474 = vrot.slane %v388, 2
      %v475 = vrot.slane %v397, 2
      %v476 = vsel %vm458, %v474, %v475
      %v477 = vrot.slane %v389, 2
      %v478 = vrot.slane %v398, 2
      %v479 = vsel %vm458, %v477, %v478
      %v480 = vrot.slane %v390, 2
      %v481 = vrot.slane %v399, 2
      %v482 = vsel %vm458, %v480, %v481
      %v491 = vmax.f32 %v450, %v461
      %v492 = vmax.f32 %v451, %v464
      %v493 = vmax.f32 %v452, %v467
      %v494 = vmax.f32 %v453, %v470
      %v495 = vmax.f32 %v454, %v473
      %v496 = vmax.f32 %v455, %v476
      %v497 = vmax.f32 %v456, %v479
      %v498 = vmax.f32 %v457, %v482
      %v499 = vmax.f32 %v491, %v384
      %v500 = vmax.f32 %v492, %v385
      %v501 = vmax.f32 %v493, %v386
      %v502 = vmax.f32 %v494, %v387
      %v503 = vmax.f32 %v495, %v388
      %v504 = vmax.f32 %v496, %v389
      %v505 = vmax.f32 %v497, %v390
      %v506 = vmax.f32 %v498, %v391
      %v509 = vrot.slane %v391, 1
      %v510 = vrot.slane %v400, 1
      %v511 = vsel %vm417, %v509, %v510
      %v513 = vmax.f32 %v499, %v423
      %v514 = vmax.f32 %v500, %v426
      %v515 = vmax.f32 %v501, %v429
      %v516 = vmax.f32 %v502, %v432
      %v517 = vmax.f32 %v503, %v435
      %v518 = vmax.f32 %v504, %v438
      %v519 = vmax.f32 %v505, %v441
      %v520 = vmax.f32 %v506, %v511
      %v521 = vrot.slane %v391, 2
      %v522 = vrot.slane %v400, 2
      %v523 = vsel %vm458, %v521, %v522
      %v525 = vmax.f32 %v513, %v464
      %v526 = vmax.f32 %v514, %v467
      %v527 = vmax.f32 %v515, %v470
      %v528 = vmax.f32 %v516, %v473
      %v529 = vmax.f32 %v517, %v476
      %v530 = vmax.f32 %v518, %v479
      %v531 = vmax.f32 %v519, %v482
      %v532 = vmax.f32 %v520, %v523
      %v533 = vmax.f32 %v525, %v385
      %v534 = vmax.f32 %v526, %v386
      %v535 = vmax.f32 %v527, %v387
      %v536 = vmax.f32 %v528, %v388
      %v537 = vmax.f32 %v529, %v389
      %v538 = vmax.f32 %v530, %v390
      %v539 = vmax.f32 %v531, %v391
      %v540 = vmax.f32 %v532, %v383
      %v541 = vmax.f32 %v533, %v426
      %v542 = vmax.f32 %v534, %v429
      %v543 = vmax.f32 %v535, %v432
      %v544 = vmax.f32 %v536, %v435
      %v545 = vmax.f32 %v537, %v438
      %v546 = vmax.f32 %v538, %v441
      %v547 = vmax.f32 %v539, %v511
      %v548 = vmax.f32 %v540, %v420
      %v549 = vmax.f32 %v541, %v467
      %v550 = vmax.f32 %v542, %v470
      %v551 = vmax.f32 %v543, %v473
      %v552 = vmax.f32 %v544, %v476
      %v553 = vmax.f32 %v545, %v479
      %v554 = vmax.f32 %v546, %v482
      %v555 = vmax.f32 %v547, %v523
      %v556 = vmax.f32 %v548, %v461
      %v565 = vrot.slane %v549, 7
      %v566 = vrot.slane %v550, 7
      %v567 = vrot.slane %v551, 7
      %v568 = vrot.slane %v552, 7
      %v569 = vrot.slane %v553, 7
      %v570 = vrot.slane %v554, 7
      %v571 = vrot.slane %v555, 7
      %v572 = vrot.slane %v556, 7
      %v581 = vsel %vm382, 0.0, %v565
      %v582 = vsel %vm382, 0.0, %v566
      %v583 = vsel %vm382, 0.0, %v567
      %v584 = vsel %vm382, 0.0, %v568
      %v585 = vsel %vm382, 0.0, %v569
      %v586 = vsel %vm382, 0.0, %v570
      %v587 = vsel %vm382, 0.0, %v571
      %v588 = vsel %vm382, 0.0, %v572
      %v589 = vlaneseq
      %v590 = vshrl.u32 %v589, 7
      %vm591 = vcmp.lt.s32.totalorder %v590, 0
      %v592 = vsub.s32 0, %v590
      %v593 = vsel %vm591, %v592, %v590
      %v594 = vshrl.u32 %v593, 1
      %v595 = vand.u32 %v593, 1
      %v596 = vsub.s32 0, %v595
      %v597 = vsel %vm591, %v596, %v595
      %vm598 = vcmp.ne.s32.totalorder %v597, 0
      %vm599 = vcmp.lt.s32.totalorder %v597, 0
      %vm600 = vmand %vm599, %vm598
      %v601 = vadd.s32 %v597, 2
      %v602 = vsel %vm600, %v601, %v597
      %vm603 = vcmp.eq.s32.totalorder %v602, 1
      %v604 = vsel %vm603, 1, 0
      %vm605 = vcmp.eq.s32.totalorder %v604, 1
      %v613 = vrot.slane %v364, 1
      %v614 = vsel %vm417, %v418, %v613
      %v615 = vrot.slane %v581, 1
      %v616 = vrot.slane %v565, 1
      %v617 = vsel %vm417, %v615, %v616
      %v618 = vrot.slane %v582, 1
      %v619 = vrot.slane %v566, 1
      %v620 = vsel %vm417, %v618, %v619
      %v621 = vrot.slane %v583, 1
      %v622 = vrot.slane %v567, 1
      %v623 = vsel %vm417, %v621, %v622
      %v624 = vrot.slane %v584, 1
      %v625 = vrot.slane %v568, 1
      %v626 = vsel %vm417, %v624, %v625
      %v627 = vrot.slane %v585, 1
      %v628 = vrot.slane %v569, 1
      %v629 = vsel %vm417, %v627, %v628
      %v630 = vrot.slane %v586, 1
      %v631 = vrot.slane %v570, 1
      %v632 = vsel %vm417, %v630, %v631
      %v633 = vrot.slane %v587, 1
      %v634 = vrot.slane %v571, 1
      %v635 = vsel %vm417, %v633, %v634
      %v644 = vsel %vm605, %v383, %v614
      %v645 = vsel %vm605, %v581, %v617
      %v646 = vsel %vm605, %v582, %v620
      %v647 = vsel %vm605, %v583, %v623
      %v648 = vsel %vm605, %v584, %v626
      %v649 = vsel %vm605, %v585, %v629
      %v650 = vsel %vm605, %v586, %v632
      %v651 = vsel %vm605, %v587, %v635
      %v652 = vsel %vm605, %v581, %v549
      %v653 = vsel %vm605, %v582, %v550
      %v654 = vsel %vm605, %v583, %v551
      %v655 = vsel %vm605, %v584, %v552
      %v656 = vsel %vm605, %v585, %v553
      %v657 = vsel %vm605, %v586, %v554
      %v658 = vsel %vm605, %v587, %v555
      %v659 = vsel %vm605, %v588, %v556
      %v660 = vsel 0, %v644, %v652
      %v661 = vsel 1, %v645, %v653
      %v662 = vsel 0, %v646, %v654
      %v663 = vsel 1, %v647, %v655
      %v664 = vsel 0, %v648, %v656
      %v665 = vsel 1, %v649, %v657
      %v666 = vsel 0, %v650, %v658
      %v667 = vsel 1, %v651, %v659
      %676 = vrot.lane.b32.xlu0 %v339, 64
      %v677 = vpop.permute.xlu0 %676
      %678 = vrot.lane.b32.xlu0 %v340, 64
      %v679 = vpop.permute.xlu0 %678
      %680 = vrot.lane.b32.xlu0 %v341, 64
      %v681 = vpop.permute.xlu0 %680
      %682 = vrot.lane.b32.xlu0 %v342, 64
      %v683 = vpop.permute.xlu0 %682
      %684 = vrot.lane.b32.xlu0 %v343, 64
      %v685 = vpop.permute.xlu0 %684
      %686 = vrot.lane.b32.xlu0 %v344, 64
      %v687 = vpop.permute.xlu0 %686
      %688 = vrot.lane.b32.xlu0 %v345, 64
      %v689 = vpop.permute.xlu0 %688
      %690 = vrot.lane.b32.xlu0 %v346, 64
      %v691 = vpop.permute.xlu0 %690
      %708 = vrot.lane.b32.xlu0 %v660, 64
      %v709 = vpop.permute.xlu0 %708
      %710 = vrot.lane.b32.xlu0 %v661, 64
      %v711 = vpop.permute.xlu0 %710
      %712 = vrot.lane.b32.xlu0 %v662, 64
      %v713 = vpop.permute.xlu0 %712
      %714 = vrot.lane.b32.xlu0 %v663, 64
      %v715 = vpop.permute.xlu0 %714
      %716 = vrot.lane.b32.xlu0 %v664, 64
      %v717 = vpop.permute.xlu0 %716
      %718 = vrot.lane.b32.xlu0 %v665, 64
      %v719 = vpop.permute.xlu0 %718
      %720 = vrot.lane.b32.xlu0 %v666, 64
      %v721 = vpop.permute.xlu0 %720
      %722 = vrot.lane.b32.xlu0 %v667, 64
      %v723 = vpop.permute.xlu0 %722
      %vm732 = vcmask 523264
      %v733 = vsel %vm732, %v309, %v677
      %v734 = vsel %vm732, %v310, %v679
      %v735 = vsel %vm732, %v311, %v681
      %v736 = vsel %vm732, %v312, %v683
      %v737 = vsel %vm732, %v313, %v685
      %v738 = vsel %vm732, %v314, %v687
      %v739 = vsel %vm732, %v315, %v689
      %v740 = vsel %vm732, %v316, %v691
      %v741 = vsel %vm732, %v347, %v709
      %v742 = vsel %vm732, %v348, %v711
      %v743 = vsel %vm732, %v349, %v713
      %v744 = vsel %vm732, %v350, %v715
      %v745 = vsel %vm732, %v351, %v717
      %v746 = vsel %vm732, %v352, %v719
      %v747 = vsel %vm732, %v353, %v721
      %v748 = vsel %vm732, %v354, %v723
      %v749 = vpack.c.bf16 %v734, %v733
      %v750 = vpack.c.bf16 %v742, %v741
      %v751 = vpack.c.bf16 %v736, %v735
      %v752 = vpack.c.bf16 %v744, %v743
      %v753 = vpack.c.bf16 %v738, %v737
      %v754 = vpack.c.bf16 %v746, %v745
      %v755 = vpack.c.bf16 %v740, %v739
      %v756 = vpack.c.bf16 %v748, %v747
      %v757 = vld [vmem:[%s3] sm:$0xf]
      %v758 = vld [vmem:[%s3 + $0x4] sm:$0xf]
      %v759 = vld [vmem:[%s3 + $0x8] sm:$0xf]
      %v760 = vld [vmem:[%s3 + $0xc] sm:$0xf]
      %v761 = vld [vmem:[%s3 + $0x10] sm:$0xf]
      %v762 = vld [vmem:[%s3 + $0x14] sm:$0xf]
      %v763 = vld [vmem:[%s3 + $0x18] sm:$0xf]
      %v764 = vld [vmem:[%s3 + $0x1c] sm:$0xf]
      %v765 = vld [vmem:[%s3 + $0x20] sm:$0xf]
      %v766 = vld [vmem:[%s3 + $0x24] sm:$0xf]
      %v767 = vld [vmem:[%s3 + $0x28] sm:$0xf]
      %v768 = vld [vmem:[%s3 + $0x2c] sm:$0xf]
      %v769 = vld [vmem:[%s3 + $0x30] sm:$0xf]
      %v770 = vld [vmem:[%s3 + $0x34] sm:$0xf]
      %v771 = vld [vmem:[%s3 + $0x38] sm:$0xf]
      %v772 = vld [vmem:[%s3 + $0x3c] sm:$0xf]
      %v773 = vld [vmem:[%s3 + $0x40] sm:$0xf]
      %v774 = vld [vmem:[%s3 + $0x44] sm:$0xf]
      %v775 = vld [vmem:[%s3 + $0x48] sm:$0xf]
      %v776 = vld [vmem:[%s3 + $0x4c] sm:$0xf]
      %v777 = vld [vmem:[%s3 + $0x50] sm:$0xf]
      %v778 = vld [vmem:[%s3 + $0x54] sm:$0xf]
      %v779 = vld [vmem:[%s3 + $0x58] sm:$0xf]
      %v780 = vld [vmem:[%s3 + $0x5c] sm:$0xf]
      %v781 = vld [vmem:[%s3 + $0x60] sm:$0xf]
      %v782 = vld [vmem:[%s3 + $0x64] sm:$0xf]
      %v783 = vld [vmem:[%s3 + $0x68] sm:$0xf]
      %v784 = vld [vmem:[%s3 + $0x6c] sm:$0xf]
      %v785 = vld [vmem:[%s3 + $0x70] sm:$0xf]
      %v786 = vld [vmem:[%s3 + $0x74] sm:$0xf]
      %v787 = vld [vmem:[%s3 + $0x78] sm:$0xf]
      %v788 = vld [vmem:[%s3 + $0x7c] sm:$0xf]
      %v789 = vld [vmem:[%s4] sm:$0x1]
      %v791 = vlaneseq
      %v792 = vshrl.u32 %v791, 7
      %v793 = vsub.s32 0, %v792
      %v794 = vrot.slane %v789, %v793
      %v828 = vunpack.c.l.b16 %v757
      %v829 = vunpack.c.l.b16 %v758
      %v830 = vunpack.c.l.b16 %v759
      %v831 = vunpack.c.l.b16 %v760
      %v832 = vunpack.c.l.b16 %v761
      %v833 = vunpack.c.l.b16 %v762
      %v834 = vunpack.c.l.b16 %v763
      %v835 = vunpack.c.l.b16 %v764
      %v836 = vunpack.c.l.b16 %v765
      %v837 = vunpack.c.l.b16 %v766
      %v838 = vunpack.c.l.b16 %v767
      %v839 = vunpack.c.l.b16 %v768
      %v840 = vunpack.c.l.b16 %v769
      %v841 = vunpack.c.l.b16 %v770
      %v842 = vunpack.c.l.b16 %v771
      %v843 = vunpack.c.l.b16 %v772
      %v844 = vunpack.c.l.b16 %v773
      %v845 = vunpack.c.l.b16 %v774
      %v846 = vunpack.c.l.b16 %v775
      %v847 = vunpack.c.l.b16 %v776
      %v848 = vunpack.c.l.b16 %v777
      %v849 = vunpack.c.l.b16 %v778
      %v850 = vunpack.c.l.b16 %v779
      %v851 = vunpack.c.l.b16 %v780
      %v852 = vunpack.c.l.b16 %v781
      %v853 = vunpack.c.l.b16 %v782
      %v854 = vunpack.c.l.b16 %v783
      %v855 = vunpack.c.l.b16 %v784
      %v856 = vunpack.c.l.b16 %v785
      %v857 = vunpack.c.l.b16 %v786
      %v858 = vunpack.c.l.b16 %v787
      %v859 = vunpack.c.l.b16 %v788
      %v860 = vpack.c.b16 %v829, %v828
      %v861 = vpack.c.b16 %v831, %v830
      %v862 = vpack.c.b16 %v833, %v832
      %v863 = vpack.c.b16 %v835, %v834
      %v864 = vpack.c.b16 %v837, %v836
      %v865 = vpack.c.b16 %v839, %v838
      %v866 = vpack.c.b16 %v841, %v840
      %v867 = vpack.c.b16 %v843, %v842
      %v868 = vpack.c.b16 %v845, %v844
      %v869 = vpack.c.b16 %v847, %v846
      %v870 = vpack.c.b16 %v849, %v848
      %v871 = vpack.c.b16 %v851, %v850
      %v872 = vpack.c.b16 %v853, %v852
      %v873 = vpack.c.b16 %v855, %v854
      %v874 = vpack.c.b16 %v857, %v856
      %v875 = vpack.c.b16 %v859, %v858
      %892 = vmatprep.subr.bf16.mxu0 0
      %893 = vmatpush1.bf16.msra.mxu0 %v860
      %894 = vmatprep.subr.bf16.mxu0 0
      %895 = vmatpush1.bf16.msra.mxu0 %v861
      %896 = vmatprep.subr.bf16.mxu0 0
      %897 = vmatpush1.bf16.msra.mxu0 %v862
      %898 = vmatprep.subr.bf16.mxu0 0
      %899 = vmatpush1.bf16.msra.mxu0 %v863
      %900 = vmatprep.subr.bf16.mxu0 0
      %901 = vmatpush1.bf16.msra.mxu0 %v864
      %902 = vmatprep.subr.bf16.mxu0 0
      %903 = vmatpush1.bf16.msra.mxu0 %v865
      %904 = vmatprep.subr.bf16.mxu0 0
      %905 = vmatpush1.bf16.msra.mxu0 %v866
      %906 = vmatprep.subr.bf16.mxu0 0
      %907 = vmatpush1.bf16.msra.mxu0 %v867
      %908 = vmatprep.subr.bf16.mxu0 0
      %909 = vmatpush1.bf16.msra.mxu0 %v868
      %910 = vmatprep.subr.bf16.mxu0 0
      %911 = vmatpush1.bf16.msra.mxu0 %v869
      %912 = vmatprep.subr.bf16.mxu0 0
      %913 = vmatpush1.bf16.msra.mxu0 %v870
      %914 = vmatprep.subr.bf16.mxu0 0
      %915 = vmatpush1.bf16.msra.mxu0 %v871
      %916 = vmatprep.subr.bf16.mxu0 0
      %917 = vmatpush1.bf16.msra.mxu0 %v872
      %918 = vmatprep.subr.bf16.mxu0 0
      %919 = vmatpush1.bf16.msra.mxu0 %v873
      %920 = vmatprep.subr.bf16.mxu0 0
      %921 = vmatpush1.bf16.msra.mxu0 %v874
      %922 = vmatprep.subr.bf16.mxu0 0
      %923 = vmatpush1.bf16.msra.mxu0 %v875
      %924 = vmatprep.mubr.bf16.mxu0 %v750
      %925 = vmatmul.mubr.bf16.gmra.mrb[0].mxu0 %v749
      %v926 = vpop.f32.mrb[0].mxu0
      %v927 = vadd.f32 %v794, %v926
      %v928 = vpop.f32.mrb[0].mxu0
      %v929 = vpop.f32.mrb[0].mxu0
      %v930 = vadd.f32 %v794, %v929
      %v931 = vpop.f32.mrb[0].mxu0
      %932 = vmatprep.mubr.bf16.mxu0 %v752
      %933 = vmatmul.mubr.bf16.gmra.mrb[0].mxu0 %v751
      %v934 = vpop.f32.mrb[0].mxu0
      %v935 = vadd.f32 %v794, %v934
      %v936 = vpop.f32.mrb[0].mxu0
      %v937 = vpop.f32.mrb[0].mxu0
      %v938 = vadd.f32 %v794, %v937
      %v939 = vpop.f32.mrb[0].mxu0
      %940 = vmatprep.mubr.bf16.mxu0 %v754
      %941 = vmatmul.mubr.bf16.gmra.mrb[0].mxu0 %v753
      %v942 = vpop.f32.mrb[0].mxu0
      %v943 = vadd.f32 %v794, %v942
      %v944 = vpop.f32.mrb[0].mxu0
      %v945 = vpop.f32.mrb[0].mxu0
      %v946 = vadd.f32 %v794, %v945
      %v947 = vpop.f32.mrb[0].mxu0
      %948 = vmatprep.mubr.bf16.mxu0 %v756
      %949 = vmatmul.mubr.bf16.gmra.mrb[0].mxu0 %v755
      %v950 = vpop.f32.mrb[0].mxu0
      %v951 = vadd.f32 %v794, %v950
      %v952 = vpop.f32.mrb[0].mxu0
      %v953 = vpop.f32.mrb[0].mxu0
      %v954 = vadd.f32 %v794, %v953
      %v955 = vpop.f32.mrb[0].mxu0
      %956 = vdwg.mxu0
      %v965 = vrot.slane %v927, 7
      %v966 = vrot.slane %v930, 7
      %v967 = vrot.slane %v935, 7
      %v968 = vrot.slane %v938, 7
      %v969 = vrot.slane %v943, 7
      %v970 = vrot.slane %v946, 7
      %v971 = vrot.slane %v951, 7
      %v972 = vrot.slane %v954, 7
      %v981 = vsel %vm382, 0.0, %v965
      %v982 = vsel %vm382, 0.0, %v966
      %v983 = vsel %vm382, 0.0, %v967
      %v984 = vsel %vm382, 0.0, %v968
      %v985 = vsel %vm382, 0.0, %v969
      %v986 = vsel %vm382, 0.0, %v970
      %v987 = vsel %vm382, 0.0, %v971
      %v988 = vsel %vm382, 0.0, %v972
      %v989 = vsel %vm382, %v965, 0.0
      %v990 = vsel %vm382, %v966, 0.0
      %v991 = vsel %vm382, %v967, 0.0
      %v992 = vsel %vm382, %v968, 0.0
      %v993 = vsel %vm382, %v969, 0.0
      %v994 = vsel %vm382, %v970, 0.0
      %v995 = vsel %vm382, %v971, 0.0
      %v996 = vsel %vm382, %v972, 0.0
      %v997 = vpack.c.bf16 %v981, %v383
      %v998 = vpack.c.bf16 %v983, %v982
      %v999 = vpack.c.bf16 %v985, %v984
      %v1000 = vpack.c.bf16 %v987, %v986
      %v1015 = vrot.slane %v981, 1
      %v1016 = vrot.slane %v989, 1
      %v1017 = vsel %vm417, %v1015, %v1016
      %v1018 = vrot.slane %v982, 1
      %v1019 = vrot.slane %v990, 1
      %v1020 = vsel %vm417, %v1018, %v1019
      %v1021 = vrot.slane %v983, 1
      %v1022 = vrot.slane %v991, 1
      %v1023 = vsel %vm417, %v1021, %v1022
      %v1024 = vrot.slane %v984, 1
      %v1025 = vrot.slane %v992, 1
      %v1026 = vsel %vm417, %v1024, %v1025
      %v1027 = vrot.slane %v985, 1
      %v1028 = vrot.slane %v993, 1
      %v1029 = vsel %vm417, %v1027, %v1028
      %v1030 = vrot.slane %v986, 1
      %v1031 = vrot.slane %v994, 1
      %v1032 = vsel %vm417, %v1030, %v1031
      %v1033 = vrot.slane %v987, 1
      %v1034 = vrot.slane %v995, 1
      %v1035 = vsel %vm417, %v1033, %v1034
      %v1043 = vpack.c.bf16 %v1017, %v420
      %v1044 = vpack.c.bf16 %v1023, %v1020
      %v1045 = vpack.c.bf16 %v1029, %v1026
      %v1046 = vpack.c.bf16 %v1035, %v1032
      %v1047 = vrot.slane %v981, 2
      %v1048 = vrot.slane %v989, 2
      %v1049 = vsel %vm458, %v1047, %v1048
      %v1050 = vrot.slane %v982, 2
      %v1051 = vrot.slane %v990, 2
      %v1052 = vsel %vm458, %v1050, %v1051
      %v1053 = vrot.slane %v983, 2
      %v1054 = vrot.slane %v991, 2
      %v1055 = vsel %vm458, %v1053, %v1054
      %v1056 = vrot.slane %v984, 2
      %v1057 = vrot.slane %v992, 2
      %v1058 = vsel %vm458, %v1056, %v1057
      %v1059 = vrot.slane %v985, 2
      %v1060 = vrot.slane %v993, 2
      %v1061 = vsel %vm458, %v1059, %v1060
      %v1062 = vrot.slane %v986, 2
      %v1063 = vrot.slane %v994, 2
      %v1064 = vsel %vm458, %v1062, %v1063
      %v1065 = vrot.slane %v987, 2
      %v1066 = vrot.slane %v995, 2
      %v1067 = vsel %vm458, %v1065, %v1066
      %v1075 = vpack.c.bf16 %v1049, %v461
      %v1076 = vpack.c.bf16 %v1055, %v1052
      %v1077 = vpack.c.bf16 %v1061, %v1058
      %v1078 = vpack.c.bf16 %v1067, %v1064
      %v1079 = vpack.c.bf16 %v982, %v981
      %v1080 = vpack.c.bf16 %v984, %v983
      %v1081 = vpack.c.bf16 %v986, %v985
      %v1082 = vpack.c.bf16 %v988, %v987
      %v1085 = vrot.slane %v988, 1
      %v1086 = vrot.slane %v996, 1
      %v1087 = vsel %vm417, %v1085, %v1086
      %v1089 = vpack.c.bf16 %v1020, %v1017
      %v1090 = vpack.c.bf16 %v1026, %v1023
      %v1091 = vpack.c.bf16 %v1032, %v1029
      %v1092 = vpack.c.bf16 %v1087, %v1035
      %v1093 = vrot.slane %v988, 2
      %v1094 = vrot.slane %v996, 2
      %v1095 = vsel %vm458, %v1093, %v1094
      %v1097 = vpack.c.bf16 %v1052, %v1049
      %v1098 = vpack.c.bf16 %v1058, %v1055
      %v1099 = vpack.c.bf16 %v1064, %v1061
      %v1100 = vpack.c.bf16 %v1095, %v1067
      %v1101 = vpack.c.bf16 %v383, %v988
      %v1102 = vpack.c.bf16 %v420, %v1087
      %v1103 = vpack.c.bf16 %v461, %v1095
      %1108 = vrot.lane.b32.xlu0 %v1043, 64
      %v1109 = vpop.permute.xlu0 %1108
      %1110 = vrot.lane.b32.xlu0 %v1044, 64
      %v1111 = vpop.permute.xlu0 %1110
      %1112 = vrot.lane.b32.xlu0 %v1045, 64
      %v1113 = vpop.permute.xlu0 %1112
      %1114 = vrot.lane.b32.xlu0 %v1046, 64
      %v1115 = vpop.permute.xlu0 %1114
      %1120 = vrot.lane.b32.xlu0 %v1079, 64
      %v1121 = vpop.permute.xlu0 %1120
      %1122 = vrot.lane.b32.xlu0 %v1080, 64
      %v1123 = vpop.permute.xlu0 %1122
      %1124 = vrot.lane.b32.xlu0 %v1081, 64
      %v1125 = vpop.permute.xlu0 %1124
      %1126 = vrot.lane.b32.xlu0 %v1082, 64
      %v1127 = vpop.permute.xlu0 %1126
      %1132 = vrot.lane.b32.xlu0 %v1097, 64
      %v1133 = vpop.permute.xlu0 %1132
      %1134 = vrot.lane.b32.xlu0 %v1098, 64
      %v1135 = vpop.permute.xlu0 %1134
      %1136 = vrot.lane.b32.xlu0 %v1099, 64
      %v1137 = vpop.permute.xlu0 %1136
      %1138 = vrot.lane.b32.xlu0 %v1100, 64
      %v1139 = vpop.permute.xlu0 %1138
      %1141 = vrot.lane.b32.xlu0 %v1102, 64
      %v1142 = vpop.permute.xlu0 %1141
      %v1145 = vsel %vm732, %v997, %v1109
      %v1149 = vsel %vm732, %v998, %v1111
      %v1153 = vsel %vm732, %v999, %v1113
      %v1157 = vsel %vm732, %v1000, %v1115
      %v1161 = vsel %vm732, %v1075, %v1121
      %v1165 = vsel %vm732, %v1076, %v1123
      %v1169 = vsel %vm732, %v1077, %v1125
      %v1173 = vsel %vm732, %v1078, %v1127
      %v1177 = vsel %vm732, %v1089, %v1133
      %v1181 = vsel %vm732, %v1090, %v1135
      %v1185 = vsel %vm732, %v1091, %v1137
      %v1189 = vsel %vm732, %v1092, %v1139
      %v1193 = vsel %vm732, %v1101, %v1142
      %v1195 = vld [vmem:[%s5] sm:$0xf]
      %v1196 = vld [vmem:[%s5 + $0x4] sm:$0xf]
      %v1197 = vld [vmem:[%s5 + $0x8] sm:$0xf]
      %v1198 = vld [vmem:[%s5 + $0xc] sm:$0xf]
      %v1199 = vld [vmem:[%s5 + $0x10] sm:$0xf]
      %v1200 = vld [vmem:[%s5 + $0x14] sm:$0xf]
      %v1201 = vld [vmem:[%s5 + $0x18] sm:$0xf]
      %v1202 = vld [vmem:[%s5 + $0x1c] sm:$0xf]
      %v1203 = vld [vmem:[%s5 + $0x20] sm:$0xf]
      %v1204 = vld [vmem:[%s5 + $0x24] sm:$0xf]
      %v1205 = vld [vmem:[%s5 + $0x28] sm:$0xf]
      %v1206 = vld [vmem:[%s5 + $0x2c] sm:$0xf]
      %v1207 = vld [vmem:[%s5 + $0x30] sm:$0xf]
      %v1208 = vld [vmem:[%s5 + $0x34] sm:$0xf]
      %v1209 = vld [vmem:[%s5 + $0x38] sm:$0xf]
      %v1210 = vld [vmem:[%s5 + $0x3c] sm:$0xf]
      %v1211 = vld [vmem:[%s5 + $0x40] sm:$0xf]
      %v1212 = vld [vmem:[%s5 + $0x44] sm:$0xf]
      %v1213 = vld [vmem:[%s5 + $0x48] sm:$0xf]
      %v1214 = vld [vmem:[%s5 + $0x4c] sm:$0xf]
      %v1215 = vld [vmem:[%s5 + $0x50] sm:$0xf]
      %v1216 = vld [vmem:[%s5 + $0x54] sm:$0xf]
      %v1217 = vld [vmem:[%s5 + $0x58] sm:$0xf]
      %v1218 = vld [vmem:[%s5 + $0x5c] sm:$0xf]
      %v1219 = vld [vmem:[%s5 + $0x60] sm:$0xf]
      %v1220 = vld [vmem:[%s5 + $0x64] sm:$0xf]
      %v1221 = vld [vmem:[%s5 + $0x68] sm:$0xf]
      %v1222 = vld [vmem:[%s5 + $0x6c] sm:$0xf]
      %v1223 = vld [vmem:[%s5 + $0x70] sm:$0xf]
      %v1224 = vld [vmem:[%s5 + $0x74] sm:$0xf]
      %v1225 = vld [vmem:[%s5 + $0x78] sm:$0xf]
      %v1226 = vld [vmem:[%s5 + $0x7c] sm:$0xf]
      %v1227 = vld [vmem:[%s5 + $0x80] sm:$0xf]
      %v1228 = vld [vmem:[%s5 + $0x84] sm:$0xf]
      %v1229 = vld [vmem:[%s5 + $0x88] sm:$0xf]
      %v1230 = vld [vmem:[%s5 + $0x8c] sm:$0xf]
      %v1231 = vld [vmem:[%s5 + $0x90] sm:$0xf]
      %v1232 = vld [vmem:[%s5 + $0x94] sm:$0xf]
      %v1233 = vld [vmem:[%s5 + $0x98] sm:$0xf]
      %v1234 = vld [vmem:[%s5 + $0x9c] sm:$0xf]
      %v1235 = vld [vmem:[%s5 + $0xa0] sm:$0xf]
      %v1236 = vld [vmem:[%s5 + $0xa4] sm:$0xf]
      %v1237 = vld [vmem:[%s5 + $0xa8] sm:$0xf]
      %v1238 = vld [vmem:[%s5 + $0xac] sm:$0xf]
      %v1239 = vld [vmem:[%s5 + $0xb0] sm:$0xf]
      %v1240 = vld [vmem:[%s5 + $0xb4] sm:$0xf]
      %v1241 = vld [vmem:[%s5 + $0xb8] sm:$0xf]
      %v1242 = vld [vmem:[%s5 + $0xbc] sm:$0xf]
      %v1243 = vld [vmem:[%s5 + $0xc0] sm:$0xf]
      %v1244 = vld [vmem:[%s5 + $0xc4] sm:$0xf]
      %v1245 = vld [vmem:[%s5 + $0xc8] sm:$0xf]
      %v1246 = vld [vmem:[%s5 + $0xcc] sm:$0xf]
      %v1247 = vld [vmem:[%s5 + $0xd0] sm:$0xf]
      %v1248 = vld [vmem:[%s5 + $0xd4] sm:$0xf]
      %v1249 = vld [vmem:[%s5 + $0xd8] sm:$0xf]
      %v1250 = vld [vmem:[%s5 + $0xdc] sm:$0xf]
      %v1251 = vld [vmem:[%s5 + $0xe0] sm:$0xf]
      %v1252 = vld [vmem:[%s5 + $0xe4] sm:$0xf]
      %v1253 = vld [vmem:[%s5 + $0xe8] sm:$0xf]
      %v1254 = vld [vmem:[%s5 + $0xec] sm:$0xf]
      %v1255 = vld [vmem:[%s5 + $0xf0] sm:$0xf]
      %v1256 = vld [vmem:[%s5 + $0xf4] sm:$0xf]
      %v1257 = vld [vmem:[%s5 + $0xf8] sm:$0xf]
      %v1258 = vld [vmem:[%s5 + $0xfc] sm:$0xf]
      %v1259 = vld [vmem:[%s5 + $0x100] sm:$0xf]
      %v1260 = vld [vmem:[%s5 + $0x104] sm:$0xf]
      %v1261 = vld [vmem:[%s5 + $0x108] sm:$0xf]
      %v1262 = vld [vmem:[%s5 + $0x10c] sm:$0xf]
      %v1263 = vld [vmem:[%s5 + $0x110] sm:$0xf]
      %v1264 = vld [vmem:[%s5 + $0x114] sm:$0xf]
      %v1265 = vld [vmem:[%s5 + $0x118] sm:$0xf]
      %v1266 = vld [vmem:[%s5 + $0x11c] sm:$0xf]
      %v1267 = vld [vmem:[%s6] sm:$0x1]
      %v1269 = vlaneseq
      %v1270 = vshrl.u32 %v1269, 7
      %v1271 = vsub.s32 0, %v1270
      %v1272 = vrot.slane %v1267, %v1271
      %v1346 = vunpack.c.l.b16 %v1195
      %v1347 = vunpack.c.l.b16 %v1196
      %v1348 = vunpack.c.l.b16 %v1197
      %v1349 = vunpack.c.l.b16 %v1198
      %v1350 = vunpack.c.l.b16 %v1199
      %v1351 = vunpack.c.l.b16 %v1200
      %v1352 = vunpack.c.l.b16 %v1201
      %v1353 = vunpack.c.l.b16 %v1202
      %v1354 = vunpack.c.l.b16 %v1203
      %v1355 = vunpack.c.l.b16 %v1204
      %v1356 = vunpack.c.l.b16 %v1205
      %v1357 = vunpack.c.l.b16 %v1206
      %v1358 = vunpack.c.l.b16 %v1207
      %v1359 = vunpack.c.l.b16 %v1208
      %v1360 = vunpack.c.l.b16 %v1209
      %v1361 = vunpack.c.l.b16 %v1210
      %v1362 = vunpack.c.l.b16 %v1211
      %v1363 = vunpack.c.l.b16 %v1212
      %v1364 = vunpack.c.l.b16 %v1213
      %v1365 = vunpack.c.l.b16 %v1214
      %v1366 = vunpack.c.l.b16 %v1215
      %v1367 = vunpack.c.l.b16 %v1216
      %v1368 = vunpack.c.l.b16 %v1217
      %v1369 = vunpack.c.l.b16 %v1218
      %v1370 = vunpack.c.l.b16 %v1219
      %v1371 = vunpack.c.l.b16 %v1220
      %v1372 = vunpack.c.l.b16 %v1221
      %v1373 = vunpack.c.l.b16 %v1222
      %v1374 = vunpack.c.l.b16 %v1223
      %v1375 = vunpack.c.l.b16 %v1224
      %v1376 = vunpack.c.l.b16 %v1225
      %v1377 = vunpack.c.l.b16 %v1226
      %v1378 = vunpack.c.l.b16 %v1227
      %v1379 = vunpack.c.l.b16 %v1228
      %v1380 = vunpack.c.l.b16 %v1229
      %v1381 = vunpack.c.l.b16 %v1230
      %v1382 = vunpack.c.l.b16 %v1231
      %v1383 = vunpack.c.l.b16 %v1232
      %v1384 = vunpack.c.l.b16 %v1233
      %v1385 = vunpack.c.l.b16 %v1234
      %v1386 = vunpack.c.l.b16 %v1235
      %v1387 = vunpack.c.l.b16 %v1236
      %v1388 = vunpack.c.l.b16 %v1237
      %v1389 = vunpack.c.l.b16 %v1238
      %v1390 = vunpack.c.l.b16 %v1239
      %v1391 = vunpack.c.l.b16 %v1240
      %v1392 = vunpack.c.l.b16 %v1241
      %v1393 = vunpack.c.l.b16 %v1242
      %v1394 = vunpack.c.l.b16 %v1243
      %v1395 = vunpack.c.l.b16 %v1244
      %v1396 = vunpack.c.l.b16 %v1245
      %v1397 = vunpack.c.l.b16 %v1246
      %v1398 = vunpack.c.l.b16 %v1247
      %v1399 = vunpack.c.l.b16 %v1248
      %v1400 = vunpack.c.l.b16 %v1249
      %v1401 = vunpack.c.l.b16 %v1250
      %v1402 = vunpack.c.l.b16 %v1251
      %v1403 = vunpack.c.l.b16 %v1252
      %v1404 = vunpack.c.l.b16 %v1253
      %v1405 = vunpack.c.l.b16 %v1254
      %v1406 = vunpack.c.l.b16 %v1255
      %v1407 = vunpack.c.l.b16 %v1256
      %v1408 = vunpack.c.l.b16 %v1257
      %v1409 = vunpack.c.l.b16 %v1258
      %v1410 = vunpack.c.l.b16 %v1259
      %v1411 = vunpack.c.l.b16 %v1260
      %v1412 = vunpack.c.l.b16 %v1261
      %v1413 = vunpack.c.l.b16 %v1262
      %v1414 = vunpack.c.l.b16 %v1263
      %v1415 = vunpack.c.l.b16 %v1264
      %v1416 = vunpack.c.l.b16 %v1265
      %v1417 = vunpack.c.l.b16 %v1266
      %v1418 = vpack.c.b16 %v1347, %v1346
      %v1419 = vpack.c.b16 %v1349, %v1348
      %v1420 = vpack.c.b16 %v1351, %v1350
      %v1421 = vpack.c.b16 %v1353, %v1352
      %v1422 = vpack.c.b16 %v1355, %v1354
      %v1423 = vpack.c.b16 %v1357, %v1356
      %v1424 = vpack.c.b16 %v1359, %v1358
      %v1425 = vpack.c.b16 %v1361, %v1360
      %v1426 = vpack.c.b16 %v1363, %v1362
      %v1427 = vpack.c.b16 %v1365, %v1364
      %v1428 = vpack.c.b16 %v1367, %v1366
      %v1429 = vpack.c.b16 %v1369, %v1368
      %v1430 = vpack.c.b16 %v1371, %v1370
      %v1431 = vpack.c.b16 %v1373, %v1372
      %v1432 = vpack.c.b16 %v1375, %v1374
      %v1433 = vpack.c.b16 %v1377, %v1376
      %v1434 = vpack.c.b16 %v1379, %v1378
      %v1435 = vpack.c.b16 %v1381, %v1380
      %v1436 = vpack.c.b16 %v1383, %v1382
      %v1437 = vpack.c.b16 %v1385, %v1384
      %v1438 = vpack.c.b16 %v1387, %v1386
      %v1439 = vpack.c.b16 %v1389, %v1388
      %v1440 = vpack.c.b16 %v1391, %v1390
      %v1441 = vpack.c.b16 %v1393, %v1392
      %v1442 = vpack.c.b16 %v1395, %v1394
      %v1443 = vpack.c.b16 %v1397, %v1396
      %v1444 = vpack.c.b16 %v1399, %v1398
      %v1445 = vpack.c.b16 %v1401, %v1400
      %v1446 = vpack.c.b16 %v1403, %v1402
      %v1447 = vpack.c.b16 %v1405, %v1404
      %v1448 = vpack.c.b16 %v1407, %v1406
      %v1449 = vpack.c.b16 %v1409, %v1408
      %v1450 = vpack.c.b16 %v1411, %v1410
      %v1451 = vpack.c.b16 %v1413, %v1412
      %v1452 = vpack.c.b16 %v1415, %v1414
      %v1453 = vpack.c.b16 %v1417, %v1416
      %v1490 = vsel %vm732, %v1076, 0
      %v1492 = vsel %vm732, %v1077, 0
      %v1494 = vsel %vm732, %v1078, 0
      %v1497 = vsel %vm732, %v1103, 0
      %1499 = vmatprep.subr.bf16.mxu0 0
      %1500 = vmatpush1.bf16.msra.mxu0 %v1418
      %1501 = vmatprep.subr.bf16.mxu0 0
      %1502 = vmatpush1.bf16.msra.mxu0 %v1419
      %1503 = vmatprep.subr.bf16.mxu0 0
      %1504 = vmatpush1.bf16.msra.mxu0 %v1420
      %1505 = vmatprep.subr.bf16.mxu0 0
      %1506 = vmatpush1.bf16.msra.mxu0 %v1421
      %1507 = vmatprep.subr.bf16.mxu0 0
      %1508 = vmatpush1.bf16.msra.mxu0 %v1422
      %1509 = vmatprep.subr.bf16.mxu0 0
      %1510 = vmatpush1.bf16.msra.mxu0 %v1423
      %1511 = vmatprep.subr.bf16.mxu0 0
      %1512 = vmatpush1.bf16.msra.mxu0 %v1424
      %1513 = vmatprep.subr.bf16.mxu0 0
      %1514 = vmatpush1.bf16.msra.mxu0 %v1425
      %1515 = vmatprep.subr.bf16.mxu0 0
      %1516 = vmatpush1.bf16.msra.mxu0 %v1426
      %1517 = vmatprep.subr.bf16.mxu0 0
      %1518 = vmatpush1.bf16.msra.mxu0 %v1427
      %1519 = vmatprep.subr.bf16.mxu0 0
      %1520 = vmatpush1.bf16.msra.mxu0 %v1428
      %1521 = vmatprep.subr.bf16.mxu0 0
      %1522 = vmatpush1.bf16.msra.mxu0 %v1429
      %1523 = vmatprep.subr.bf16.mxu0 0
      %1524 = vmatpush1.bf16.msra.mxu0 %v1430
      %1525 = vmatprep.subr.bf16.mxu0 0
      %1526 = vmatpush1.bf16.msra.mxu0 %v1431
      %1527 = vmatprep.subr.bf16.mxu0 0
      %1528 = vmatpush1.bf16.msra.mxu0 %v1432
      %1529 = vmatprep.subr.bf16.mxu0 0
      %1530 = vmatpush1.bf16.msra.mxu0 %v1433
      %1531 = vmatprep.mubr.bf16.mxu0 %v1161
      %1532 = vmatmul.mubr.bf16.gmra.mrb[0].mxu0 %v1145
      %v1533 = vpop.f32.mrb[0].mxu0
      %v1534 = vadd.f32 %v1272, %v1533
      %v1535 = vpop.f32.mrb[0].mxu0
      %v1536 = vpop.f32.mrb[0].mxu0
      %v1537 = vadd.f32 %v1272, %v1536
      %v1538 = vpop.f32.mrb[0].mxu0
      %1539 = vmatprep.mubr.bf16.mxu0 %v1165
      %1540 = vmatmul.mubr.bf16.gmra.mrb[0].mxu0 %v1149
      %v1541 = vpop.f32.mrb[0].mxu0
      %v1542 = vadd.f32 %v1272, %v1541
      %v1543 = vpop.f32.mrb[0].mxu0
      %v1544 = vpop.f32.mrb[0].mxu0
      %v1545 = vadd.f32 %v1272, %v1544
      %v1546 = vpop.f32.mrb[0].mxu0
      %1547 = vmatprep.mubr.bf16.mxu0 %v1169
      %1548 = vmatmul.mubr.bf16.gmra.mrb[0].mxu0 %v1153
      %v1549 = vpop.f32.mrb[0].mxu0
      %v1550 = vadd.f32 %v1272, %v1549
      %v1551 = vpop.f32.mrb[0].mxu0
      %v1552 = vpop.f32.mrb[0].mxu0
      %v1553 = vadd.f32 %v1272, %v1552
      %v1554 = vpop.f32.mrb[0].mxu0
      %1555 = vmatprep.mubr.bf16.mxu0 %v1173
      %1556 = vmatmul.mubr.bf16.gmra.mrb[0].mxu0 %v1157
      %v1557 = vpop.f32.mrb[0].mxu0
      %v1558 = vadd.f32 %v1272, %v1557
      %v1559 = vpop.f32.mrb[0].mxu0
      %v1560 = vpop.f32.mrb[0].mxu0
      %v1561 = vadd.f32 %v1272, %v1560
      %v1562 = vpop.f32.mrb[0].mxu0
      %1563 = vdwg.mxu0
      %1564 = vmatprep.subr.bf16.mxu0 0
      %1565 = vmatpush1.bf16.msra.mxu0 %v1434
      %1566 = vmatprep.subr.bf16.mxu0 0
      %1567 = vmatpush1.bf16.msra.mxu0 %v1435
      %1568 = vmatprep.subr.bf16.mxu0 0
      %1569 = vmatpush1.bf16.msra.mxu0 %v1436
      %1570 = vmatprep.subr.bf16.mxu0 0
      %1571 = vmatpush1.bf16.msra.mxu0 %v1437
      %1572 = vmatprep.subr.bf16.mxu0 0
      %1573 = vmatpush1.bf16.msra.mxu0 %v1438
      %1574 = vmatprep.subr.bf16.mxu0 0
      %1575 = vmatpush1.bf16.msra.mxu0 %v1439
      %1576 = vmatprep.subr.bf16.mxu0 0
      %1577 = vmatpush1.bf16.msra.mxu0 %v1440
      %1578 = vmatprep.subr.bf16.mxu0 0
      %1579 = vmatpush1.bf16.msra.mxu0 %v1441
      %1580 = vmatprep.subr.bf16.mxu0 0
      %1581 = vmatpush1.bf16.msra.mxu0 %v1442
      %1582 = vmatprep.subr.bf16.mxu0 0
      %1583 = vmatpush1.bf16.msra.mxu0 %v1443
      %1584 = vmatprep.subr.bf16.mxu0 0
      %1585 = vmatpush1.bf16.msra.mxu0 %v1444
      %1586 = vmatprep.subr.bf16.mxu0 0
      %1587 = vmatpush1.bf16.msra.mxu0 %v1445
      %1588 = vmatprep.subr.bf16.mxu0 0
      %1589 = vmatpush1.bf16.msra.mxu0 %v1446
      %1590 = vmatprep.subr.bf16.mxu0 0
      %1591 = vmatpush1.bf16.msra.mxu0 %v1447
      %1592 = vmatprep.subr.bf16.mxu0 0
      %1593 = vmatpush1.bf16.msra.mxu0 %v1448
      %1594 = vmatprep.subr.bf16.mxu0 0
      %1595 = vmatpush1.bf16.msra.mxu0 %v1449
      %1596 = vmatprep.mubr.bf16.mxu0 %v1149
      %1597 = vmatmul.mubr.bf16.gmra.mrb[0].mxu0 %v1177
      %v1598 = vpop.f32.mrb[0].mxu0
      %v1599 = vadd.f32 %v1534, %v1598
      %v1600 = vpop.f32.mrb[0].mxu0
      %v1601 = vpop.f32.mrb[0].mxu0
      %v1602 = vadd.f32 %v1537, %v1601
      %v1603 = vpop.f32.mrb[0].mxu0
      %1604 = vmatprep.mubr.bf16.mxu0 %v1153
      %1605 = vmatmul.mubr.bf16.gmra.mrb[0].mxu0 %v1181
      %v1606 = vpop.f32.mrb[0].mxu0
      %v1607 = vadd.f32 %v1542, %v1606
      %v1608 = vpop.f32.mrb[0].mxu0
      %v1609 = vpop.f32.mrb[0].mxu0
      %v1610 = vadd.f32 %v1545, %v1609
      %v1611 = vpop.f32.mrb[0].mxu0
      %1612 = vmatprep.mubr.bf16.mxu0 %v1157
      %1613 = vmatmul.mubr.bf16.gmra.mrb[0].mxu0 %v1185
      %v1614 = vpop.f32.mrb[0].mxu0
      %v1615 = vadd.f32 %v1550, %v1614
      %v1616 = vpop.f32.mrb[0].mxu0
      %v1617 = vpop.f32.mrb[0].mxu0
      %v1618 = vadd.f32 %v1553, %v1617
      %v1619 = vpop.f32.mrb[0].mxu0
      %1620 = vmatprep.mubr.bf16.mxu0 %v1193
      %1621 = vmatmul.mubr.bf16.gmra.mrb[0].mxu0 %v1189
      %v1622 = vpop.f32.mrb[0].mxu0
      %v1623 = vadd.f32 %v1558, %v1622
      %v1624 = vpop.f32.mrb[0].mxu0
      %v1625 = vpop.f32.mrb[0].mxu0
      %v1626 = vadd.f32 %v1561, %v1625
      %v1627 = vpop.f32.mrb[0].mxu0
      %1628 = vdwg.mxu0
      %1629 = vmatprep.subr.bf16.mxu0 0
      %1630 = vmatpush1.bf16.msra.mxu0 %v1450
      %1631 = vmatprep.subr.bf16.mxu0 0
      %1632 = vmatpush1.bf16.msra.mxu0 %v1451
      %1633 = vmatprep.subr.bf16.mxu0 0
      %1634 = vmatpush1.bf16.msra.mxu0 %v1452
      %1635 = vmatprep.subr.bf16.mxu0 0
      %1636 = vmatpush1.bf16.msra.mxu0 %v1453
      %1637 = vmatprep.subr.bf16.mxu0 0
      %1638 = vmatpush1.bf16.msra.mxu0 0
      %1639 = vmatprep.subr.bf16.mxu0 0
      %1640 = vmatpush1.bf16.msra.mxu0 0
      %1641 = vmatprep.subr.bf16.mxu0 0
      %1642 = vmatpush1.bf16.msra.mxu0 0
      %1643 = vmatprep.subr.bf16.mxu0 0
      %1644 = vmatpush1.bf16.msra.mxu0 0
      %1645 = vmatprep.subr.bf16.mxu0 0
      %1646 = vmatpush1.bf16.msra.mxu0 0
      %1647 = vmatprep.subr.bf16.mxu0 0
      %1648 = vmatpush1.bf16.msra.mxu0 0
      %1649 = vmatprep.subr.bf16.mxu0 0
      %1650 = vmatpush1.bf16.msra.mxu0 0
      %1651 = vmatprep.subr.bf16.mxu0 0
      %1652 = vmatpush1.bf16.msra.mxu0 0
      %1653 = vmatprep.subr.bf16.mxu0 0
      %1654 = vmatpush1.bf16.msra.mxu0 0
      %1655 = vmatprep.subr.bf16.mxu0 0
      %1656 = vmatpush1.bf16.msra.mxu0 0
      %1657 = vmatprep.subr.bf16.mxu0 0
      %1658 = vmatpush1.bf16.msra.mxu0 0
      %1659 = vmatprep.subr.bf16.mxu0 0
      %1660 = vmatpush1.bf16.msra.mxu0 0
      %1661 = vmatprep.mubr.bf16.mxu0 0
      %1662 = vmatmul.mubr.bf16.gmra.mrb[0].mxu0 %v1490
      %v1663 = vpop.f32.mrb[0].mxu0
      %v1664 = vadd.f32 %v1599, %v1663
      %v1665 = vpop.f32.mrb[0].mxu0
      %v1666 = vpop.f32.mrb[0].mxu0
      %v1667 = vadd.f32 %v1602, %v1666
      %v1668 = vpop.f32.mrb[0].mxu0
      %1669 = vmatprep.mubr.bf16.mxu0 0
      %1670 = vmatmul.mubr.bf16.gmra.mrb[0].mxu0 %v1492
      %v1671 = vpop.f32.mrb[0].mxu0
      %v1672 = vadd.f32 %v1607, %v1671
      %v1673 = vpop.f32.mrb[0].mxu0
      %v1674 = vpop.f32.mrb[0].mxu0
      %v1675 = vadd.f32 %v1610, %v1674
      %v1676 = vpop.f32.mrb[0].mxu0
      %1677 = vmatprep.mubr.bf16.mxu0 0
      %1678 = vmatmul.mubr.bf16.gmra.mrb[0].mxu0 %v1494
      %v1679 = vpop.f32.mrb[0].mxu0
      %v1680 = vadd.f32 %v1615, %v1679
      %v1681 = vpop.f32.mrb[0].mxu0
      %v1682 = vpop.f32.mrb[0].mxu0
      %v1683 = vadd.f32 %v1618, %v1682
      %v1684 = vpop.f32.mrb[0].mxu0
      %1685 = vmatprep.mubr.bf16.mxu0 0
      %1686 = vmatmul.mubr.bf16.gmra.mrb[0].mxu0 %v1497
      %v1687 = vpop.f32.mrb[0].mxu0
      %v1688 = vadd.f32 %v1623, %v1687
      %v1689 = vpop.f32.mrb[0].mxu0
      %v1690 = vpop.f32.mrb[0].mxu0
      %v1691 = vadd.f32 %v1626, %v1690
      %v1692 = vpop.f32.mrb[0].mxu0
      %1693 = vdwg.mxu0
      %v1702 = vrot.slane %v1664, 1
      %v1703 = vrot.slane %v1667, 1
      %v1704 = vrot.slane %v1672, 1
      %v1705 = vrot.slane %v1675, 1
      %v1706 = vrot.slane %v1680, 1
      %v1707 = vrot.slane %v1683, 1
      %v1708 = vrot.slane %v1688, 1
      %v1709 = vrot.slane %v1691, 1
      %v1718 = vadd.f32 %v1664, %v1702
      %v1719 = vadd.f32 %v1667, %v1703
      %v1720 = vadd.f32 %v1672, %v1704
      %v1721 = vadd.f32 %v1675, %v1705
      %v1722 = vadd.f32 %v1680, %v1706
      %v1723 = vadd.f32 %v1683, %v1707
      %v1724 = vadd.f32 %v1688, %v1708
      %v1725 = vadd.f32 %v1691, %v1709
      %v1726 = vmul.f32 %v1718, 0.5
      %v1727 = vmul.f32 %v1719, 0.5
      %v1728 = vmul.f32 %v1720, 0.5
      %v1729 = vmul.f32 %v1721, 0.5
      %v1730 = vmul.f32 %v1722, 0.5
      %v1731 = vmul.f32 %v1723, 0.5
      %v1732 = vmul.f32 %v1724, 0.5
      %v1733 = vmul.f32 %v1725, 0.5
      %1734 = vrot.lane.b32.xlu0 %v1664, 64
      %v1735 = vpop.permute.xlu0 %1734
      %1736 = vrot.lane.b32.xlu0 %v1667, 64
      %v1737 = vpop.permute.xlu0 %1736
      %1738 = vrot.lane.b32.xlu0 %v1672, 64
      %v1739 = vpop.permute.xlu0 %1738
      %1740 = vrot.lane.b32.xlu0 %v1675, 64
      %v1741 = vpop.permute.xlu0 %1740
      %1742 = vrot.lane.b32.xlu0 %v1680, 64
      %v1743 = vpop.permute.xlu0 %1742
      %1744 = vrot.lane.b32.xlu0 %v1683, 64
      %v1745 = vpop.permute.xlu0 %1744
      %1746 = vrot.lane.b32.xlu0 %v1688, 64
      %v1747 = vpop.permute.xlu0 %1746
      %1748 = vrot.lane.b32.xlu0 %v1691, 64
      %v1749 = vpop.permute.xlu0 %1748
      %1758 = vrot.lane.b32.xlu0 %v1702, 64
      %v1759 = vpop.permute.xlu0 %1758
      %1760 = vrot.lane.b32.xlu0 %v1703, 64
      %v1761 = vpop.permute.xlu0 %1760
      %1762 = vrot.lane.b32.xlu0 %v1704, 64
      %v1763 = vpop.permute.xlu0 %1762
      %1764 = vrot.lane.b32.xlu0 %v1705, 64
      %v1765 = vpop.permute.xlu0 %1764
      %1766 = vrot.lane.b32.xlu0 %v1706, 64
      %v1767 = vpop.permute.xlu0 %1766
      %1768 = vrot.lane.b32.xlu0 %v1707, 64
      %v1769 = vpop.permute.xlu0 %1768
      %1770 = vrot.lane.b32.xlu0 %v1708, 64
      %v1771 = vpop.permute.xlu0 %1770
      %1772 = vrot.lane.b32.xlu0 %v1709, 64
      %v1773 = vpop.permute.xlu0 %1772
      %v1790 = vrot.slane %v1726, 1
      %v1791 = vrot.slane %v1727, 1
      %v1792 = vrot.slane %v1728, 1
      %v1793 = vrot.slane %v1729, 1
      %v1794 = vrot.slane %v1730, 1
      %v1795 = vrot.slane %v1731, 1
      %v1796 = vrot.slane %v1732, 1
      %v1797 = vrot.slane %v1733, 1
      %v1806 = vrot.slane %v1664, 2
      %v1807 = vrot.slane %v1667, 2
      %v1808 = vrot.slane %v1672, 2
      %v1809 = vrot.slane %v1675, 2
      %v1810 = vrot.slane %v1680, 2
      %v1811 = vrot.slane %v1683, 2
      %v1812 = vrot.slane %v1688, 2
      %v1813 = vrot.slane %v1691, 2
      %1814 = vrot.lane.b32.xlu0 %v1806, 64
      %v1815 = vpop.permute.xlu0 %1814
      %1816 = vrot.lane.b32.xlu0 %v1807, 64
      %v1817 = vpop.permute.xlu0 %1816
      %1818 = vrot.lane.b32.xlu0 %v1808, 64
      %v1819 = vpop.permute.xlu0 %1818
      %1820 = vrot.lane.b32.xlu0 %v1809, 64
      %v1821 = vpop.permute.xlu0 %1820
      %1822 = vrot.lane.b32.xlu0 %v1810, 64
      %v1823 = vpop.permute.xlu0 %1822
      %1824 = vrot.lane.b32.xlu0 %v1811, 64
      %v1825 = vpop.permute.xlu0 %1824
      %1826 = vrot.lane.b32.xlu0 %v1812, 64
      %v1827 = vpop.permute.xlu0 %1826
      %1828 = vrot.lane.b32.xlu0 %v1813, 64
      %v1829 = vpop.permute.xlu0 %1828
      %v1846 = vrot.slane %v1726, 2
      %v1847 = vrot.slane %v1727, 2
      %v1848 = vrot.slane %v1728, 2
      %v1849 = vrot.slane %v1729, 2
      %v1850 = vrot.slane %v1730, 2
      %v1851 = vrot.slane %v1731, 2
      %v1852 = vrot.slane %v1732, 2
      %v1853 = vrot.slane %v1733, 2
      %v1862 = vrot.slane %v1664, 3
      %v1863 = vrot.slane %v1667, 3
      %v1864 = vrot.slane %v1672, 3
      %v1865 = vrot.slane %v1675, 3
      %v1866 = vrot.slane %v1680, 3
      %v1867 = vrot.slane %v1683, 3
      %v1868 = vrot.slane %v1688, 3
      %v1869 = vrot.slane %v1691, 3
      %1870 = vrot.lane.b32.xlu0 %v1862, 64
      %v1871 = vpop.permute.xlu0 %1870
      %1872 = vrot.lane.b32.xlu0 %v1863, 64
      %v1873 = vpop.permute.xlu0 %1872
      %1874 = vrot.lane.b32.xlu0 %v1864, 64
      %v1875 = vpop.permute.xlu0 %1874
      %1876 = vrot.lane.b32.xlu0 %v1865, 64
      %v1877 = vpop.permute.xlu0 %1876
      %1878 = vrot.lane.b32.xlu0 %v1866, 64
      %v1879 = vpop.permute.xlu0 %1878
      %1880 = vrot.lane.b32.xlu0 %v1867, 64
      %v1881 = vpop.permute.xlu0 %1880
      %1882 = vrot.lane.b32.xlu0 %v1868, 64
      %v1883 = vpop.permute.xlu0 %1882
      %1884 = vrot.lane.b32.xlu0 %v1869, 64
      %v1885 = vpop.permute.xlu0 %1884
      %v1902 = vsel %vm732, %v1664, %v1735
      %v1903 = vsel %vm732, %v1667, %v1737
      %v1904 = vsel %vm732, %v1672, %v1739
      %v1905 = vsel %vm732, %v1675, %v1741
      %v1906 = vsel %vm732, %v1680, %v1743
      %v1907 = vsel %vm732, %v1683, %v1745
      %v1908 = vsel %vm732, %v1688, %v1747
      %v1909 = vsel %vm732, %v1691, %v1749
      %v1910 = vsel %vm732, %v1726, %v1759
      %v1911 = vsel %vm732, %v1727, %v1761
      %v1912 = vsel %vm732, %v1728, %v1763
      %v1913 = vsel %vm732, %v1729, %v1765
      %v1914 = vsel %vm732, %v1730, %v1767
      %v1915 = vsel %vm732, %v1731, %v1769
      %v1916 = vsel %vm732, %v1732, %v1771
      %v1917 = vsel %vm732, %v1733, %v1773
      %v1918 = vsel %vm732, %v1702, %v1759
      %v1919 = vsel %vm732, %v1703, %v1761
      %v1920 = vsel %vm732, %v1704, %v1763
      %v1921 = vsel %vm732, %v1705, %v1765
      %v1922 = vsel %vm732, %v1706, %v1767
      %v1923 = vsel %vm732, %v1707, %v1769
      %v1924 = vsel %vm732, %v1708, %v1771
      %v1925 = vsel %vm732, %v1709, %v1773
      %v1926 = vsel %vm732, %v1790, %v1815
      %v1927 = vsel %vm732, %v1791, %v1817
      %v1928 = vsel %vm732, %v1792, %v1819
      %v1929 = vsel %vm732, %v1793, %v1821
      %v1930 = vsel %vm732, %v1794, %v1823
      %v1931 = vsel %vm732, %v1795, %v1825
      %v1932 = vsel %vm732, %v1796, %v1827
      %v1933 = vsel %vm732, %v1797, %v1829
      %v1934 = vsel %vm732, %v1806, %v1815
      %v1935 = vsel %vm732, %v1807, %v1817
      %v1936 = vsel %vm732, %v1808, %v1819
      %v1937 = vsel %vm732, %v1809, %v1821
      %v1938 = vsel %vm732, %v1810, %v1823
      %v1939 = vsel %vm732, %v1811, %v1825
      %v1940 = vsel %vm732, %v1812, %v1827
      %v1941 = vsel %vm732, %v1813, %v1829
      %v1942 = vsel %vm732, %v1846, %v1871
      %v1943 = vsel %vm732, %v1847, %v1873
      %v1944 = vsel %vm732, %v1848, %v1875
      %v1945 = vsel %vm732, %v1849, %v1877
      %v1946 = vsel %vm732, %v1850, %v1879
      %v1947 = vsel %vm732, %v1851, %v1881
      %v1948 = vsel %vm732, %v1852, %v1883
      %v1949 = vsel %vm732, %v1853, %v1885
      %v1950 = vsel %vm732, %v1862, %v1871
      %v1951 = vsel %vm732, %v1863, %v1873
      %v1952 = vsel %vm732, %v1864, %v1875
      %v1953 = vsel %vm732, %v1865, %v1877
      %v1954 = vsel %vm732, %v1866, %v1879
      %v1955 = vsel %vm732, %v1867, %v1881
      %v1956 = vsel %vm732, %v1868, %v1883
      %v1957 = vsel %vm732, %v1869, %v1885
      %1958 = vrot.lane.b32.xlu0 %v1790, 64
      %v1959 = vpop.permute.xlu0 %1958
      %1960 = vrot.lane.b32.xlu0 %v1791, 64
      %v1961 = vpop.permute.xlu0 %1960
      %1962 = vrot.lane.b32.xlu0 %v1792, 64
      %v1963 = vpop.permute.xlu0 %1962
      %1964 = vrot.lane.b32.xlu0 %v1793, 64
      %v1965 = vpop.permute.xlu0 %1964
      %1966 = vrot.lane.b32.xlu0 %v1794, 64
      %v1967 = vpop.permute.xlu0 %1966
      %1968 = vrot.lane.b32.xlu0 %v1795, 64
      %v1969 = vpop.permute.xlu0 %1968
      %1970 = vrot.lane.b32.xlu0 %v1796, 64
      %v1971 = vpop.permute.xlu0 %1970
      %1972 = vrot.lane.b32.xlu0 %v1797, 64
      %v1973 = vpop.permute.xlu0 %1972
      %1982 = vrot.lane.b32.xlu0 %v1846, 64
      %v1983 = vpop.permute.xlu0 %1982
      %1984 = vrot.lane.b32.xlu0 %v1847, 64
      %v1985 = vpop.permute.xlu0 %1984
      %1986 = vrot.lane.b32.xlu0 %v1848, 64
      %v1987 = vpop.permute.xlu0 %1986
      %1988 = vrot.lane.b32.xlu0 %v1849, 64
      %v1989 = vpop.permute.xlu0 %1988
      %1990 = vrot.lane.b32.xlu0 %v1850, 64
      %v1991 = vpop.permute.xlu0 %1990
      %1992 = vrot.lane.b32.xlu0 %v1851, 64
      %v1993 = vpop.permute.xlu0 %1992
      %1994 = vrot.lane.b32.xlu0 %v1852, 64
      %v1995 = vpop.permute.xlu0 %1994
      %1996 = vrot.lane.b32.xlu0 %v1853, 64
      %v1997 = vpop.permute.xlu0 %1996
      %v2006 = vrot.slane %v1726, 3
      %v2007 = vrot.slane %v1727, 3
      %v2008 = vrot.slane %v1728, 3
      %v2009 = vrot.slane %v1729, 3
      %v2010 = vrot.slane %v1730, 3
      %v2011 = vrot.slane %v1731, 3
      %v2012 = vrot.slane %v1732, 3
      %v2013 = vrot.slane %v1733, 3
      %2014 = vrot.lane.b32.xlu0 %v2006, 64
      %v2015 = vpop.permute.xlu0 %2014
      %2016 = vrot.lane.b32.xlu0 %v2007, 64
      %v2017 = vpop.permute.xlu0 %2016
      %2018 = vrot.lane.b32.xlu0 %v2008, 64
      %v2019 = vpop.permute.xlu0 %2018
      %2020 = vrot.lane.b32.xlu0 %v2009, 64
      %v2021 = vpop.permute.xlu0 %2020
      %2022 = vrot.lane.b32.xlu0 %v2010, 64
      %v2023 = vpop.permute.xlu0 %2022
      %2024 = vrot.lane.b32.xlu0 %v2011, 64
      %v2025 = vpop.permute.xlu0 %2024
      %2026 = vrot.lane.b32.xlu0 %v2012, 64
      %v2027 = vpop.permute.xlu0 %2026
      %2028 = vrot.lane.b32.xlu0 %v2013, 64
      %v2029 = vpop.permute.xlu0 %2028
      %v2038 = vrot.slane %v1664, 4
      %v2039 = vrot.slane %v1667, 4
      %v2040 = vrot.slane %v1672, 4
      %v2041 = vrot.slane %v1675, 4
      %v2042 = vrot.slane %v1680, 4
      %v2043 = vrot.slane %v1683, 4
      %v2044 = vrot.slane %v1688, 4
      %v2045 = vrot.slane %v1691, 4
      %2054 = vrot.lane.b32.xlu0 %v2038, 64
      %v2055 = vpop.permute.xlu0 %2054
      %2056 = vrot.lane.b32.xlu0 %v2039, 64
      %v2057 = vpop.permute.xlu0 %2056
      %2058 = vrot.lane.b32.xlu0 %v2040, 64
      %v2059 = vpop.permute.xlu0 %2058
      %2060 = vrot.lane.b32.xlu0 %v2041, 64
      %v2061 = vpop.permute.xlu0 %2060
      %2062 = vrot.lane.b32.xlu0 %v2042, 64
      %v2063 = vpop.permute.xlu0 %2062
      %2064 = vrot.lane.b32.xlu0 %v2043, 64
      %v2065 = vpop.permute.xlu0 %2064
      %2066 = vrot.lane.b32.xlu0 %v2044, 64
      %v2067 = vpop.permute.xlu0 %2066
      %2068 = vrot.lane.b32.xlu0 %v2045, 64
      %v2069 = vpop.permute.xlu0 %2068
      %v2078 = vsel %vm732, %v1664, %v1759
      %v2079 = vsel %vm732, %v1667, %v1761
      %v2080 = vsel %vm732, %v1672, %v1763
      %v2081 = vsel %vm732, %v1675, %v1765
      %v2082 = vsel %vm732, %v1680, %v1767
      %v2083 = vsel %vm732, %v1683, %v1769
      %v2084 = vsel %vm732, %v1688, %v1771
      %v2085 = vsel %vm732, %v1691, %v1773
      %v2086 = vsel %vm732, %v1702, %v1959
      %v2087 = vsel %vm732, %v1703, %v1961
      %v2088 = vsel %vm732, %v1704, %v1963
      %v2089 = vsel %vm732, %v1705, %v1965
      %v2090 = vsel %vm732, %v1706, %v1967
      %v2091 = vsel %vm732, %v1707, %v1969
      %v2092 = vsel %vm732, %v1708, %v1971
      %v2093 = vsel %vm732, %v1709, %v1973
      %v2094 = vsel %vm732, %v1806, %v1983
      %v2095 = vsel %vm732, %v1807, %v1985
      %v2096 = vsel %vm732, %v1808, %v1987
      %v2097 = vsel %vm732, %v1809, %v1989
      %v2098 = vsel %vm732, %v1810, %v1991
      %v2099 = vsel %vm732, %v1811, %v1993
      %v2100 = vsel %vm732, %v1812, %v1995
      %v2101 = vsel %vm732, %v1813, %v1997
      %v2102 = vsel %vm732, %v1862, %v2015
      %v2103 = vsel %vm732, %v1863, %v2017
      %v2104 = vsel %vm732, %v1864, %v2019
      %v2105 = vsel %vm732, %v1865, %v2021
      %v2106 = vsel %vm732, %v1866, %v2023
      %v2107 = vsel %vm732, %v1867, %v2025
      %v2108 = vsel %vm732, %v1868, %v2027
      %v2109 = vsel %vm732, %v1869, %v2029
      %v2110 = vsel %vm732, %v2038, %v2055
      %v2111 = vsel %vm732, %v2039, %v2057
      %v2112 = vsel %vm732, %v2040, %v2059
      %v2113 = vsel %vm732, %v2041, %v2061
      %v2114 = vsel %vm732, %v2042, %v2063
      %v2115 = vsel %vm732, %v2043, %v2065
      %v2116 = vsel %vm732, %v2044, %v2067
      %v2117 = vsel %vm732, %v2045, %v2069
      %v2182 = vrot.slane %v2078, 3
      %v2183 = vrot.slane %v1918, 3
      %v2184 = vrot.slane %v2086, 3
      %v2185 = vrot.slane %v1934, 3
      %v2186 = vrot.slane %v2094, 3
      %v2187 = vrot.slane %v1950, 3
      %v2188 = vrot.slane %v2102, 3
      %v2189 = vrot.slane %v2110, 3
      %v2190 = vrot.slane %v2079, 3
      %v2191 = vrot.slane %v1919, 3
      %v2192 = vrot.slane %v2087, 3
      %v2193 = vrot.slane %v1935, 3
      %v2194 = vrot.slane %v2095, 3
      %v2195 = vrot.slane %v1951, 3
      %v2196 = vrot.slane %v2103, 3
      %v2197 = vrot.slane %v2111, 3
      %v2198 = vrot.slane %v2080, 3
      %v2199 = vrot.slane %v1920, 3
      %v2200 = vrot.slane %v2088, 3
      %v2201 = vrot.slane %v1936, 3
      %v2202 = vrot.slane %v2096, 3
      %v2203 = vrot.slane %v1952, 3
      %v2204 = vrot.slane %v2104, 3
      %v2205 = vrot.slane %v2112, 3
      %v2206 = vrot.slane %v2081, 3
      %v2207 = vrot.slane %v1921, 3
      %v2208 = vrot.slane %v2089, 3
      %v2209 = vrot.slane %v1937, 3
      %v2210 = vrot.slane %v2097, 3
      %v2211 = vrot.slane %v1953, 3
      %v2212 = vrot.slane %v2105, 3
      %v2213 = vrot.slane %v2113, 3
      %v2214 = vrot.slane %v2082, 3
      %v2215 = vrot.slane %v1922, 3
      %v2216 = vrot.slane %v2090, 3
      %v2217 = vrot.slane %v1938, 3
      %v2218 = vrot.slane %v2098, 3
      %v2219 = vrot.slane %v1954, 3
      %v2220 = vrot.slane %v2106, 3
      %v2221 = vrot.slane %v2114, 3
      %v2222 = vrot.slane %v2083, 3
      %v2223 = vrot.slane %v1923, 3
      %v2224 = vrot.slane %v2091, 3
      %v2225 = vrot.slane %v1939, 3
      %v2226 = vrot.slane %v2099, 3
      %v2227 = vrot.slane %v1955, 3
      %v2228 = vrot.slane %v2107, 3
      %v2229 = vrot.slane %v2115, 3
      %v2230 = vrot.slane %v2084, 3
      %v2231 = vrot.slane %v1924, 3
      %v2232 = vrot.slane %v2092, 3
      %v2233 = vrot.slane %v1940, 3
      %v2234 = vrot.slane %v2100, 3
      %v2235 = vrot.slane %v1956, 3
      %v2236 = vrot.slane %v2108, 3
      %v2237 = vrot.slane %v2116, 3
      %v2238 = vrot.slane %v2085, 3
      %v2239 = vrot.slane %v1925, 3
      %v2240 = vrot.slane %v2093, 3
      %v2241 = vrot.slane %v1941, 3
      %v2242 = vrot.slane %v2101, 3
      %v2243 = vrot.slane %v1957, 3
      %v2244 = vrot.slane %v2109, 3
      %v2245 = vrot.slane %v2117, 3
      %v2254 = vrot.slane %v1902, 7
      %v2255 = vrot.slane %v1903, 7
      %v2256 = vrot.slane %v1904, 7
      %v2257 = vrot.slane %v1905, 7
      %v2258 = vrot.slane %v1906, 7
      %v2259 = vrot.slane %v1907, 7
      %v2260 = vrot.slane %v1908, 7
      %v2261 = vrot.slane %v1909, 7
      %v2262 = vld [vmem:[%s7] sm:$0xff]
      %v2263 = vld [vmem:[%s7 + $0x8] sm:$0xff]
      %v2264 = vld [vmem:[%s7 + $0x10] sm:$0xff]
      %v2265 = vld [vmem:[%s7 + $0x18] sm:$0xff]
      %v2266 = vld [vmem:[%s7 + $0x20] sm:$0x1]
      %vm2291 = vcmask 1041409
      %v2292 = vsel %vm2291, %v2255, %v1902
      %v2293 = vrot.slane %v1904, 6
      %vm2294 = vcmask 1042434
      %v2295 = vsel %vm2294, %v2293, %v2292
      %v2296 = vrot.slane %v1905, 5
      %vm2297 = vcmask 1043459
      %v2298 = vsel %vm2297, %v2296, %v2295
      %v2299 = vrot.slane %v1906, 4
      %vm2300 = vcmask 1044484
      %v2301 = vsel %vm2300, %v2299, %v2298
      %v2302 = vrot.slane %v1907, 3
      %vm2303 = vcmask 1045509
      %v2304 = vsel %vm2303, %v2302, %v2301
      %v2305 = vrot.slane %v1908, 2
      %vm2306 = vcmask 1046534
      %v2307 = vsel %vm2306, %v2305, %v2304
      %v2308 = vrot.slane %v1909, 1
      %vm2309 = vcmask 1047559
      %v2310 = vsel %vm2309, %v2308, %v2307
      %v2311 = vrot.slane %v1911, 7
      %v2312 = vsel %vm2291, %v2311, %v1910
      %v2313 = vrot.slane %v1912, 6
      %v2314 = vsel %vm2294, %v2313, %v2312
      %v2315 = vrot.slane %v1913, 5
      %v2316 = vsel %vm2297, %v2315, %v2314
      %v2317 = vrot.slane %v1914, 4
      %v2318 = vsel %vm2300, %v2317, %v2316
      %v2319 = vrot.slane %v1915, 3
      %v2320 = vsel %vm2303, %v2319, %v2318
      %v2321 = vrot.slane %v1916, 2
      %v2322 = vsel %vm2306, %v2321, %v2320
      %v2323 = vrot.slane %v1917, 1
      %v2324 = vsel %vm2309, %v2323, %v2322
      %v2325 = vrot.slane %v1919, 7
      %v2326 = vsel %vm2291, %v2325, %v1918
      %v2327 = vrot.slane %v1920, 6
      %v2328 = vsel %vm2294, %v2327, %v2326
      %v2329 = vrot.slane %v1921, 5
      %v2330 = vsel %vm2297, %v2329, %v2328
      %v2331 = vrot.slane %v1922, 4
      %v2332 = vsel %vm2300, %v2331, %v2330
      %v2333 = vsel %vm2303, %v2223, %v2332
      %v2334 = vrot.slane %v1924, 2
      %v2335 = vsel %vm2306, %v2334, %v2333
      %v2336 = vrot.slane %v1925, 1
      %v2337 = vsel %vm2309, %v2336, %v2335
      %v2338 = vrot.slane %v1927, 7
      %v2339 = vsel %vm2291, %v2338, %v1926
      %v2340 = vrot.slane %v1928, 6
      %v2341 = vsel %vm2294, %v2340, %v2339
      %v2342 = vrot.slane %v1929, 5
      %v2343 = vsel %vm2297, %v2342, %v2341
      %v2344 = vrot.slane %v1930, 4
      %v2345 = vsel %vm2300, %v2344, %v2343
      %v2346 = vrot.slane %v1931, 3
      %v2347 = vsel %vm2303, %v2346, %v2345
      %v2348 = vrot.slane %v1932, 2
      %v2349 = vsel %vm2306, %v2348, %v2347
      %v2350 = vrot.slane %v1933, 1
      %v2351 = vsel %vm2309, %v2350, %v2349
      %v2352 = vrot.slane %v1935, 7
      %v2353 = vsel %vm2291, %v2352, %v1934
      %v2354 = vrot.slane %v1936, 6
      %v2355 = vsel %vm2294, %v2354, %v2353
      %v2356 = vrot.slane %v1937, 5
      %v2357 = vsel %vm2297, %v2356, %v2355
      %v2358 = vrot.slane %v1938, 4
      %v2359 = vsel %vm2300, %v2358, %v2357
      %v2360 = vsel %vm2303, %v2225, %v2359
      %v2361 = vrot.slane %v1940, 2
      %v2362 = vsel %vm2306, %v2361, %v2360
      %v2363 = vrot.slane %v1941, 1
      %v2364 = vsel %vm2309, %v2363, %v2362
      %v2365 = vrot.slane %v1943, 7
      %v2366 = vsel %vm2291, %v2365, %v1942
      %v2367 = vrot.slane %v1944, 6
      %v2368 = vsel %vm2294, %v2367, %v2366
      %v2369 = vrot.slane %v1945, 5
      %v2370 = vsel %vm2297, %v2369, %v2368
      %v2371 = vrot.slane %v1946, 4
      %v2372 = vsel %vm2300, %v2371, %v2370
      %v2373 = vrot.slane %v1947, 3
      %v2374 = vsel %vm2303, %v2373, %v2372
      %v2375 = vrot.slane %v1948, 2
      %v2376 = vsel %vm2306, %v2375, %v2374
      %v2377 = vrot.slane %v1949, 1
      %v2378 = vsel %vm2309, %v2377, %v2376
      %v2379 = vrot.slane %v1951, 7
      %v2380 = vsel %vm2291, %v2379, %v1950
      %v2381 = vrot.slane %v1952, 6
      %v2382 = vsel %vm2294, %v2381, %v2380
      %v2383 = vrot.slane %v1953, 5
      %v2384 = vsel %vm2297, %v2383, %v2382
      %v2385 = vrot.slane %v1954, 4
      %v2386 = vsel %vm2300, %v2385, %v2384
      %v2387 = vsel %vm2303, %v2227, %v2386
      %v2388 = vrot.slane %v1956, 2
      %v2389 = vsel %vm2306, %v2388, %v2387
      %v2390 = vrot.slane %v1957, 1
      %v2391 = vsel %vm2309, %v2390, %v2389
      %v2392 = vrot.slane %v2190, 7
      %v2393 = vsel %vm2291, %v2392, %v2182
      %v2394 = vrot.slane %v2198, 6
      %v2395 = vsel %vm2294, %v2394, %v2393
      %v2396 = vrot.slane %v2206, 5
      %v2397 = vsel %vm2297, %v2396, %v2395
      %v2398 = vrot.slane %v2214, 4
      %v2399 = vsel %vm2300, %v2398, %v2397
      %v2400 = vrot.slane %v2222, 3
      %v2401 = vsel %vm2303, %v2400, %v2399
      %v2402 = vrot.slane %v2230, 2
      %v2403 = vsel %vm2306, %v2402, %v2401
      %v2404 = vrot.slane %v2238, 1
      %v2405 = vsel %vm2309, %v2404, %v2403
      %v2406 = vrot.slane %v2191, 7
      %v2407 = vsel %vm2291, %v2406, %v2183
      %v2408 = vrot.slane %v2199, 6
      %v2409 = vsel %vm2294, %v2408, %v2407
      %v2410 = vrot.slane %v2207, 5
      %v2411 = vsel %vm2297, %v2410, %v2409
      %v2412 = vrot.slane %v2215, 4
      %v2413 = vsel %vm2300, %v2412, %v2411
      %v2414 = vrot.slane %v2223, 3
      %v2415 = vsel %vm2303, %v2414, %v2413
      %v2416 = vrot.slane %v2231, 2
      %v2417 = vsel %vm2306, %v2416, %v2415
      %v2418 = vrot.slane %v2239, 1
      %v2419 = vsel %vm2309, %v2418, %v2417
      %v2420 = vrot.slane %v2192, 7
      %v2421 = vsel %vm2291, %v2420, %v2184
      %v2422 = vrot.slane %v2200, 6
      %v2423 = vsel %vm2294, %v2422, %v2421
      %v2424 = vrot.slane %v2208, 5
      %v2425 = vsel %vm2297, %v2424, %v2423
      %v2426 = vrot.slane %v2216, 4
      %v2427 = vsel %vm2300, %v2426, %v2425
      %v2428 = vrot.slane %v2224, 3
      %v2429 = vsel %vm2303, %v2428, %v2427
      %v2430 = vrot.slane %v2232, 2
      %v2431 = vsel %vm2306, %v2430, %v2429
      %v2432 = vrot.slane %v2240, 1
      %v2433 = vsel %vm2309, %v2432, %v2431
      %v2434 = vrot.slane %v2193, 7
      %v2435 = vsel %vm2291, %v2434, %v2185
      %v2436 = vrot.slane %v2201, 6
      %v2437 = vsel %vm2294, %v2436, %v2435
      %v2438 = vrot.slane %v2209, 5
      %v2439 = vsel %vm2297, %v2438, %v2437
      %v2440 = vrot.slane %v2217, 4
      %v2441 = vsel %vm2300, %v2440, %v2439
      %v2442 = vrot.slane %v2225, 3
      %v2443 = vsel %vm2303, %v2442, %v2441
      %v2444 = vrot.slane %v2233, 2
      %v2445 = vsel %vm2306, %v2444, %v2443
      %v2446 = vrot.slane %v2241, 1
      %v2447 = vsel %vm2309, %v2446, %v2445
      %v2448 = vrot.slane %v2194, 7
      %v2449 = vsel %vm2291, %v2448, %v2186
      %v2450 = vrot.slane %v2202, 6
      %v2451 = vsel %vm2294, %v2450, %v2449
      %v2452 = vrot.slane %v2210, 5
      %v2453 = vsel %vm2297, %v2452, %v2451
      %v2454 = vrot.slane %v2218, 4
      %v2455 = vsel %vm2300, %v2454, %v2453
      %v2456 = vrot.slane %v2226, 3
      %v2457 = vsel %vm2303, %v2456, %v2455
      %v2458 = vrot.slane %v2234, 2
      %v2459 = vsel %vm2306, %v2458, %v2457
      %v2460 = vrot.slane %v2242, 1
      %v2461 = vsel %vm2309, %v2460, %v2459
      %v2462 = vrot.slane %v2195, 7
      %v2463 = vsel %vm2291, %v2462, %v2187
      %v2464 = vrot.slane %v2203, 6
      %v2465 = vsel %vm2294, %v2464, %v2463
      %v2466 = vrot.slane %v2211, 5
      %v2467 = vsel %vm2297, %v2466, %v2465
      %v2468 = vrot.slane %v2219, 4
      %v2469 = vsel %vm2300, %v2468, %v2467
      %v2470 = vrot.slane %v2227, 3
      %v2471 = vsel %vm2303, %v2470, %v2469
      %v2472 = vrot.slane %v2235, 2
      %v2473 = vsel %vm2306, %v2472, %v2471
      %v2474 = vrot.slane %v2243, 1
      %v2475 = vsel %vm2309, %v2474, %v2473
      %v2476 = vrot.slane %v2196, 7
      %v2477 = vsel %vm2291, %v2476, %v2188
      %v2478 = vrot.slane %v2204, 6
      %v2479 = vsel %vm2294, %v2478, %v2477
      %v2480 = vrot.slane %v2212, 5
      %v2481 = vsel %vm2297, %v2480, %v2479
      %v2482 = vrot.slane %v2220, 4
      %v2483 = vsel %vm2300, %v2482, %v2481
      %v2484 = vrot.slane %v2228, 3
      %v2485 = vsel %vm2303, %v2484, %v2483
      %v2486 = vrot.slane %v2236, 2
      %v2487 = vsel %vm2306, %v2486, %v2485
      %v2488 = vrot.slane %v2244, 1
      %v2489 = vsel %vm2309, %v2488, %v2487
      %v2490 = vrot.slane %v2197, 7
      %v2491 = vsel %vm2291, %v2490, %v2189
      %v2492 = vrot.slane %v2205, 6
      %v2493 = vsel %vm2294, %v2492, %v2491
      %v2494 = vrot.slane %v2213, 5
      %v2495 = vsel %vm2297, %v2494, %v2493
      %v2496 = vrot.slane %v2221, 4
      %v2497 = vsel %vm2300, %v2496, %v2495
      %v2498 = vrot.slane %v2229, 3
      %v2499 = vsel %vm2303, %v2498, %v2497
      %v2500 = vrot.slane %v2237, 2
      %v2501 = vsel %vm2306, %v2500, %v2499
      %v2502 = vrot.slane %v2245, 1
      %v2503 = vsel %vm2309, %v2502, %v2501
      %v2504 = vrot.slane %v2255, 7
      %v2505 = vsel %vm2291, %v2504, %v2254
      %v2506 = vrot.slane %v2256, 6
      %v2507 = vsel %vm2294, %v2506, %v2505
      %v2508 = vrot.slane %v2257, 5
      %v2509 = vsel %vm2297, %v2508, %v2507
      %v2510 = vrot.slane %v2258, 4
      %v2511 = vsel %vm2300, %v2510, %v2509
      %v2512 = vrot.slane %v2259, 3
      %v2513 = vsel %vm2303, %v2512, %v2511
      %v2514 = vrot.slane %v2260, 2
      %v2515 = vsel %vm2306, %v2514, %v2513
      %v2516 = vrot.slane %v2261, 1
      %v2517 = vsel %vm2309, %v2516, %v2515
      %vm2534 = vcmask 64512
      %v2536 = vsel %vm2534, %v2262, 0
      %v2539 = vsel %vm2534, %v2263, 0
      %v2542 = vsel %vm2534, %v2264, 0
      %v2545 = vsel %vm2534, %v2265, 0
      %v2548 = vsel %vm2534, %v2266, 0
      %2550 = vmatprep.subr.mxu0 %v2310
      %2551 = vmatpush1.msra.mxu0 %v2310
      %2552 = vmatprep.subr.mxu0 0.0
      %2553 = vmatpush1.msra.mxu0 0.0
      %2554 = vmatprep.subr.mxu0 0.0
      %2555 = vmatpush1.msra.mxu0 0.0
      %2556 = vmatprep.subr.mxu0 0.0
      %2557 = vmatpush1.msra.mxu0 0.0
      %2558 = vmatprep.subr.mxu0 0.0
      %2559 = vmatpush1.msra.mxu0 0.0
      %2560 = vmatprep.subr.mxu0 0.0
      %2561 = vmatpush1.msra.mxu0 0.0
      %2562 = vmatprep.subr.mxu0 0.0
      %2563 = vmatpush1.msra.mxu0 0.0
      %2564 = vmatprep.subr.mxu0 0.0
      %2565 = vmatpush1.msra.mxu0 0.0
      %2566 = vmatprep.subr.mxu0 0.0
      %2567 = vmatpush1.msra.mxu0 0.0
      %2568 = vmatprep.subr.mxu0 0.0
      %2569 = vmatpush1.msra.mxu0 0.0
      %2570 = vmatprep.subr.mxu0 0.0
      %2571 = vmatpush1.msra.mxu0 0.0
      %2572 = vmatprep.subr.mxu0 0.0
      %2573 = vmatpush1.msra.mxu0 0.0
      %2574 = vmatprep.subr.mxu0 0.0
      %2575 = vmatpush1.msra.mxu0 0.0
      %2576 = vmatprep.subr.mxu0 0.0
      %2577 = vmatpush1.msra.mxu0 0.0
      %2578 = vmatprep.subr.mxu0 0.0
      %2579 = vmatpush1.msra.mxu0 0.0
      %2580 = vmatprep.subr.mxu0 0.0
      %2581 = vmatpush1.msra.mxu0 0.0
      %2582 = vmatprep.subr.mxu0 0.0
      %2583 = vmatpush1.msra.mxu0 0.0
      %2584 = vmatprep.subr.mxu0 0.0
      %2585 = vmatpush1.msra.mxu0 0.0
      %2586 = vmatprep.subr.mxu0 0.0
      %2587 = vmatpush1.msra.mxu0 0.0
      %2588 = vmatprep.subr.mxu0 0.0
      %2589 = vmatpush1.msra.mxu0 0.0
      %2590 = vmatprep.subr.mxu0 0.0
      %2591 = vmatpush1.msra.mxu0 0.0
      %2592 = vmatprep.subr.mxu0 0.0
      %2593 = vmatpush1.msra.mxu0 0.0
      %2594 = vmatprep.subr.mxu0 0.0
      %2595 = vmatpush1.msra.mxu0 0.0
      %2596 = vmatprep.subr.mxu0 0.0
      %2597 = vmatpush1.msra.mxu0 0.0
      %2598 = vmatprep.subr.mxu0 0.0
      %2599 = vmatpush1.msra.mxu0 0.0
      %2600 = vmatprep.subr.mxu0 0.0
      %2601 = vmatpush1.msra.mxu0 0.0
      %2602 = vmatprep.subr.mxu0 0.0
      %2603 = vmatpush1.msra.mxu0 0.0
      %2604 = vmatprep.subr.mxu0 0.0
      %2605 = vmatpush1.msra.mxu0 0.0
      %2606 = vmatprep.subr.mxu0 0.0
      %2607 = vmatpush1.msra.mxu0 0.0
      %2608 = vmatprep.subr.mxu0 0.0
      %2609 = vmatpush1.msra.mxu0 0.0
      %2610 = vmatprep.subr.mxu0 0.0
      %2611 = vmatpush1.msra.mxu0 0.0
      %2612 = vmatprep.subr.mxu0 0.0
      %2613 = vmatpush1.msra.mxu0 0.0
      %2614 = vmatprep.mubr.f32.mxu0 0.0
      %2615 = vmatmul.mubr.f32.gmra.mrb[0].mxu0 %v2536
      %v2616 = vpop.f32.mrb[0].mxu0
      %v2617 = vadd.f32 0.0, %v2616
      %v2618 = vpop.f32.mrb[0].mxu0
      %v2619 = vadd.f32 0.0, %v2618
      %2620 = vmatprep.mubr.f32.mxu0 0.0
      %2621 = vmatmul.mubr.f32.gmra.mrb[0].mxu0 %v2539
      %v2622 = vpop.f32.mrb[0].mxu0
      %v2623 = vadd.f32 0.0, %v2622
      %v2624 = vpop.f32.mrb[0].mxu0
      %v2625 = vadd.f32 0.0, %v2624
      %2626 = vmatprep.mubr.f32.mxu0 0.0
      %2627 = vmatmul.mubr.f32.gmra.mrb[0].mxu0 %v2542
      %v2628 = vpop.f32.mrb[0].mxu0
      %v2629 = vadd.f32 0.0, %v2628
      %v2630 = vpop.f32.mrb[0].mxu0
      %v2631 = vadd.f32 0.0, %v2630
      %2632 = vmatprep.mubr.f32.mxu0 0.0
      %2633 = vmatmul.mubr.f32.gmra.mrb[0].mxu0 %v2545
      %v2634 = vpop.f32.mrb[0].mxu0
      %v2635 = vadd.f32 0.0, %v2634
      %v2636 = vpop.f32.mrb[0].mxu0
      %v2637 = vadd.f32 0.0, %v2636
      %2638 = vmatprep.mubr.f32.mxu0 0.0
      %2639 = vmatmul.mubr.f32.gmra.mrb[0].mxu0 %v2548
      %v2640 = vpop.f32.mrb[0].mxu0
      %v2641 = vadd.f32 0.0, %v2640
      %v2642 = vpop.f32.mrb[0].mxu0
      %v2643 = vadd.f32 0.0, %v2642
      %2644 = vdwg.mxu0
      %2645 = vmatprep.subr.mxu0 %v2337
      %2646 = vmatpush1.msra.mxu0 %v2324
      %2647 = vmatprep.subr.mxu0 0.0
      %2648 = vmatpush1.msra.mxu0 0.0
      %2649 = vmatprep.subr.mxu0 0.0
      %2650 = vmatpush1.msra.mxu0 0.0
      %2651 = vmatprep.subr.mxu0 0.0
      %2652 = vmatpush1.msra.mxu0 0.0
      %2653 = vmatprep.subr.mxu0 0.0
      %2654 = vmatpush1.msra.mxu0 0.0
      %2655 = vmatprep.subr.mxu0 0.0
      %2656 = vmatpush1.msra.mxu0 0.0
      %2657 = vmatprep.subr.mxu0 0.0
      %2658 = vmatpush1.msra.mxu0 0.0
      %2659 = vmatprep.subr.mxu0 0.0
      %2660 = vmatpush1.msra.mxu0 0.0
      %2661 = vmatprep.subr.mxu0 0.0
      %2662 = vmatpush1.msra.mxu0 0.0
      %2663 = vmatprep.subr.mxu0 0.0
      %2664 = vmatpush1.msra.mxu0 0.0
      %2665 = vmatprep.subr.mxu0 0.0
      %2666 = vmatpush1.msra.mxu0 0.0
      %2667 = vmatprep.subr.mxu0 0.0
      %2668 = vmatpush1.msra.mxu0 0.0
      %2669 = vmatprep.subr.mxu0 0.0
      %2670 = vmatpush1.msra.mxu0 0.0
      %2671 = vmatprep.subr.mxu0 0.0
      %2672 = vmatpush1.msra.mxu0 0.0
      %2673 = vmatprep.subr.mxu0 0.0
      %2674 = vmatpush1.msra.mxu0 0.0
      %2675 = vmatprep.subr.mxu0 0.0
      %2676 = vmatpush1.msra.mxu0 0.0
      %2677 = vmatprep.subr.mxu0 0.0
      %2678 = vmatpush1.msra.mxu0 0.0
      %2679 = vmatprep.subr.mxu0 0.0
      %2680 = vmatpush1.msra.mxu0 0.0
      %2681 = vmatprep.subr.mxu0 0.0
      %2682 = vmatpush1.msra.mxu0 0.0
      %2683 = vmatprep.subr.mxu0 0.0
      %2684 = vmatpush1.msra.mxu0 0.0
      %2685 = vmatprep.subr.mxu0 0.0
      %2686 = vmatpush1.msra.mxu0 0.0
      %2687 = vmatprep.subr.mxu0 0.0
      %2688 = vmatpush1.msra.mxu0 0.0
      %2689 = vmatprep.subr.mxu0 0.0
      %2690 = vmatpush1.msra.mxu0 0.0
      %2691 = vmatprep.subr.mxu0 0.0
      %2692 = vmatpush1.msra.mxu0 0.0
      %2693 = vmatprep.subr.mxu0 0.0
      %2694 = vmatpush1.msra.mxu0 0.0
      %2695 = vmatprep.subr.mxu0 0.0
      %2696 = vmatpush1.msra.mxu0 0.0
      %2697 = vmatprep.subr.mxu0 0.0
      %2698 = vmatpush1.msra.mxu0 0.0
      %2699 = vmatprep.subr.mxu0 0.0
      %2700 = vmatpush1.msra.mxu0 0.0
      %2701 = vmatprep.subr.mxu0 0.0
      %2702 = vmatpush1.msra.mxu0 0.0
      %2703 = vmatprep.subr.mxu0 0.0
      %2704 = vmatpush1.msra.mxu0 0.0
      %2705 = vmatprep.subr.mxu0 0.0
      %2706 = vmatpush1.msra.mxu0 0.0
      %2707 = vmatprep.subr.mxu0 0.0
      %2708 = vmatpush1.msra.mxu0 0.0
      %2709 = vmatprep.mubr.f32.mxu0 0.0
      %2710 = vmatmul.mubr.f32.gmra.mrb[0].mxu0 %v2536
      %v2711 = vpop.f32.mrb[0].mxu0
      %v2712 = vadd.f32 0.0, %v2711
      %v2713 = vpop.f32.mrb[0].mxu0
      %v2714 = vadd.f32 0.0, %v2713
      %2715 = vmatprep.mubr.f32.mxu0 0.0
      %2716 = vmatmul.mubr.f32.gmra.mrb[0].mxu0 %v2539
      %v2717 = vpop.f32.mrb[0].mxu0
      %v2718 = vadd.f32 0.0, %v2717
      %v2719 = vpop.f32.mrb[0].mxu0
      %v2720 = vadd.f32 0.0, %v2719
      %2721 = vmatprep.mubr.f32.mxu0 0.0
      %2722 = vmatmul.mubr.f32.gmra.mrb[0].mxu0 %v2542
      %v2723 = vpop.f32.mrb[0].mxu0
      %v2724 = vadd.f32 0.0, %v2723
      %v2725 = vpop.f32.mrb[0].mxu0
      %v2726 = vadd.f32 0.0, %v2725
      %2727 = vmatprep.mubr.f32.mxu0 0.0
      %2728 = vmatmul.mubr.f32.gmra.mrb[0].mxu0 %v2545
      %v2729 = vpop.f32.mrb[0].mxu0
      %v2730 = vadd.f32 0.0, %v2729
      %v2731 = vpop.f32.mrb[0].mxu0
      %v2732 = vadd.f32 0.0, %v2731
      %2733 = vmatprep.mubr.f32.mxu0 0.0
      %2734 = vmatmul.mubr.f32.gmra.mrb[0].mxu0 %v2548
      %v2735 = vpop.f32.mrb[0].mxu0
      %v2736 = vadd.f32 0.0, %v2735
      %v2737 = vpop.f32.mrb[0].mxu0
      %v2738 = vadd.f32 0.0, %v2737
      %2739 = vdwg.mxu0
      %2740 = vmatprep.subr.mxu0 %v2364
      %2741 = vmatpush1.msra.mxu0 %v2351
      %2742 = vmatprep.subr.mxu0 0.0
      %2743 = vmatpush1.msra.mxu0 0.0
      %2744 = vmatprep.subr.mxu0 0.0
      %2745 = vmatpush1.msra.mxu0 0.0
      %2746 = vmatprep.subr.mxu0 0.0
      %2747 = vmatpush1.msra.mxu0 0.0
      %2748 = vmatprep.subr.mxu0 0.0
      %2749 = vmatpush1.msra.mxu0 0.0
      %2750 = vmatprep.subr.mxu0 0.0
      %2751 = vmatpush1.msra.mxu0 0.0
      %2752 = vmatprep.subr.mxu0 0.0
      %2753 = vmatpush1.msra.mxu0 0.0
      %2754 = vmatprep.subr.mxu0 0.0
      %2755 = vmatpush1.msra.mxu0 0.0
      %2756 = vmatprep.subr.mxu0 0.0
      %2757 = vmatpush1.msra.mxu0 0.0
      %2758 = vmatprep.subr.mxu0 0.0
      %2759 = vmatpush1.msra.mxu0 0.0
      %2760 = vmatprep.subr.mxu0 0.0
      %2761 = vmatpush1.msra.mxu0 0.0
      %2762 = vmatprep.subr.mxu0 0.0
      %2763 = vmatpush1.msra.mxu0 0.0
      %2764 = vmatprep.subr.mxu0 0.0
      %2765 = vmatpush1.msra.mxu0 0.0
      %2766 = vmatprep.subr.mxu0 0.0
      %2767 = vmatpush1.msra.mxu0 0.0
      %2768 = vmatprep.subr.mxu0 0.0
      %2769 = vmatpush1.msra.mxu0 0.0
      %2770 = vmatprep.subr.mxu0 0.0
      %2771 = vmatpush1.msra.mxu0 0.0
      %2772 = vmatprep.subr.mxu0 0.0
      %2773 = vmatpush1.msra.mxu0 0.0
      %2774 = vmatprep.subr.mxu0 0.0
      %2775 = vmatpush1.msra.mxu0 0.0
      %2776 = vmatprep.subr.mxu0 0.0
      %2777 = vmatpush1.msra.mxu0 0.0
      %2778 = vmatprep.subr.mxu0 0.0
      %2779 = vmatpush1.msra.mxu0 0.0
      %2780 = vmatprep.subr.mxu0 0.0
      %2781 = vmatpush1.msra.mxu0 0.0
      %2782 = vmatprep.subr.mxu0 0.0
      %2783 = vmatpush1.msra.mxu0 0.0
      %2784 = vmatprep.subr.mxu0 0.0
      %2785 = vmatpush1.msra.mxu0 0.0
      %2786 = vmatprep.subr.mxu0 0.0
      %2787 = vmatpush1.msra.mxu0 0.0
      %2788 = vmatprep.subr.mxu0 0.0
      %2789 = vmatpush1.msra.mxu0 0.0
      %2790 = vmatprep.subr.mxu0 0.0
      %2791 = vmatpush1.msra.mxu0 0.0
      %2792 = vmatprep.subr.mxu0 0.0
      %2793 = vmatpush1.msra.mxu0 0.0
      %2794 = vmatprep.subr.mxu0 0.0
      %2795 = vmatpush1.msra.mxu0 0.0
      %2796 = vmatprep.subr.mxu0 0.0
      %2797 = vmatpush1.msra.mxu0 0.0
      %2798 = vmatprep.subr.mxu0 0.0
      %2799 = vmatpush1.msra.mxu0 0.0
      %2800 = vmatprep.subr.mxu0 0.0
      %2801 = vmatpush1.msra.mxu0 0.0
      %2802 = vmatprep.subr.mxu0 0.0
      %2803 = vmatpush1.msra.mxu0 0.0
      %2804 = vmatprep.mubr.f32.mxu0 0.0
      %2805 = vmatmul.mubr.f32.gmra.mrb[0].mxu0 %v2536
      %v2806 = vpop.f32.mrb[0].mxu0
      %v2807 = vadd.f32 0.0, %v2806
      %v2808 = vpop.f32.mrb[0].mxu0
      %v2809 = vadd.f32 0.0, %v2808
      %2810 = vmatprep.mubr.f32.mxu0 0.0
      %2811 = vmatmul.mubr.f32.gmra.mrb[0].mxu0 %v2539
      %v2812 = vpop.f32.mrb[0].mxu0
      %v2813 = vadd.f32 0.0, %v2812
      %v2814 = vpop.f32.mrb[0].mxu0
      %v2815 = vadd.f32 0.0, %v2814
      %2816 = vmatprep.mubr.f32.mxu0 0.0
      %2817 = vmatmul.mubr.f32.gmra.mrb[0].mxu0 %v2542
      %v2818 = vpop.f32.mrb[0].mxu0
      %v2819 = vadd.f32 0.0, %v2818
      %v2820 = vpop.f32.mrb[0].mxu0
      %v2821 = vadd.f32 0.0, %v2820
      %2822 = vmatprep.mubr.f32.mxu0 0.0
      %2823 = vmatmul.mubr.f32.gmra.mrb[0].mxu0 %v2545
      %v2824 = vpop.f32.mrb[0].mxu0
      %v2825 = vadd.f32 0.0, %v2824
      %v2826 = vpop.f32.mrb[0].mxu0
      %v2827 = vadd.f32 0.0, %v2826
      %2828 = vmatprep.mubr.f32.mxu0 0.0
      %2829 = vmatmul.mubr.f32.gmra.mrb[0].mxu0 %v2548
      %v2830 = vpop.f32.mrb[0].mxu0
      %v2831 = vadd.f32 0.0, %v2830
      %v2832 = vpop.f32.mrb[0].mxu0
      %v2833 = vadd.f32 0.0, %v2832
      %2834 = vdwg.mxu0
      %2835 = vmatprep.subr.mxu0 %v2391
      %2836 = vmatpush1.msra.mxu0 %v2378
      %2837 = vmatprep.subr.mxu0 0.0
      %2838 = vmatpush1.msra.mxu0 0.0
      %2839 = vmatprep.subr.mxu0 0.0
      %2840 = vmatpush1.msra.mxu0 0.0
      %2841 = vmatprep.subr.mxu0 0.0
      %2842 = vmatpush1.msra.mxu0 0.0
      %2843 = vmatprep.subr.mxu0 0.0
      %2844 = vmatpush1.msra.mxu0 0.0
      %2845 = vmatprep.subr.mxu0 0.0
      %2846 = vmatpush1.msra.mxu0 0.0
      %2847 = vmatprep.subr.mxu0 0.0
      %2848 = vmatpush1.msra.mxu0 0.0
      %2849 = vmatprep.subr.mxu0 0.0
      %2850 = vmatpush1.msra.mxu0 0.0
      %2851 = vmatprep.subr.mxu0 0.0
      %2852 = vmatpush1.msra.mxu0 0.0
      %2853 = vmatprep.subr.mxu0 0.0
      %2854 = vmatpush1.msra.mxu0 0.0
      %2855 = vmatprep.subr.mxu0 0.0
      %2856 = vmatpush1.msra.mxu0 0.0
      %2857 = vmatprep.subr.mxu0 0.0
      %2858 = vmatpush1.msra.mxu0 0.0
      %2859 = vmatprep.subr.mxu0 0.0
      %2860 = vmatpush1.msra.mxu0 0.0
      %2861 = vmatprep.subr.mxu0 0.0
      %2862 = vmatpush1.msra.mxu0 0.0
      %2863 = vmatprep.subr.mxu0 0.0
      %2864 = vmatpush1.msra.mxu0 0.0
      %2865 = vmatprep.subr.mxu0 0.0
      %2866 = vmatpush1.msra.mxu0 0.0
      %2867 = vmatprep.subr.mxu0 0.0
      %2868 = vmatpush1.msra.mxu0 0.0
      %2869 = vmatprep.subr.mxu0 0.0
      %2870 = vmatpush1.msra.mxu0 0.0
      %2871 = vmatprep.subr.mxu0 0.0
      %2872 = vmatpush1.msra.mxu0 0.0
      %2873 = vmatprep.subr.mxu0 0.0
      %2874 = vmatpush1.msra.mxu0 0.0
      %2875 = vmatprep.subr.mxu0 0.0
      %2876 = vmatpush1.msra.mxu0 0.0
      %2877 = vmatprep.subr.mxu0 0.0
      %2878 = vmatpush1.msra.mxu0 0.0
      %2879 = vmatprep.subr.mxu0 0.0
      %2880 = vmatpush1.msra.mxu0 0.0
      %2881 = vmatprep.subr.mxu0 0.0
      %2882 = vmatpush1.msra.mxu0 0.0
      %2883 = vmatprep.subr.mxu0 0.0
      %2884 = vmatpush1.msra.mxu0 0.0
      %2885 = vmatprep.subr.mxu0 0.0
      %2886 = vmatpush1.msra.mxu0 0.0
      %2887 = vmatprep.subr.mxu0 0.0
      %2888 = vmatpush1.msra.mxu0 0.0
      %2889 = vmatprep.subr.mxu0 0.0
      %2890 = vmatpush1.msra.mxu0 0.0
      %2891 = vmatprep.subr.mxu0 0.0
      %2892 = vmatpush1.msra.mxu0 0.0
      %2893 = vmatprep.subr.mxu0 0.0
      %2894 = vmatpush1.msra.mxu0 0.0
      %2895 = vmatprep.subr.mxu0 0.0
      %2896 = vmatpush1.msra.mxu0 0.0
      %2897 = vmatprep.subr.mxu0 0.0
      %2898 = vmatpush1.msra.mxu0 0.0
      %2899 = vmatprep.mubr.f32.mxu0 0.0
      %2900 = vmatmul.mubr.f32.gmra.mrb[0].mxu0 %v2536
      %v2901 = vpop.f32.mrb[0].mxu0
      %v2902 = vadd.f32 0.0, %v2901
      %v2903 = vpop.f32.mrb[0].mxu0
      %v2904 = vadd.f32 0.0, %v2903
      %2905 = vmatprep.mubr.f32.mxu0 0.0
      %2906 = vmatmul.mubr.f32.gmra.mrb[0].mxu0 %v2539
      %v2907 = vpop.f32.mrb[0].mxu0
      %v2908 = vadd.f32 0.0, %v2907
      %v2909 = vpop.f32.mrb[0].mxu0
      %v2910 = vadd.f32 0.0, %v2909
      %2911 = vmatprep.mubr.f32.mxu0 0.0
      %2912 = vmatmul.mubr.f32.gmra.mrb[0].mxu0 %v2542
      %v2913 = vpop.f32.mrb[0].mxu0
      %v2914 = vadd.f32 0.0, %v2913
      %v2915 = vpop.f32.mrb[0].mxu0
      %v2916 = vadd.f32 0.0, %v2915
      %2917 = vmatprep.mubr.f32.mxu0 0.0
      %2918 = vmatmul.mubr.f32.gmra.mrb[0].mxu0 %v2545
      %v2919 = vpop.f32.mrb[0].mxu0
      %v2920 = vadd.f32 0.0, %v2919
      %v2921 = vpop.f32.mrb[0].mxu0
      %v2922 = vadd.f32 0.0, %v2921
      %2923 = vmatprep.mubr.f32.mxu0 0.0
      %2924 = vmatmul.mubr.f32.gmra.mrb[0].mxu0 %v2548
      %v2925 = vpop.f32.mrb[0].mxu0
      %v2926 = vadd.f32 0.0, %v2925
      %v2927 = vpop.f32.mrb[0].mxu0
      %v2928 = vadd.f32 0.0, %v2927
      %2929 = vdwg.mxu0
      %2930 = vmatprep.subr.mxu0 %v2419
      %2931 = vmatpush1.msra.mxu0 %v2405
      %2932 = vmatprep.subr.mxu0 0.0
      %2933 = vmatpush1.msra.mxu0 0.0
      %2934 = vmatprep.subr.mxu0 0.0
      %2935 = vmatpush1.msra.mxu0 0.0
      %2936 = vmatprep.subr.mxu0 0.0
      %2937 = vmatpush1.msra.mxu0 0.0
      %2938 = vmatprep.subr.mxu0 0.0
      %2939 = vmatpush1.msra.mxu0 0.0
      %2940 = vmatprep.subr.mxu0 0.0
      %2941 = vmatpush1.msra.mxu0 0.0
      %2942 = vmatprep.subr.mxu0 0.0
      %2943 = vmatpush1.msra.mxu0 0.0
      %2944 = vmatprep.subr.mxu0 0.0
      %2945 = vmatpush1.msra.mxu0 0.0
      %2946 = vmatprep.subr.mxu0 0.0
      %2947 = vmatpush1.msra.mxu0 0.0
      %2948 = vmatprep.subr.mxu0 0.0
      %2949 = vmatpush1.msra.mxu0 0.0
      %2950 = vmatprep.subr.mxu0 0.0
      %2951 = vmatpush1.msra.mxu0 0.0
      %2952 = vmatprep.subr.mxu0 0.0
      %2953 = vmatpush1.msra.mxu0 0.0
      %2954 = vmatprep.subr.mxu0 0.0
      %2955 = vmatpush1.msra.mxu0 0.0
      %2956 = vmatprep.subr.mxu0 0.0
      %2957 = vmatpush1.msra.mxu0 0.0
      %2958 = vmatprep.subr.mxu0 0.0
      %2959 = vmatpush1.msra.mxu0 0.0
      %2960 = vmatprep.subr.mxu0 0.0
      %2961 = vmatpush1.msra.mxu0 0.0
      %2962 = vmatprep.subr.mxu0 0.0
      %2963 = vmatpush1.msra.mxu0 0.0
      %2964 = vmatprep.subr.mxu0 0.0
      %2965 = vmatpush1.msra.mxu0 0.0
      %2966 = vmatprep.subr.mxu0 0.0
      %2967 = vmatpush1.msra.mxu0 0.0
      %2968 = vmatprep.subr.mxu0 0.0
      %2969 = vmatpush1.msra.mxu0 0.0
      %2970 = vmatprep.subr.mxu0 0.0
      %2971 = vmatpush1.msra.mxu0 0.0
      %2972 = vmatprep.subr.mxu0 0.0
      %2973 = vmatpush1.msra.mxu0 0.0
      %2974 = vmatprep.subr.mxu0 0.0
      %2975 = vmatpush1.msra.mxu0 0.0
      %2976 = vmatprep.subr.mxu0 0.0
      %2977 = vmatpush1.msra.mxu0 0.0
      %2978 = vmatprep.subr.mxu0 0.0
      %2979 = vmatpush1.msra.mxu0 0.0
      %2980 = vmatprep.subr.mxu0 0.0
      %2981 = vmatpush1.msra.mxu0 0.0
      %2982 = vmatprep.subr.mxu0 0.0
      %2983 = vmatpush1.msra.mxu0 0.0
      %2984 = vmatprep.subr.mxu0 0.0
      %2985 = vmatpush1.msra.mxu0 0.0
      %2986 = vmatprep.subr.mxu0 0.0
      %2987 = vmatpush1.msra.mxu0 0.0
      %2988 = vmatprep.subr.mxu0 0.0
      %2989 = vmatpush1.msra.mxu0 0.0
      %2990 = vmatprep.subr.mxu0 0.0
      %2991 = vmatpush1.msra.mxu0 0.0
      %2992 = vmatprep.subr.mxu0 0.0
      %2993 = vmatpush1.msra.mxu0 0.0
      %2994 = vmatprep.mubr.f32.mxu0 0.0
      %2995 = vmatmul.mubr.f32.gmra.mrb[0].mxu0 %v2536
      %v2996 = vpop.f32.mrb[0].mxu0
      %v2997 = vadd.f32 0.0, %v2996
      %v2998 = vpop.f32.mrb[0].mxu0
      %v2999 = vadd.f32 0.0, %v2998
      %3000 = vmatprep.mubr.f32.mxu0 0.0
      %3001 = vmatmul.mubr.f32.gmra.mrb[0].mxu0 %v2539
      %v3002 = vpop.f32.mrb[0].mxu0
      %v3003 = vadd.f32 0.0, %v3002
      %v3004 = vpop.f32.mrb[0].mxu0
      %v3005 = vadd.f32 0.0, %v3004
      %3006 = vmatprep.mubr.f32.mxu0 0.0
      %3007 = vmatmul.mubr.f32.gmra.mrb[0].mxu0 %v2542
      %v3008 = vpop.f32.mrb[0].mxu0
      %v3009 = vadd.f32 0.0, %v3008
      %v3010 = vpop.f32.mrb[0].mxu0
      %v3011 = vadd.f32 0.0, %v3010
      %3012 = vmatprep.mubr.f32.mxu0 0.0
      %3013 = vmatmul.mubr.f32.gmra.mrb[0].mxu0 %v2545
      %v3014 = vpop.f32.mrb[0].mxu0
      %v3015 = vadd.f32 0.0, %v3014
      %v3016 = vpop.f32.mrb[0].mxu0
      %v3017 = vadd.f32 0.0, %v3016
      %3018 = vmatprep.mubr.f32.mxu0 0.0
      %3019 = vmatmul.mubr.f32.gmra.mrb[0].mxu0 %v2548
      %v3020 = vpop.f32.mrb[0].mxu0
      %v3021 = vadd.f32 0.0, %v3020
      %v3022 = vpop.f32.mrb[0].mxu0
      %v3023 = vadd.f32 0.0, %v3022
      %3024 = vdwg.mxu0
      %3025 = vmatprep.subr.mxu0 %v2447
      %3026 = vmatpush1.msra.mxu0 %v2433
      %3027 = vmatprep.subr.mxu0 0.0
      %3028 = vmatpush1.msra.mxu0 0.0
      %3029 = vmatprep.subr.mxu0 0.0
      %3030 = vmatpush1.msra.mxu0 0.0
      %3031 = vmatprep.subr.mxu0 0.0
      %3032 = vmatpush1.msra.mxu0 0.0
      %3033 = vmatprep.subr.mxu0 0.0
      %3034 = vmatpush1.msra.mxu0 0.0
      %3035 = vmatprep.subr.mxu0 0.0
      %3036 = vmatpush1.msra.mxu0 0.0
      %3037 = vmatprep.subr.mxu0 0.0
      %3038 = vmatpush1.msra.mxu0 0.0
      %3039 = vmatprep.subr.mxu0 0.0
      %3040 = vmatpush1.msra.mxu0 0.0
      %3041 = vmatprep.subr.mxu0 0.0
      %3042 = vmatpush1.msra.mxu0 0.0
      %3043 = vmatprep.subr.mxu0 0.0
      %3044 = vmatpush1.msra.mxu0 0.0
      %3045 = vmatprep.subr.mxu0 0.0
      %3046 = vmatpush1.msra.mxu0 0.0
      %3047 = vmatprep.subr.mxu0 0.0
      %3048 = vmatpush1.msra.mxu0 0.0
      %3049 = vmatprep.subr.mxu0 0.0
      %3050 = vmatpush1.msra.mxu0 0.0
      %3051 = vmatprep.subr.mxu0 0.0
      %3052 = vmatpush1.msra.mxu0 0.0
      %3053 = vmatprep.subr.mxu0 0.0
      %3054 = vmatpush1.msra.mxu0 0.0
      %3055 = vmatprep.subr.mxu0 0.0
      %3056 = vmatpush1.msra.mxu0 0.0
      %3057 = vmatprep.subr.mxu0 0.0
      %3058 = vmatpush1.msra.mxu0 0.0
      %3059 = vmatprep.subr.mxu0 0.0
      %3060 = vmatpush1.msra.mxu0 0.0
      %3061 = vmatprep.subr.mxu0 0.0
      %3062 = vmatpush1.msra.mxu0 0.0
      %3063 = vmatprep.subr.mxu0 0.0
      %3064 = vmatpush1.msra.mxu0 0.0
      %3065 = vmatprep.subr.mxu0 0.0
      %3066 = vmatpush1.msra.mxu0 0.0
      %3067 = vmatprep.subr.mxu0 0.0
      %3068 = vmatpush1.msra.mxu0 0.0
      %3069 = vmatprep.subr.mxu0 0.0
      %3070 = vmatpush1.msra.mxu0 0.0
      %3071 = vmatprep.subr.mxu0 0.0
      %3072 = vmatpush1.msra.mxu0 0.0
      %3073 = vmatprep.subr.mxu0 0.0
      %3074 = vmatpush1.msra.mxu0 0.0
      %3075 = vmatprep.subr.mxu0 0.0
      %3076 = vmatpush1.msra.mxu0 0.0
      %3077 = vmatprep.subr.mxu0 0.0
      %3078 = vmatpush1.msra.mxu0 0.0
      %3079 = vmatprep.subr.mxu0 0.0
      %3080 = vmatpush1.msra.mxu0 0.0
      %3081 = vmatprep.subr.mxu0 0.0
      %3082 = vmatpush1.msra.mxu0 0.0
      %3083 = vmatprep.subr.mxu0 0.0
      %3084 = vmatpush1.msra.mxu0 0.0
      %3085 = vmatprep.subr.mxu0 0.0
      %3086 = vmatpush1.msra.mxu0 0.0
      %3087 = vmatprep.subr.mxu0 0.0
      %3088 = vmatpush1.msra.mxu0 0.0
      %3089 = vmatprep.mubr.f32.mxu0 0.0
      %3090 = vmatmul.mubr.f32.gmra.mrb[0].mxu0 %v2536
      %v3091 = vpop.f32.mrb[0].mxu0
      %v3092 = vadd.f32 0.0, %v3091
      %v3093 = vpop.f32.mrb[0].mxu0
      %v3094 = vadd.f32 0.0, %v3093
      %3095 = vmatprep.mubr.f32.mxu0 0.0
      %3096 = vmatmul.mubr.f32.gmra.mrb[0].mxu0 %v2539
      %v3097 = vpop.f32.mrb[0].mxu0
      %v3098 = vadd.f32 0.0, %v3097
      %v3099 = vpop.f32.mrb[0].mxu0
      %v3100 = vadd.f32 0.0, %v3099
      %3101 = vmatprep.mubr.f32.mxu0 0.0
      %3102 = vmatmul.mubr.f32.gmra.mrb[0].mxu0 %v2542
      %v3103 = vpop.f32.mrb[0].mxu0
      %v3104 = vadd.f32 0.0, %v3103
      %v3105 = vpop.f32.mrb[0].mxu0
      %v3106 = vadd.f32 0.0, %v3105
      %3107 = vmatprep.mubr.f32.mxu0 0.0
      %3108 = vmatmul.mubr.f32.gmra.mrb[0].mxu0 %v2545
      %v3109 = vpop.f32.mrb[0].mxu0
      %v3110 = vadd.f32 0.0, %v3109
      %v3111 = vpop.f32.mrb[0].mxu0
      %v3112 = vadd.f32 0.0, %v3111
      %3113 = vmatprep.mubr.f32.mxu0 0.0
      %3114 = vmatmul.mubr.f32.gmra.mrb[0].mxu0 %v2548
      %v3115 = vpop.f32.mrb[0].mxu0
      %v3116 = vadd.f32 0.0, %v3115
      %v3117 = vpop.f32.mrb[0].mxu0
      %v3118 = vadd.f32 0.0, %v3117
      %3119 = vdwg.mxu0
      %3120 = vmatprep.subr.mxu0 %v2475
      %3121 = vmatpush1.msra.mxu0 %v2461
      %3122 = vmatprep.subr.mxu0 0.0
      %3123 = vmatpush1.msra.mxu0 0.0
      %3124 = vmatprep.subr.mxu0 0.0
      %3125 = vmatpush1.msra.mxu0 0.0
      %3126 = vmatprep.subr.mxu0 0.0
      %3127 = vmatpush1.msra.mxu0 0.0
      %3128 = vmatprep.subr.mxu0 0.0
      %3129 = vmatpush1.msra.mxu0 0.0
      %3130 = vmatprep.subr.mxu0 0.0
      %3131 = vmatpush1.msra.mxu0 0.0
      %3132 = vmatprep.subr.mxu0 0.0
      %3133 = vmatpush1.msra.mxu0 0.0
      %3134 = vmatprep.subr.mxu0 0.0
      %3135 = vmatpush1.msra.mxu0 0.0
      %3136 = vmatprep.subr.mxu0 0.0
      %3137 = vmatpush1.msra.mxu0 0.0
      %3138 = vmatprep.subr.mxu0 0.0
      %3139 = vmatpush1.msra.mxu0 0.0
      %3140 = vmatprep.subr.mxu0 0.0
      %3141 = vmatpush1.msra.mxu0 0.0
      %3142 = vmatprep.subr.mxu0 0.0
      %3143 = vmatpush1.msra.mxu0 0.0
      %3144 = vmatprep.subr.mxu0 0.0
      %3145 = vmatpush1.msra.mxu0 0.0
      %3146 = vmatprep.subr.mxu0 0.0
      %3147 = vmatpush1.msra.mxu0 0.0
      %3148 = vmatprep.subr.mxu0 0.0
      %3149 = vmatpush1.msra.mxu0 0.0
      %3150 = vmatprep.subr.mxu0 0.0
      %3151 = vmatpush1.msra.mxu0 0.0
      %3152 = vmatprep.subr.mxu0 0.0
      %3153 = vmatpush1.msra.mxu0 0.0
      %3154 = vmatprep.subr.mxu0 0.0
      %3155 = vmatpush1.msra.mxu0 0.0
      %3156 = vmatprep.subr.mxu0 0.0
      %3157 = vmatpush1.msra.mxu0 0.0
      %3158 = vmatprep.subr.mxu0 0.0
      %3159 = vmatpush1.msra.mxu0 0.0
      %3160 = vmatprep.subr.mxu0 0.0
      %3161 = vmatpush1.msra.mxu0 0.0
      %3162 = vmatprep.subr.mxu0 0.0
      %3163 = vmatpush1.msra.mxu0 0.0
      %3164 = vmatprep.subr.mxu0 0.0
      %3165 = vmatpush1.msra.mxu0 0.0
      %3166 = vmatprep.subr.mxu0 0.0
      %3167 = vmatpush1.msra.mxu0 0.0
      %3168 = vmatprep.subr.mxu0 0.0
      %3169 = vmatpush1.msra.mxu0 0.0
      %3170 = vmatprep.subr.mxu0 0.0
      %3171 = vmatpush1.msra.mxu0 0.0
      %3172 = vmatprep.subr.mxu0 0.0
      %3173 = vmatpush1.msra.mxu0 0.0
      %3174 = vmatprep.subr.mxu0 0.0
      %3175 = vmatpush1.msra.mxu0 0.0
      %3176 = vmatprep.subr.mxu0 0.0
      %3177 = vmatpush1.msra.mxu0 0.0
      %3178 = vmatprep.subr.mxu0 0.0
      %3179 = vmatpush1.msra.mxu0 0.0
      %3180 = vmatprep.subr.mxu0 0.0
      %3181 = vmatpush1.msra.mxu0 0.0
      %3182 = vmatprep.subr.mxu0 0.0
      %3183 = vmatpush1.msra.mxu0 0.0
      %3184 = vmatprep.mubr.f32.mxu0 0.0
      %3185 = vmatmul.mubr.f32.gmra.mrb[0].mxu0 %v2536
      %v3186 = vpop.f32.mrb[0].mxu0
      %v3187 = vadd.f32 0.0, %v3186
      %v3188 = vpop.f32.mrb[0].mxu0
      %v3189 = vadd.f32 0.0, %v3188
      %3190 = vmatprep.mubr.f32.mxu0 0.0
      %3191 = vmatmul.mubr.f32.gmra.mrb[0].mxu0 %v2539
      %v3192 = vpop.f32.mrb[0].mxu0
      %v3193 = vadd.f32 0.0, %v3192
      %v3194 = vpop.f32.mrb[0].mxu0
      %v3195 = vadd.f32 0.0, %v3194
      %3196 = vmatprep.mubr.f32.mxu0 0.0
      %3197 = vmatmul.mubr.f32.gmra.mrb[0].mxu0 %v2542
      %v3198 = vpop.f32.mrb[0].mxu0
      %v3199 = vadd.f32 0.0, %v3198
      %v3200 = vpop.f32.mrb[0].mxu0
      %v3201 = vadd.f32 0.0, %v3200
      %3202 = vmatprep.mubr.f32.mxu0 0.0
      %3203 = vmatmul.mubr.f32.gmra.mrb[0].mxu0 %v2545
      %v3204 = vpop.f32.mrb[0].mxu0
      %v3205 = vadd.f32 0.0, %v3204
      %v3206 = vpop.f32.mrb[0].mxu0
      %v3207 = vadd.f32 0.0, %v3206
      %3208 = vmatprep.mubr.f32.mxu0 0.0
      %3209 = vmatmul.mubr.f32.gmra.mrb[0].mxu0 %v2548
      %v3210 = vpop.f32.mrb[0].mxu0
      %v3211 = vadd.f32 0.0, %v3210
      %v3212 = vpop.f32.mrb[0].mxu0
      %v3213 = vadd.f32 0.0, %v3212
      %3214 = vdwg.mxu0
      %3215 = vmatprep.subr.mxu0 %v2503
      %3216 = vmatpush1.msra.mxu0 %v2489
      %3217 = vmatprep.subr.mxu0 0.0
      %3218 = vmatpush1.msra.mxu0 0.0
      %3219 = vmatprep.subr.mxu0 0.0
      %3220 = vmatpush1.msra.mxu0 0.0
      %3221 = vmatprep.subr.mxu0 0.0
      %3222 = vmatpush1.msra.mxu0 0.0
      %3223 = vmatprep.subr.mxu0 0.0
      %3224 = vmatpush1.msra.mxu0 0.0
      %3225 = vmatprep.subr.mxu0 0.0
      %3226 = vmatpush1.msra.mxu0 0.0
      %3227 = vmatprep.subr.mxu0 0.0
      %3228 = vmatpush1.msra.mxu0 0.0
      %3229 = vmatprep.subr.mxu0 0.0
      %3230 = vmatpush1.msra.mxu0 0.0
      %3231 = vmatprep.subr.mxu0 0.0
      %3232 = vmatpush1.msra.mxu0 0.0
      %3233 = vmatprep.subr.mxu0 0.0
      %3234 = vmatpush1.msra.mxu0 0.0
      %3235 = vmatprep.subr.mxu0 0.0
      %3236 = vmatpush1.msra.mxu0 0.0
      %3237 = vmatprep.subr.mxu0 0.0
      %3238 = vmatpush1.msra.mxu0 0.0
      %3239 = vmatprep.subr.mxu0 0.0
      %3240 = vmatpush1.msra.mxu0 0.0
      %3241 = vmatprep.subr.mxu0 0.0
      %3242 = vmatpush1.msra.mxu0 0.0
      %3243 = vmatprep.subr.mxu0 0.0
      %3244 = vmatpush1.msra.mxu0 0.0
      %3245 = vmatprep.subr.mxu0 0.0
      %3246 = vmatpush1.msra.mxu0 0.0
      %3247 = vmatprep.subr.mxu0 0.0
      %3248 = vmatpush1.msra.mxu0 0.0
      %3249 = vmatprep.subr.mxu0 0.0
      %3250 = vmatpush1.msra.mxu0 0.0
      %3251 = vmatprep.subr.mxu0 0.0
      %3252 = vmatpush1.msra.mxu0 0.0
      %3253 = vmatprep.subr.mxu0 0.0
      %3254 = vmatpush1.msra.mxu0 0.0
      %3255 = vmatprep.subr.mxu0 0.0
      %3256 = vmatpush1.msra.mxu0 0.0
      %3257 = vmatprep.subr.mxu0 0.0
      %3258 = vmatpush1.msra.mxu0 0.0
      %3259 = vmatprep.subr.mxu0 0.0
      %3260 = vmatpush1.msra.mxu0 0.0
      %3261 = vmatprep.subr.mxu0 0.0
      %3262 = vmatpush1.msra.mxu0 0.0
      %3263 = vmatprep.subr.mxu0 0.0
      %3264 = vmatpush1.msra.mxu0 0.0
      %3265 = vmatprep.subr.mxu0 0.0
      %3266 = vmatpush1.msra.mxu0 0.0
      %3267 = vmatprep.subr.mxu0 0.0
      %3268 = vmatpush1.msra.mxu0 0.0
      %3269 = vmatprep.subr.mxu0 0.0
      %3270 = vmatpush1.msra.mxu0 0.0
      %3271 = vmatprep.subr.mxu0 0.0
      %3272 = vmatpush1.msra.mxu0 0.0
      %3273 = vmatprep.subr.mxu0 0.0
      %3274 = vmatpush1.msra.mxu0 0.0
      %3275 = vmatprep.subr.mxu0 0.0
      %3276 = vmatpush1.msra.mxu0 0.0
      %3277 = vmatprep.subr.mxu0 0.0
      %3278 = vmatpush1.msra.mxu0 0.0
      %3279 = vmatprep.mubr.f32.mxu0 0.0
      %3280 = vmatmul.mubr.f32.gmra.mrb[0].mxu0 %v2536
      %v3281 = vpop.f32.mrb[0].mxu0
      %v3282 = vadd.f32 0.0, %v3281
      %v3283 = vpop.f32.mrb[0].mxu0
      %v3284 = vadd.f32 0.0, %v3283
      %3285 = vmatprep.mubr.f32.mxu0 0.0
      %3286 = vmatmul.mubr.f32.gmra.mrb[0].mxu0 %v2539
      %v3287 = vpop.f32.mrb[0].mxu0
      %v3288 = vadd.f32 0.0, %v3287
      %v3289 = vpop.f32.mrb[0].mxu0
      %v3290 = vadd.f32 0.0, %v3289
      %3291 = vmatprep.mubr.f32.mxu0 0.0
      %3292 = vmatmul.mubr.f32.gmra.mrb[0].mxu0 %v2542
      %v3293 = vpop.f32.mrb[0].mxu0
      %v3294 = vadd.f32 0.0, %v3293
      %v3295 = vpop.f32.mrb[0].mxu0
      %v3296 = vadd.f32 0.0, %v3295
      %3297 = vmatprep.mubr.f32.mxu0 0.0
      %3298 = vmatmul.mubr.f32.gmra.mrb[0].mxu0 %v2545
      %v3299 = vpop.f32.mrb[0].mxu0
      %v3300 = vadd.f32 0.0, %v3299
      %v3301 = vpop.f32.mrb[0].mxu0
      %v3302 = vadd.f32 0.0, %v3301
      %3303 = vmatprep.mubr.f32.mxu0 0.0
      %3304 = vmatmul.mubr.f32.gmra.mrb[0].mxu0 %v2548
      %v3305 = vpop.f32.mrb[0].mxu0
      %v3306 = vadd.f32 0.0, %v3305
      %v3307 = vpop.f32.mrb[0].mxu0
      %v3308 = vadd.f32 0.0, %v3307
      %3309 = vdwg.mxu0
      %3310 = vmatprep.subr.mxu0 0.0
      %3311 = vmatpush1.msra.mxu0 %v2517
      %3312 = vmatprep.subr.mxu0 0.0
      %3313 = vmatpush1.msra.mxu0 0.0
      %3314 = vmatprep.subr.mxu0 0.0
      %3315 = vmatpush1.msra.mxu0 0.0
      %3316 = vmatprep.subr.mxu0 0.0
      %3317 = vmatpush1.msra.mxu0 0.0
      %3318 = vmatprep.subr.mxu0 0.0
      %3319 = vmatpush1.msra.mxu0 0.0
      %3320 = vmatprep.subr.mxu0 0.0
      %3321 = vmatpush1.msra.mxu0 0.0
      %3322 = vmatprep.subr.mxu0 0.0
      %3323 = vmatpush1.msra.mxu0 0.0
      %3324 = vmatprep.subr.mxu0 0.0
      %3325 = vmatpush1.msra.mxu0 0.0
      %3326 = vmatprep.subr.mxu0 0.0
      %3327 = vmatpush1.msra.mxu0 0.0
      %3328 = vmatprep.subr.mxu0 0.0
      %3329 = vmatpush1.msra.mxu0 0.0
      %3330 = vmatprep.subr.mxu0 0.0
      %3331 = vmatpush1.msra.mxu0 0.0
      %3332 = vmatprep.subr.mxu0 0.0
      %3333 = vmatpush1.msra.mxu0 0.0
      %3334 = vmatprep.subr.mxu0 0.0
      %3335 = vmatpush1.msra.mxu0 0.0
      %3336 = vmatprep.subr.mxu0 0.0
      %3337 = vmatpush1.msra.mxu0 0.0
      %3338 = vmatprep.subr.mxu0 0.0
      %3339 = vmatpush1.msra.mxu0 0.0
      %3340 = vmatprep.subr.mxu0 0.0
      %3341 = vmatpush1.msra.mxu0 0.0
      %3342 = vmatprep.subr.mxu0 0.0
      %3343 = vmatpush1.msra.mxu0 0.0
      %3344 = vmatprep.subr.mxu0 0.0
      %3345 = vmatpush1.msra.mxu0 0.0
      %3346 = vmatprep.subr.mxu0 0.0
      %3347 = vmatpush1.msra.mxu0 0.0
      %3348 = vmatprep.subr.mxu0 0.0
      %3349 = vmatpush1.msra.mxu0 0.0
      %3350 = vmatprep.subr.mxu0 0.0
      %3351 = vmatpush1.msra.mxu0 0.0
      %3352 = vmatprep.subr.mxu0 0.0
      %3353 = vmatpush1.msra.mxu0 0.0
      %3354 = vmatprep.subr.mxu0 0.0
      %3355 = vmatpush1.msra.mxu0 0.0
      %3356 = vmatprep.subr.mxu0 0.0
      %3357 = vmatpush1.msra.mxu0 0.0
      %3358 = vmatprep.subr.mxu0 0.0
      %3359 = vmatpush1.msra.mxu0 0.0
      %3360 = vmatprep.subr.mxu0 0.0
      %3361 = vmatpush1.msra.mxu0 0.0
      %3362 = vmatprep.subr.mxu0 0.0
      %3363 = vmatpush1.msra.mxu0 0.0
      %3364 = vmatprep.subr.mxu0 0.0
      %3365 = vmatpush1.msra.mxu0 0.0
      %3366 = vmatprep.subr.mxu0 0.0
      %3367 = vmatpush1.msra.mxu0 0.0
      %3368 = vmatprep.subr.mxu0 0.0
      %3369 = vmatpush1.msra.mxu0 0.0
      %3370 = vmatprep.subr.mxu0 0.0
      %3371 = vmatpush1.msra.mxu0 0.0
      %3372 = vmatprep.subr.mxu0 0.0
      %3373 = vmatpush1.msra.mxu0 0.0
      %3374 = vmatprep.mubr.f32.mxu0 0.0
      %3375 = vmatmul.mubr.f32.gmra.mrb[0].mxu0 %v2536
      %v3376 = vpop.f32.mrb[0].mxu0
      %v3377 = vadd.f32 0.0, %v3376
      %v3378 = vpop.f32.mrb[0].mxu0
      %3379 = vmatprep.mubr.f32.mxu0 0.0
      %3380 = vmatmul.mubr.f32.gmra.mrb[0].mxu0 %v2539
      %v3381 = vpop.f32.mrb[0].mxu0
      %v3382 = vadd.f32 0.0, %v3381
      %v3383 = vpop.f32.mrb[0].mxu0
      %3384 = vmatprep.mubr.f32.mxu0 0.0
      %3385 = vmatmul.mubr.f32.gmra.mrb[0].mxu0 %v2542
      %v3386 = vpop.f32.mrb[0].mxu0
      %v3387 = vadd.f32 0.0, %v3386
      %v3388 = vpop.f32.mrb[0].mxu0
      %3389 = vmatprep.mubr.f32.mxu0 0.0
      %3390 = vmatmul.mubr.f32.gmra.mrb[0].mxu0 %v2545
      %v3391 = vpop.f32.mrb[0].mxu0
      %v3392 = vadd.f32 0.0, %v3391
      %v3393 = vpop.f32.mrb[0].mxu0
      %3394 = vmatprep.mubr.f32.mxu0 0.0
      %3395 = vmatmul.mubr.f32.gmra.mrb[0].mxu0 %v2548
      %v3396 = vpop.f32.mrb[0].mxu0
      %v3397 = vadd.f32 0.0, %v3396
      %v3398 = vpop.f32.mrb[0].mxu0
      %3399 = vdwg.mxu0
      %3400 = vst [vmem:[%s307] sm:$0xff] %v2617
      %3401 = vst [vmem:[%s307 + $0x8] sm:$0xff] %v2619
      %3402 = vst [vmem:[%s307 + $0x10] sm:$0xff] %v2712
      %3403 = vst [vmem:[%s307 + $0x18] sm:$0xff] %v2714
      %3404 = vst [vmem:[%s307 + $0x20] sm:$0xff] %v2807
      %3405 = vst [vmem:[%s307 + $0x28] sm:$0xff] %v2809
      %3406 = vst [vmem:[%s307 + $0x30] sm:$0xff] %v2902
      %3407 = vst [vmem:[%s307 + $0x38] sm:$0xff] %v2904
      %3408 = vst [vmem:[%s307 + $0x40] sm:$0xff] %v2997
      %3409 = vst [vmem:[%s307 + $0x48] sm:$0xff] %v2999
      %3410 = vst [vmem:[%s307 + $0x50] sm:$0xff] %v3092
      %3411 = vst [vmem:[%s307 + $0x58] sm:$0xff] %v3094
      %3412 = vst [vmem:[%s307 + $0x60] sm:$0xff] %v3187
      %3413 = vst [vmem:[%s307 + $0x68] sm:$0xff] %v3189
      %3414 = vst [vmem:[%s307 + $0x70] sm:$0xff] %v3282
      %3415 = vst [vmem:[%s307 + $0x78] sm:$0xff] %v3284
      %3416 = vst [vmem:[%s307 + $0x80] sm:$0xff] %v3377
      %3417 = vst [vmem:[%s307 + $0x88] sm:$0xff] %v2623
      %3418 = vst [vmem:[%s307 + $0x90] sm:$0xff] %v2625
      %3419 = vst [vmem:[%s307 + $0x98] sm:$0xff] %v2718
      %3420 = vst [vmem:[%s307 + $0xa0] sm:$0xff] %v2720
      %3421 = vst [vmem:[%s307 + $0xa8] sm:$0xff] %v2813
      %3422 = vst [vmem:[%s307 + $0xb0] sm:$0xff] %v2815
      %3423 = vst [vmem:[%s307 + $0xb8] sm:$0xff] %v2908
      %3424 = vst [vmem:[%s307 + $0xc0] sm:$0xff] %v2910
      %3425 = vst [vmem:[%s307 + $0xc8] sm:$0xff] %v3003
      %3426 = vst [vmem:[%s307 + $0xd0] sm:$0xff] %v3005
      %3427 = vst [vmem:[%s307 + $0xd8] sm:$0xff] %v3098
      %3428 = vst [vmem:[%s307 + $0xe0] sm:$0xff] %v3100
      %3429 = vst [vmem:[%s307 + $0xe8] sm:$0xff] %v3193
      %3430 = vst [vmem:[%s307 + $0xf0] sm:$0xff] %v3195
      %3431 = vst [vmem:[%s307 + $0xf8] sm:$0xff] %v3288
      %3432 = vst [vmem:[%s307 + $0x100] sm:$0xff] %v3290
      %3433 = vst [vmem:[%s307 + $0x108] sm:$0xff] %v3382
      %3434 = vst [vmem:[%s307 + $0x110] sm:$0xff] %v2629
      %3435 = vst [vmem:[%s307 + $0x118] sm:$0xff] %v2631
      %3436 = vst [vmem:[%s307 + $0x120] sm:$0xff] %v2724
      %3437 = vst [vmem:[%s307 + $0x128] sm:$0xff] %v2726
      %3438 = vst [vmem:[%s307 + $0x130] sm:$0xff] %v2819
      %3439 = vst [vmem:[%s307 + $0x138] sm:$0xff] %v2821
      %3440 = vst [vmem:[%s307 + $0x140] sm:$0xff] %v2914
      %3441 = vst [vmem:[%s307 + $0x148] sm:$0xff] %v2916
      %3442 = vst [vmem:[%s307 + $0x150] sm:$0xff] %v3009
      %3443 = vst [vmem:[%s307 + $0x158] sm:$0xff] %v3011
      %3444 = vst [vmem:[%s307 + $0x160] sm:$0xff] %v3104
      %3445 = vst [vmem:[%s307 + $0x168] sm:$0xff] %v3106
      %3446 = vst [vmem:[%s307 + $0x170] sm:$0xff] %v3199
      %3447 = vst [vmem:[%s307 + $0x178] sm:$0xff] %v3201
      %3448 = vst [vmem:[%s307 + $0x180] sm:$0xff] %v3294
      %3449 = vst [vmem:[%s307 + $0x188] sm:$0xff] %v3296
      %3450 = vst [vmem:[%s307 + $0x190] sm:$0xff] %v3387
      %3451 = vst [vmem:[%s307 + $0x198] sm:$0xff] %v2635
      %3452 = vst [vmem:[%s307 + $0x1a0] sm:$0xff] %v2637
      %3453 = vst [vmem:[%s307 + $0x1a8] sm:$0xff] %v2730
      %3454 = vst [vmem:[%s307 + $0x1b0] sm:$0xff] %v2732
      %3455 = vst [vmem:[%s307 + $0x1b8] sm:$0xff] %v2825
      %3456 = vst [vmem:[%s307 + $0x1c0] sm:$0xff] %v2827
      %3457 = vst [vmem:[%s307 + $0x1c8] sm:$0xff] %v2920
      %3458 = vst [vmem:[%s307 + $0x1d0] sm:$0xff] %v2922
      %3459 = vst [vmem:[%s307 + $0x1d8] sm:$0xff] %v3015
      %3460 = vst [vmem:[%s307 + $0x1e0] sm:$0xff] %v3017
      %3461 = vst [vmem:[%s307 + $0x1e8] sm:$0xff] %v3110
      %3462 = vst [vmem:[%s307 + $0x1f0] sm:$0xff] %v3112
      %3463 = vst [vmem:[%s307 + $0x1f8] sm:$0xff] %v3205
      %3464 = vst [vmem:[%s307 + $0x200] sm:$0xff] %v3207
      %3465 = vst [vmem:[%s307 + $0x208] sm:$0xff] %v3300
      %3466 = vst [vmem:[%s307 + $0x210] sm:$0xff] %v3302
      %3467 = vst [vmem:[%s307 + $0x218] sm:$0xff] %v3392
      %3468 = vst [vmem:[%s307 + $0x220] sm:$0x1] %v2641
      %3469 = vst [vmem:[%s307 + $0x228] sm:$0x1] %v2643
      %3470 = vst [vmem:[%s307 + $0x230] sm:$0x1] %v2736
      %3471 = vst [vmem:[%s307 + $0x238] sm:$0x1] %v2738
      %3472 = vst [vmem:[%s307 + $0x240] sm:$0x1] %v2831
      %3473 = vst [vmem:[%s307 + $0x248] sm:$0x1] %v2833
      %3474 = vst [vmem:[%s307 + $0x250] sm:$0x1] %v2926
      %3475 = vst [vmem:[%s307 + $0x258] sm:$0x1] %v2928
      %3476 = vst [vmem:[%s307 + $0x260] sm:$0x1] %v3021
      %3477 = vst [vmem:[%s307 + $0x268] sm:$0x1] %v3023
      %3478 = vst [vmem:[%s307 + $0x270] sm:$0x1] %v3116
      %3479 = vst [vmem:[%s307 + $0x278] sm:$0x1] %v3118
      %3480 = vst [vmem:[%s307 + $0x280] sm:$0x1] %v3211
      %3481 = vst [vmem:[%s307 + $0x288] sm:$0x1] %v3213
      %3482 = vst [vmem:[%s307 + $0x290] sm:$0x1] %v3306
      %3483 = vst [vmem:[%s307 + $0x298] sm:$0x1] %v3308
      %3484 = vst [vmem:[%s307 + $0x2a0] sm:$0x1] %v3397
      %p3485 = scmp.lt.s32.totalorder %s19, 1
      %s3486 = scalar_select %p3485, %s19, 1
      %s3487 = smul.addr %s3486, 85
      %s3488 = smul.addr %s3487, 8
      %s3489 = scalar_lea.vmem %s8, %s3488
      // Predicated region
      $region53: #{satellite_feature_extractor.3} parent=51 // pred_check
        %p3490 = pneg %p210
      $region54: #{satellite_feature_extractor.3} parent=51 // pred_check_branch
        %3492 = sbr.rel (%p3490) target = $region56
      $region55: #{satellite_feature_extractor.3} parent=51 // pred_region
        _
      $region56: #{satellite_feature_extractor.3} parent=51 // pred_fallthru
        _
    $region52: #{satellite_feature_extractor.3} parent=5 // pred_fallthru
      _
    %p3493 = scmp.le.s32.totalorder 2, %s14
    // Predicated region
    $region57: #{satellite_feature_extractor.3} parent=5 // pred_check
      %p3494 = pneg %p3493
    $region58: #{satellite_feature_extractor.3} parent=5 // pred_check_branch
      %3496 = sbr.rel (%p3494) target = $region60
    $region59: #{satellite_feature_extractor.3} parent=5 // pred_region
      %s3497 = ssub.s32 %s14, 2
      // Predicated region
      $region61: #{satellite_feature_extractor.3} parent=59 // pred_check
        %p3498 = pneg %p216
      $region62: #{satellite_feature_extractor.3} parent=59 // pred_check_branch
        %3500 = sbr.rel (%p3498) target = $region64
      $region63: #{satellite_feature_extractor.3} parent=59 // pred_region
        %p3501 = scmp.lt.s32.totalorder %s20, 1
        %s3502 = scalar_select %p3501, %s20, 1
        %s3503 = smul.addr %s3502, 85
        %s3504 = smul.addr %s3503, 8
        %s3505 = scalar_lea.vmem %s8, %s3504
      $region64: #{satellite_feature_extractor.3} parent=59 // pred_fallthru
        _
    $region60: #{satellite_feature_extractor.3} parent=5 // pred_fallthru
      _
  $region6: #{satellite_feature_extractor.3} parent=0 // loop_footer
    %s18 = sadd.s32 1, %s14
  $region7: #{satellite_feature_extractor.3} parent=0 // loop_footer_branch
    %13 = sbr.rel target = $region3
  $region8: #{satellite_feature_extractor.3} parent=0 // loop_exit
    _

</llo_original>
